<compile_context>
chip_gen: v7x
topology: tpu7x:2x2x1
jax: 0.10.0
libtpu: 0.0.40
codegen_flags: <defaults>
</compile_context>

<pallas_src>
import jax
import jax.numpy as jnp
from jax.experimental import pallas as pl
from jax.experimental.pallas import tpu as pltpu

# ---------------------------------------------------------------------------
# Problem sizes (small, consistent with the module's forward pass).
# ---------------------------------------------------------------------------
B = 2            # batch
T = 4            # max sequence length
V = 6            # panorama views per step (36 in the real model)
ANGLE = 8        # args.angle_feat_size
FEAT = 40        # feature_size (32 visual + 8 angle)
HID = 32         # hidden_size, bidirectional=False -> num_directions = 1
N_LABELS = 2     # detected labels per timestep
TOP_K = 3        # top_k_facts  (2 * TOP_K * 100 == 600, matching the module)
GLOVE = 300
CONV_OUT = 100
KNOW_OUT = 2 * TOP_K * CONV_OUT              # 600
AREA_LBL = 150
DIST_LBL = 150
KNOW_DIM = KNOW_OUT + AREA_LBL + DIST_LBL    # 900 == attention knowledge_dim
DET_FEAT = 100
DFEAT_DIM = DET_FEAT + 1 + 1                 # detect_feats + area + distance feats
NUM_CLASSES = 20
ATT_IN = FEAT + HID + KNOW_OUT + AREA_LBL + DIST_LBL + DET_FEAT   # 1072


def _vspec(shape):
    """Full-array VMEM block (everything is resident; grid=(1,))."""
    zero = (0,) * len(shape)
    return pl.BlockSpec(shape, lambda i, labels, _z=zero: _z)


# ---------------------------------------------------------------------------
# Fused forward kernel.
# ---------------------------------------------------------------------------
def _fused_kernel(labels_ref,                                    # SMEM (B*T*N_LABELS,)
                  x_ref, img_ref, det_ref, area_f_ref, dist_f_ref,
                  area_l_ref, dist_l_ref, fact_ref,
                  lstm_wih_ref, lstm_whh_ref, lstm_b_ref,
                  conv_w_ref, conv_b_ref,
                  att_wq_ref, att_wcat_ref, att_bo_ref,
                  wd_area_ref, wd_dist_ref,
                  post_wih_ref, post_whh_ref, post_b_ref,
                  out_ref,
                  ctx_scr, mf_scr, feat_scr):
    f32 = jnp.float32
    bf16 = jnp.bfloat16
    n_items = B * T

    def lstm_step(xg_t, h, c, whh, bias):
        # xg_t: precomputed x @ W_ih contribution, (B, 4H).  PyTorch gate order i,f,g,o.
        gates = xg_t + jnp.dot(h, whh, preferred_element_type=f32) + bias   # (B, 4H)
        lane = jax.lax.broadcasted_iota(jnp.int32, gates.shape, 1)
        is_g = jnp.logical_and(lane >= 2 * HID, lane < 3 * HID)
        # Whole-vreg activation (4H == 128 lanes): tanh on the g gate lanes, sigmoid else.
        act = jnp.where(is_g, jnp.tanh(gates), jax.nn.sigmoid(gates))
        i_g = act[:, 0 * HID:1 * HID]
        f_g = act[:, 1 * HID:2 * HID]
        g_g = act[:, 2 * HID:3 * HID]
        o_g = act[:, 3 * HID:4 * HID]
        c_new = f_g * c + i_g * g_g
        h_new = o_g * jnp.tanh(c_new)
        return h_new, c_new

    # ------------------- LSTM #1 over action embeddings ---------------------
    # Hoist the input-gate matmul out of the recurrent loop: one MXU call for all T.
    xg_all = jnp.dot(x_ref[...], lstm_wih_ref[...],
                     preferred_element_type=f32)                  # (B*T, 4H)
    whh1 = lstm_whh_ref[...]
    b1 = lstm_b_ref[...]
    h = jnp.zeros((B, HID), f32)
    c = jnp.zeros((B, HID), f32)
    for t in range(T):                                            # T=4, unrolled
        xg_t = jnp.concatenate(
            [xg_all[bi * T + t: bi * T + t + 1, :] for bi in range(B)], axis=0)
        h, c = lstm_step(xg_t, h, c, whh1, b1)
        for bi in range(B):                                       # rows are b-major (b*T + t)
            ctx_scr[bi * T + t: bi * T + t + 1, :] = h[bi:bi + 1, :]
    ctx2 = ctx_scr[...]                                           # (B*T, HID)

    # ------------------- Entity_Knowledge: gather + label mean --------------
    # mean_l(conv(fact_l)) == conv(mean_l(fact_l))  (the 1x1 conv is affine).
    inv_l = 1.0 / N_LABELS
    for n in range(n_items):
        acc = fact_ref[labels_ref[n * N_LABELS]]                  # (1, 2K*GLOVE)
        for l in range(1, N_LABELS):
            acc = acc + fact_ref[labels_ref[n * N_LABELS + l]]
        mf_scr[n:n + 1, :] = acc * inv_l

    # ------------------- pano soft-attention over the V views ---------------
    img = img_ref[...]                                            # (B*T, V, FEAT)
    q = jnp.dot(ctx2, att_wq_ref[...], preferred_element_type=f32)        # (B*T, FEAT)
    scores = jnp.sum(q[:, None, :] * img, axis=-1)                        # (B*T, V)
    scores = scores - jnp.max(scores, axis=-1, keepdims=True)
    e = jnp.exp(scores)
    attn = e / jnp.sum(e, axis=-1, keepdims=True)
    att_feat = jnp.sum(attn[:, :, None] * img, axis=1)                    # (B*T, FEAT)

    # ------------------- assemble fused attention input slab ----------------
    feat_scr[:, 0:FEAT] = att_feat
    feat_scr[:, FEAT:FEAT + HID] = ctx2
    conv_w = conv_w_ref[...]                                      # (GLOVE, CONV_OUT) bf16
    conv_b = conv_b_ref[...]                                      # (1, CONV_OUT) f32
    koff = FEAT + HID
    for k in range(2 * TOP_K):                                    # 1x1 conv, chunk by chunk
        mf_k = mf_scr[:, k * GLOVE:(k + 1) * GLOVE]               # (B*T, 300)
        ky_k = jnp.dot(mf_k.astype(bf16), conv_w,
                       preferred_element_type=f32) + conv_b       # (B*T, 100)
        feat_scr[:, koff + k * CONV_OUT: koff + (k + 1) * CONV_OUT] = ky_k
    aoff = koff + KNOW_OUT
    feat_scr[:, aoff:aoff + AREA_LBL] = area_l_ref[...]
    feat_scr[:, aoff + AREA_LBL:aoff + AREA_LBL + DIST_LBL] = dist_l_ref[...]
    doff = aoff + AREA_LBL + DIST_LBL
    feat_scr[:, doff:doff + DET_FEAT] = det_ref[...]

    # Single fused projection matmul (K = 1072); width-1 feats become broadcast adds.
    fx = feat_scr[...]                                            # (B*T, ATT_IN)
    pre = (jnp.dot(fx.astype(bf16), att_wcat_ref[...],
                   preferred_element_type=f32)
           + att_bo_ref[...]
           + area_f_ref[...] * wd_area_ref[...]                   # (B*T,1)*(1,HID)
           + dist_f_ref[...] * wd_dist_ref[...])
    x_att = jnp.tanh(pre)                                         # (B*T, HID)

    # ------------------- LSTM #2 (post_lstm) --------------------------------
    xg2_all = jnp.dot(x_att, post_wih_ref[...],
                      preferred_element_type=f32)                 # (B*T, 4H)
    whh2 = post_whh_ref[...]
    b2 = post_b_ref[...]
    h2 = jnp.zeros((B, HID), f32)
    c2 = jnp.zeros((B, HID), f32)
    for t in range(T):                                            # unrolled
        xg_t = jnp.concatenate(
            [xg2_all[bi * T + t: bi * T + t + 1, :] for bi in range(B)], axis=0)
        h2, c2 = lstm_step(xg_t, h2, c2, whh2, b2)
        for bi in range(B):
            out_ref[bi * T + t: bi * T + t + 1, :] = h2[bi:bi + 1, :]


# ---------------------------------------------------------------------------
# Parameters (deterministic synthetic init) + kernel-ready derived forms.
# ---------------------------------------------------------------------------
def init_params(key):
    ks = jax.random.split(key, 15)

    def w(k, shape, scale=0.05):
        return (scale * jax.random.normal(k, shape)).astype(jnp.float32)

    p = {
        # LSTM(feature_size -> hidden); bias = bias_ih + bias_hh folded together.
        "lstm_wih": w(ks[0], (FEAT, 4 * HID)),
        "lstm_whh": w(ks[1], (HID, 4 * HID)),
        "lstm_b":   w(ks[2], (1, 4 * HID)),
        # post_lstm(hidden -> hidden)
        "post_wih": w(ks[3], (HID, 4 * HID)),
        "post_whh": w(ks[4], (HID, 4 * HID)),
        "post_b":   w(ks[5], (1, 4 * HID)),
        # Entity_Knowledge: 1x1 conv 300 -> 100 and synthetic fact table.
        "conv_w": w(ks[6], (GLOVE, CONV_OUT)),
        "conv_b": w(ks[7], (1, CONV_OUT)),
        "fact_table": w(ks[8], (NUM_CLASSES, 2 * TOP_K, GLOVE), scale=1.0),
        # attention layer (pano_att_gcn_v6 stand-in)
        "att_wq":     w(ks[9], (HID, FEAT)),
        "att_wc_att": w(ks[10], (FEAT, HID)),
        "att_wc_ctx": w(ks[11], (HID, HID)),
        "att_wk":     w(ks[12], (KNOW_DIM, HID)),
        "att_wd":     w(ks[13], (DFEAT_DIM, HID)),
        "att_bo":     w(ks[14], (1, HID)),
    }

    # --- derived, kernel-ready forms (computed once at init) ---
    # fact table flattened per class so the in-kernel gather yields a single (1, 1800) row
    p["fact_flat"] = p["fact_table"].reshape(NUM_CLASSES, 1, 2 * TOP_K * GLOVE)
    # bf16 MXU operands (f32 accumulation in-kernel)
    p["conv_w_bf16"] = p["conv_w"].astype(jnp.bfloat16)
    # fused attention projection: rows ordered [att_feat | ctx | knowledge(900) | detect(100)]
    p["att_w_cat"] = jnp.concatenate(
        [p["att_wc_att"], p["att_wc_ctx"], p["att_wk"], p["att_wd"][:DET_FEAT]],
        axis=0).astype(jnp.bfloat16)                              # (1072, HID)
    p["att_wd_area"] = p["att_wd"][DET_FEAT:DET_FEAT + 1]         # (1, HID)
    p["att_wd_dist"] = p["att_wd"][DET_FEAT + 1:DET_FEAT + 2]     # (1, HID)
    return p


# ---------------------------------------------------------------------------
# SpeakerEncoder.forward (single fused pallas_call)
# ---------------------------------------------------------------------------
def speaker_encoder_forward(params, action_embeds, img_feats, teacher_action_view_ids,
                            detect_labels, detect_feats, distance_feats, distance_labels,
                            area_feats, area_labels, lengths):
    # TODO(synk): teacher_action_view_ids / lengths are consumed only by the missing
    # pano_att_gcn_v6 class; unused in this simplified attention.
    del teacher_action_view_ids, lengths
    # drop / drop3 / fact_embed_drop are identity in inference mode.

    n = B * T
    labels_flat = detect_labels.reshape(n * N_LABELS).astype(jnp.int32)

    # All (B, T, X) -> (B*T, X) reshapes below are contiguous (free bitcasts in XLA).
    ins = [
        action_embeds.reshape(n, FEAT),
        img_feats.reshape(n, V, FEAT),
        detect_feats.reshape(n, DET_FEAT),
        area_feats.reshape(n, 1),
        distance_feats.reshape(n, 1),
        area_labels.reshape(n, AREA_LBL),
        distance_labels.reshape(n, DIST_LBL),
        params["fact_flat"],
        params["lstm_wih"], params["lstm_whh"], params["lstm_b"],
        params["conv_w_bf16"], params["conv_b"],
        params["att_wq"], params["att_w_cat"], params["att_bo"],
        params["att_wd_area"], params["att_wd_dist"],
        params["post_wih"], params["post_whh"], params["post_b"],
    ]

    out = pl.pallas_call(
        _fused_kernel,
        out_shape=jax.ShapeDtypeStruct((n, HID), jnp.float32),
        grid_spec=pltpu.PrefetchScalarGridSpec(
            num_scalar_prefetch=1,                    # detect labels -> SMEM
            grid=(1,),
            in_specs=[_vspec(a.shape) for a in ins],
            out_specs=_vspec((n, HID)),
            scratch_shapes=[
                pltpu.VMEM((n, HID), jnp.float32),                  # ctx rows (b-major)
                pltpu.VMEM((n, 2 * TOP_K * GLOVE), jnp.float32),    # mean facts per item
                pltpu.VMEM((n, ATT_IN), jnp.float32),               # fused attention input
            ],
        ),
        compiler_params=pltpu.CompilerParams(dimension_semantics=("arbitrary",)),
    )(labels_flat, *ins)

    return out.reshape(B, T, HID)


if __name__ == "__main__":
    key = jax.random.PRNGKey(0)
    kp, k1, k2, k3, k4, k5, k6, k7, k8, k9 = jax.random.split(key, 10)

    params = init_params(kp)

    action_embeds = jax.random.normal(k1, (B, T, FEAT), dtype=jnp.float32)
    img_feats = jax.random.normal(k2, (B, T, V, FEAT), dtype=jnp.float32)
    teacher_action_view_ids = jax.random.randint(k3, (B, T), 0, V)
    detect_labels = jax.random.randint(k4, (B, T, N_LABELS), 0, NUM_CLASSES)
    detect_feats = jax.random.normal(k5, (B, T, DET_FEAT), dtype=jnp.float32)
    distance_feats = jax.random.normal(k6, (B, T, 1), dtype=jnp.float32)
    distance_labels = jax.random.normal(k7, (B, T, DIST_LBL), dtype=jnp.float32)
    area_feats = jax.random.normal(k8, (B, T, 1), dtype=jnp.float32)
    area_labels = jax.random.normal(k9, (B, T, AREA_LBL), dtype=jnp.float32)
    lengths = jnp.full((B,), T, dtype=jnp.int32)

    fwd = jax.jit(speaker_encoder_forward)
    out = fwd(params, action_embeds, img_feats, teacher_action_view_ids,
              detect_labels, detect_feats, distance_feats, distance_labels,
              area_feats, area_labels, lengths)
    out = jax.block_until_ready(out)
    assert out.shape == (B, T, HID)
    print("KERNEL_OK")
</pallas_src>

<mosaic_0001>
module attributes {stable_mosaic.version = 11 : i64} {
  func.func @_fused_kernel(%arg0: i32, %arg1: memref<16xi32, #tpu.memory_space<smem>>, %arg2: memref<8x40xf32, #tpu.memory_space<vmem>>, %arg3: memref<8x6x40xf32, #tpu.memory_space<vmem>>, %arg4: memref<8x100xf32, #tpu.memory_space<vmem>>, %arg5: memref<8x1xf32, #tpu.memory_space<vmem>>, %arg6: memref<8x1xf32, #tpu.memory_space<vmem>>, %arg7: memref<8x150xf32, #tpu.memory_space<vmem>>, %arg8: memref<8x150xf32, #tpu.memory_space<vmem>>, %arg9: memref<20x1x1800xf32, #tpu.memory_space<vmem>>, %arg10: memref<40x128xf32, #tpu.memory_space<vmem>>, %arg11: memref<32x128xf32, #tpu.memory_space<vmem>>, %arg12: memref<1x128xf32, #tpu.memory_space<vmem>>, %arg13: memref<300x100xbf16, #tpu.memory_space<vmem>>, %arg14: memref<1x100xf32, #tpu.memory_space<vmem>>, %arg15: memref<32x40xf32, #tpu.memory_space<vmem>>, %arg16: memref<1072x32xbf16, #tpu.memory_space<vmem>>, %arg17: memref<1x32xf32, #tpu.memory_space<vmem>>, %arg18: memref<1x32xf32, #tpu.memory_space<vmem>>, %arg19: memref<1x32xf32, #tpu.memory_space<vmem>>, %arg20: memref<32x128xf32, #tpu.memory_space<vmem>>, %arg21: memref<32x128xf32, #tpu.memory_space<vmem>>, %arg22: memref<1x128xf32, #tpu.memory_space<vmem>>, %arg23: memref<8x32xf32, #tpu.memory_space<vmem>>, %arg24: memref<8x32xf32, #tpu.memory_space<vmem>>, %arg25: memref<8x1800xf32, #tpu.memory_space<vmem>>, %arg26: memref<8x1072xf32, #tpu.memory_space<vmem>>) attributes {dimension_semantics = [#tpu.dimension_semantics<arbitrary>], iteration_bounds = array<i64: 1>, scalar_prefetch = 1 : i64, scratch_operands = 3 : i64, tpu.core_type = #tpu.core_type<tc>, window_params = [{pipeline_mode = #tpu.pipeline_mode<synchronous>, transform_indices = @transform_0, window_bounds = array<i64: 8, 40>}, {pipeline_mode = #tpu.pipeline_mode<synchronous>, transform_indices = @transform_1, window_bounds = array<i64: 8, 6, 40>}, {pipeline_mode = #tpu.pipeline_mode<synchronous>, transform_indices = @transform_2, window_bounds = array<i64: 8, 100>}, {pipeline_mode = #tpu.pipeline_mode<synchronous>, transform_indices = @transform_3, window_bounds = array<i64: 8, 1>}, {pipeline_mode = #tpu.pipeline_mode<synchronous>, transform_indices = @transform_4, window_bounds = array<i64: 8, 1>}, {pipeline_mode = #tpu.pipeline_mode<synchronous>, transform_indices = @transform_5, window_bounds = array<i64: 8, 150>}, {pipeline_mode = #tpu.pipeline_mode<synchronous>, transform_indices = @transform_6, window_bounds = array<i64: 8, 150>}, {pipeline_mode = #tpu.pipeline_mode<synchronous>, transform_indices = @transform_7, window_bounds = array<i64: 20, 1, 1800>}, {pipeline_mode = #tpu.pipeline_mode<synchronous>, transform_indices = @transform_8, window_bounds = array<i64: 40, 128>}, {pipeline_mode = #tpu.pipeline_mode<synchronous>, transform_indices = @transform_9, window_bounds = array<i64: 32, 128>}, {pipeline_mode = #tpu.pipeline_mode<synchronous>, transform_indices = @transform_10, window_bounds = array<i64: 1, 128>}, {pipeline_mode = #tpu.pipeline_mode<synchronous>, transform_indices = @transform_11, window_bounds = array<i64: 300, 100>}, {pipeline_mode = #tpu.pipeline_mode<synchronous>, transform_indices = @transform_12, window_bounds = array<i64: 1, 100>}, {pipeline_mode = #tpu.pipeline_mode<synchronous>, transform_indices = @transform_13, window_bounds = array<i64: 32, 40>}, {pipeline_mode = #tpu.pipeline_mode<synchronous>, transform_indices = @transform_14, window_bounds = array<i64: 1072, 32>}, {pipeline_mode = #tpu.pipeline_mode<synchronous>, transform_indices = @transform_15, window_bounds = array<i64: 1, 32>}, {pipeline_mode = #tpu.pipeline_mode<synchronous>, transform_indices = @transform_16, window_bounds = array<i64: 1, 32>}, {pipeline_mode = #tpu.pipeline_mode<synchronous>, transform_indices = @transform_17, window_bounds = array<i64: 1, 32>}, {pipeline_mode = #tpu.pipeline_mode<synchronous>, transform_indices = @transform_18, window_bounds = array<i64: 32, 128>}, {pipeline_mode = #tpu.pipeline_mode<synchronous>, transform_indices = @transform_19, window_bounds = array<i64: 32, 128>}, {pipeline_mode = #tpu.pipeline_mode<synchronous>, transform_indices = @transform_20, window_bounds = array<i64: 1, 128>}, {pipeline_mode = #tpu.pipeline_mode<synchronous>, transform_indices = @transform_21, window_bounds = array<i64: 8, 32>}]} {
    %c0 = arith.constant 0 : index
    %c0_0 = arith.constant 0 : index
    %0 = vector.load %arg2[%c0, %c0_0] : memref<8x40xf32, #tpu.memory_space<vmem>>, vector<8x40xf32>
    %c0_1 = arith.constant 0 : index
    %c0_2 = arith.constant 0 : index
    %1 = vector.load %arg10[%c0_1, %c0_2] : memref<40x128xf32, #tpu.memory_space<vmem>>, vector<40x128xf32>
    %cst = arith.constant dense<0.000000e+00> : vector<8x128xf32>
    %2 = tpu.matmul %0, %1, %cst {dimension_numbers = #tpu.dot_dimension_numbers<[1], [0], [0], [1], [0, 0, 1, 1], [], []>} : vector<8x40xf32>, vector<40x128xf32>, vector<8x128xf32> -> vector<8x128xf32>
    %c0_3 = arith.constant 0 : index
    %c0_4 = arith.constant 0 : index
    %3 = vector.load %arg11[%c0_3, %c0_4] : memref<32x128xf32, #tpu.memory_space<vmem>>, vector<32x128xf32>
    %c0_5 = arith.constant 0 : index
    %c0_6 = arith.constant 0 : index
    %4 = vector.load %arg12[%c0_5, %c0_6] : memref<1x128xf32, #tpu.memory_space<vmem>>, vector<1x128xf32>
    %cst_7 = arith.constant 0.000000e+00 : f32
    %5 = vector.broadcast %cst_7 : f32 to vector<2x32xf32>
    %cst_8 = arith.constant 0.000000e+00 : f32
    %6 = vector.broadcast %cst_8 : f32 to vector<2x32xf32>
    %7 = vector.extract_strided_slice %2 {offsets = [0, 0], sizes = [1, 128], strides = [1, 1]} : vector<8x128xf32> to vector<1x128xf32>
    %8 = vector.extract_strided_slice %2 {offsets = [4, 0], sizes = [1, 128], strides = [1, 1]} : vector<8x128xf32> to vector<1x128xf32>
    %9 = tpu.concatenate %7, %8 in 0 : vector<1x128xf32>, vector<1x128xf32> -> vector<2x128xf32>
    %cst_9 = arith.constant dense<0.000000e+00> : vector<2x128xf32>
    %10 = tpu.matmul %5, %3, %cst_9 {dimension_numbers = #tpu.dot_dimension_numbers<[1], [0], [0], [1], [0, 0, 1, 1], [], []>} : vector<2x32xf32>, vector<32x128xf32>, vector<2x128xf32> -> vector<2x128xf32>
    %11 = arith.addf %9, %10 : vector<2x128xf32>
    %12 = vector.broadcast %4 : vector<1x128xf32> to vector<2x128xf32>
    %13 = arith.addf %11, %12 : vector<2x128xf32>
    %14 = tpu.iota {dimensions = array<i32: 1>} : vector<2x128xi32>
    %c64_i32 = arith.constant 64 : i32
    %15 = vector.broadcast %c64_i32 : i32 to vector<2x128xi32>
    %16 = arith.cmpi sge, %14, %15 : vector<2x128xi32>
    %c96_i32 = arith.constant 96 : i32
    %17 = vector.broadcast %c96_i32 : i32 to vector<2x128xi32>
    %18 = arith.cmpi slt, %14, %17 : vector<2x128xi32>
    %19 = arith.andi %16, %18 : vector<2x128xi1>
    %20 = math.tanh %13 : vector<2x128xf32>
    %21 = arith.negf %13 : vector<2x128xf32>
    %22 = math.exp %21 : vector<2x128xf32>
    %cst_10 = arith.constant 1.000000e+00 : f32
    %23 = vector.broadcast %cst_10 : f32 to vector<2x128xf32>
    %24 = arith.addf %23, %22 : vector<2x128xf32>
    %25 = arith.divf %23, %24 : vector<2x128xf32>
    %26 = arith.select %19, %20, %25 : vector<2x128xi1>, vector<2x128xf32>
    %27 = vector.extract_strided_slice %26 {offsets = [0, 0], sizes = [2, 32], strides = [1, 1]} : vector<2x128xf32> to vector<2x32xf32>
    %28 = vector.extract_strided_slice %26 {offsets = [0, 32], sizes = [2, 32], strides = [1, 1]} : vector<2x128xf32> to vector<2x32xf32>
    %29 = vector.extract_strided_slice %26 {offsets = [0, 64], sizes = [2, 32], strides = [1, 1]} : vector<2x128xf32> to vector<2x32xf32>
    %30 = vector.extract_strided_slice %26 {offsets = [0, 96], sizes = [2, 32], strides = [1, 1]} : vector<2x128xf32> to vector<2x32xf32>
    %31 = arith.mulf %28, %6 : vector<2x32xf32>
    %32 = arith.mulf %27, %29 : vector<2x32xf32>
    %33 = arith.addf %31, %32 : vector<2x32xf32>
    %34 = math.tanh %33 : vector<2x32xf32>
    %35 = arith.mulf %30, %34 : vector<2x32xf32>
    %36 = vector.extract_strided_slice %35 {offsets = [0, 0], sizes = [1, 32], strides = [1, 1]} : vector<2x32xf32> to vector<1x32xf32>
    %c0_11 = arith.constant 0 : index
    %c0_12 = arith.constant 0 : index
    %37 = vector.load %arg24[%c0_11, %c0_12] : memref<8x32xf32, #tpu.memory_space<vmem>>, vector<1x32xf32>
    tpu.vector_store %arg24[%c0_11, %c0_12], %36 {strides = array<i32>} : memref<8x32xf32, #tpu.memory_space<vmem>>, vector<1x32xf32>,
    %38 = vector.extract_strided_slice %35 {offsets = [1, 0], sizes = [1, 32], strides = [1, 1]} : vector<2x32xf32> to vector<1x32xf32>
    %c4 = arith.constant 4 : index
    %c0_13 = arith.constant 0 : index
    %39 = vector.load %arg24[%c4, %c0_13] : memref<8x32xf32, #tpu.memory_space<vmem>>, vector<1x32xf32>
    tpu.vector_store %arg24[%c4, %c0_13], %38 {strides = array<i32>} : memref<8x32xf32, #tpu.memory_space<vmem>>, vector<1x32xf32>,
    %40 = vector.extract_strided_slice %2 {offsets = [1, 0], sizes = [1, 128], strides = [1, 1]} : vector<8x128xf32> to vector<1x128xf32>
    %41 = vector.extract_strided_slice %2 {offsets = [5, 0], sizes = [1, 128], strides = [1, 1]} : vector<8x128xf32> to vector<1x128xf32>
    %42 = tpu.concatenate %40, %41 in 0 : vector<1x128xf32>, vector<1x128xf32> -> vector<2x128xf32>
    %cst_14 = arith.constant dense<0.000000e+00> : vector<2x128xf32>
    %43 = tpu.matmul %35, %3, %cst_14 {dimension_numbers = #tpu.dot_dimension_numbers<[1], [0], [0], [1], [0, 0, 1, 1], [], []>} : vector<2x32xf32>, vector<32x128xf32>, vector<2x128xf32> -> vector<2x128xf32>
    %44 = arith.addf %42, %43 : vector<2x128xf32>
    %45 = vector.broadcast %4 : vector<1x128xf32> to vector<2x128xf32>
    %46 = arith.addf %44, %45 : vector<2x128xf32>
    %47 = tpu.iota {dimensions = array<i32: 1>} : vector<2x128xi32>
    %c64_i32_15 = arith.constant 64 : i32
    %48 = vector.broadcast %c64_i32_15 : i32 to vector<2x128xi32>
    %49 = arith.cmpi sge, %47, %48 : vector<2x128xi32>
    %c96_i32_16 = arith.constant 96 : i32
    %50 = vector.broadcast %c96_i32_16 : i32 to vector<2x128xi32>
    %51 = arith.cmpi slt, %47, %50 : vector<2x128xi32>
    %52 = arith.andi %49, %51 : vector<2x128xi1>
    %53 = math.tanh %46 : vector<2x128xf32>
    %54 = arith.negf %46 : vector<2x128xf32>
    %55 = math.exp %54 : vector<2x128xf32>
    %cst_17 = arith.constant 1.000000e+00 : f32
    %56 = vector.broadcast %cst_17 : f32 to vector<2x128xf32>
    %57 = arith.addf %56, %55 : vector<2x128xf32>
    %58 = arith.divf %56, %57 : vector<2x128xf32>
    %59 = arith.select %52, %53, %58 : vector<2x128xi1>, vector<2x128xf32>
    %60 = vector.extract_strided_slice %59 {offsets = [0, 0], sizes = [2, 32], strides = [1, 1]} : vector<2x128xf32> to vector<2x32xf32>
    %61 = vector.extract_strided_slice %59 {offsets = [0, 32], sizes = [2, 32], strides = [1, 1]} : vector<2x128xf32> to vector<2x32xf32>
    %62 = vector.extract_strided_slice %59 {offsets = [0, 64], sizes = [2, 32], strides = [1, 1]} : vector<2x128xf32> to vector<2x32xf32>
    %63 = vector.extract_strided_slice %59 {offsets = [0, 96], sizes = [2, 32], strides = [1, 1]} : vector<2x128xf32> to vector<2x32xf32>
    %64 = arith.mulf %61, %33 : vector<2x32xf32>
    %65 = arith.mulf %60, %62 : vector<2x32xf32>
    %66 = arith.addf %64, %65 : vector<2x32xf32>
    %67 = math.tanh %66 : vector<2x32xf32>
    %68 = arith.mulf %63, %67 : vector<2x32xf32>
    %69 = vector.extract_strided_slice %68 {offsets = [0, 0], sizes = [1, 32], strides = [1, 1]} : vector<2x32xf32> to vector<1x32xf32>
    %c1 = arith.constant 1 : index
    %c0_18 = arith.constant 0 : index
    %70 = vector.load %arg24[%c1, %c0_18] : memref<8x32xf32, #tpu.memory_space<vmem>>, vector<1x32xf32>
    tpu.vector_store %arg24[%c1, %c0_18], %69 {strides = array<i32>} : memref<8x32xf32, #tpu.memory_space<vmem>>, vector<1x32xf32>,
    %71 = vector.extract_strided_slice %68 {offsets = [1, 0], sizes = [1, 32], strides = [1, 1]} : vector<2x32xf32> to vector<1x32xf32>
    %c5 = arith.constant 5 : index
    %c0_19 = arith.constant 0 : index
    %72 = vector.load %arg24[%c5, %c0_19] : memref<8x32xf32, #tpu.memory_space<vmem>>, vector<1x32xf32>
    tpu.vector_store %arg24[%c5, %c0_19], %71 {strides = array<i32>} : memref<8x32xf32, #tpu.memory_space<vmem>>, vector<1x32xf32>,
    %73 = vector.extract_strided_slice %2 {offsets = [2, 0], sizes = [1, 128], strides = [1, 1]} : vector<8x128xf32> to vector<1x128xf32>
    %74 = vector.extract_strided_slice %2 {offsets = [6, 0], sizes = [1, 128], strides = [1, 1]} : vector<8x128xf32> to vector<1x128xf32>
    %75 = tpu.concatenate %73, %74 in 0 : vector<1x128xf32>, vector<1x128xf32> -> vector<2x128xf32>
    %cst_20 = arith.constant dense<0.000000e+00> : vector<2x128xf32>
    %76 = tpu.matmul %68, %3, %cst_20 {dimension_numbers = #tpu.dot_dimension_numbers<[1], [0], [0], [1], [0, 0, 1, 1], [], []>} : vector<2x32xf32>, vector<32x128xf32>, vector<2x128xf32> -> vector<2x128xf32>
    %77 = arith.addf %75, %76 : vector<2x128xf32>
    %78 = vector.broadcast %4 : vector<1x128xf32> to vector<2x128xf32>
    %79 = arith.addf %77, %78 : vector<2x128xf32>
    %80 = tpu.iota {dimensions = array<i32: 1>} : vector<2x128xi32>
    %c64_i32_21 = arith.constant 64 : i32
    %81 = vector.broadcast %c64_i32_21 : i32 to vector<2x128xi32>
    %82 = arith.cmpi sge, %80, %81 : vector<2x128xi32>
    %c96_i32_22 = arith.constant 96 : i32
    %83 = vector.broadcast %c96_i32_22 : i32 to vector<2x128xi32>
    %84 = arith.cmpi slt, %80, %83 : vector<2x128xi32>
    %85 = arith.andi %82, %84 : vector<2x128xi1>
    %86 = math.tanh %79 : vector<2x128xf32>
    %87 = arith.negf %79 : vector<2x128xf32>
    %88 = math.exp %87 : vector<2x128xf32>
    %cst_23 = arith.constant 1.000000e+00 : f32
    %89 = vector.broadcast %cst_23 : f32 to vector<2x128xf32>
    %90 = arith.addf %89, %88 : vector<2x128xf32>
    %91 = arith.divf %89, %90 : vector<2x128xf32>
    %92 = arith.select %85, %86, %91 : vector<2x128xi1>, vector<2x128xf32>
    %93 = vector.extract_strided_slice %92 {offsets = [0, 0], sizes = [2, 32], strides = [1, 1]} : vector<2x128xf32> to vector<2x32xf32>
    %94 = vector.extract_strided_slice %92 {offsets = [0, 32], sizes = [2, 32], strides = [1, 1]} : vector<2x128xf32> to vector<2x32xf32>
    %95 = vector.extract_strided_slice %92 {offsets = [0, 64], sizes = [2, 32], strides = [1, 1]} : vector<2x128xf32> to vector<2x32xf32>
    %96 = vector.extract_strided_slice %92 {offsets = [0, 96], sizes = [2, 32], strides = [1, 1]} : vector<2x128xf32> to vector<2x32xf32>
    %97 = arith.mulf %94, %66 : vector<2x32xf32>
    %98 = arith.mulf %93, %95 : vector<2x32xf32>
    %99 = arith.addf %97, %98 : vector<2x32xf32>
    %100 = math.tanh %99 : vector<2x32xf32>
    %101 = arith.mulf %96, %100 : vector<2x32xf32>
    %102 = vector.extract_strided_slice %101 {offsets = [0, 0], sizes = [1, 32], strides = [1, 1]} : vector<2x32xf32> to vector<1x32xf32>
    %c2 = arith.constant 2 : index
    %c0_24 = arith.constant 0 : index
    %103 = vector.load %arg24[%c2, %c0_24] : memref<8x32xf32, #tpu.memory_space<vmem>>, vector<1x32xf32>
    tpu.vector_store %arg24[%c2, %c0_24], %102 {strides = array<i32>} : memref<8x32xf32, #tpu.memory_space<vmem>>, vector<1x32xf32>,
    %104 = vector.extract_strided_slice %101 {offsets = [1, 0], sizes = [1, 32], strides = [1, 1]} : vector<2x32xf32> to vector<1x32xf32>
    %c6 = arith.constant 6 : index
    %c0_25 = arith.constant 0 : index
    %105 = vector.load %arg24[%c6, %c0_25] : memref<8x32xf32, #tpu.memory_space<vmem>>, vector<1x32xf32>
    tpu.vector_store %arg24[%c6, %c0_25], %104 {strides = array<i32>} : memref<8x32xf32, #tpu.memory_space<vmem>>, vector<1x32xf32>,
    %106 = vector.extract_strided_slice %2 {offsets = [3, 0], sizes = [1, 128], strides = [1, 1]} : vector<8x128xf32> to vector<1x128xf32>
    %107 = vector.extract_strided_slice %2 {offsets = [7, 0], sizes = [1, 128], strides = [1, 1]} : vector<8x128xf32> to vector<1x128xf32>
    %108 = tpu.concatenate %106, %107 in 0 : vector<1x128xf32>, vector<1x128xf32> -> vector<2x128xf32>
    %cst_26 = arith.constant dense<0.000000e+00> : vector<2x128xf32>
    %109 = tpu.matmul %101, %3, %cst_26 {dimension_numbers = #tpu.dot_dimension_numbers<[1], [0], [0], [1], [0, 0, 1, 1], [], []>} : vector<2x32xf32>, vector<32x128xf32>, vector<2x128xf32> -> vector<2x128xf32>
    %110 = arith.addf %108, %109 : vector<2x128xf32>
    %111 = vector.broadcast %4 : vector<1x128xf32> to vector<2x128xf32>
    %112 = arith.addf %110, %111 : vector<2x128xf32>
    %113 = tpu.iota {dimensions = array<i32: 1>} : vector<2x128xi32>
    %c64_i32_27 = arith.constant 64 : i32
    %114 = vector.broadcast %c64_i32_27 : i32 to vector<2x128xi32>
    %115 = arith.cmpi sge, %113, %114 : vector<2x128xi32>
    %c96_i32_28 = arith.constant 96 : i32
    %116 = vector.broadcast %c96_i32_28 : i32 to vector<2x128xi32>
    %117 = arith.cmpi slt, %113, %116 : vector<2x128xi32>
    %118 = arith.andi %115, %117 : vector<2x128xi1>
    %119 = math.tanh %112 : vector<2x128xf32>
    %120 = arith.negf %112 : vector<2x128xf32>
    %121 = math.exp %120 : vector<2x128xf32>
    %cst_29 = arith.constant 1.000000e+00 : f32
    %122 = vector.broadcast %cst_29 : f32 to vector<2x128xf32>
    %123 = arith.addf %122, %121 : vector<2x128xf32>
    %124 = arith.divf %122, %123 : vector<2x128xf32>
    %125 = arith.select %118, %119, %124 : vector<2x128xi1>, vector<2x128xf32>
    %126 = vector.extract_strided_slice %125 {offsets = [0, 0], sizes = [2, 32], strides = [1, 1]} : vector<2x128xf32> to vector<2x32xf32>
    %127 = vector.extract_strided_slice %125 {offsets = [0, 32], sizes = [2, 32], strides = [1, 1]} : vector<2x128xf32> to vector<2x32xf32>
    %128 = vector.extract_strided_slice %125 {offsets = [0, 64], sizes = [2, 32], strides = [1, 1]} : vector<2x128xf32> to vector<2x32xf32>
    %129 = vector.extract_strided_slice %125 {offsets = [0, 96], sizes = [2, 32], strides = [1, 1]} : vector<2x128xf32> to vector<2x32xf32>
    %130 = arith.mulf %127, %99 : vector<2x32xf32>
    %131 = arith.mulf %126, %128 : vector<2x32xf32>
    %132 = arith.addf %130, %131 : vector<2x32xf32>
    %133 = math.tanh %132 : vector<2x32xf32>
    %134 = arith.mulf %129, %133 : vector<2x32xf32>
    %135 = vector.extract_strided_slice %134 {offsets = [0, 0], sizes = [1, 32], strides = [1, 1]} : vector<2x32xf32> to vector<1x32xf32>
    %c3 = arith.constant 3 : index
    %c0_30 = arith.constant 0 : index
    %136 = vector.load %arg24[%c3, %c0_30] : memref<8x32xf32, #tpu.memory_space<vmem>>, vector<1x32xf32>
    tpu.vector_store %arg24[%c3, %c0_30], %135 {strides = array<i32>} : memref<8x32xf32, #tpu.memory_space<vmem>>, vector<1x32xf32>,
    %137 = vector.extract_strided_slice %134 {offsets = [1, 0], sizes = [1, 32], strides = [1, 1]} : vector<2x32xf32> to vector<1x32xf32>
    %c7 = arith.constant 7 : index
    %c0_31 = arith.constant 0 : index
    %138 = vector.load %arg24[%c7, %c0_31] : memref<8x32xf32, #tpu.memory_space<vmem>>, vector<1x32xf32>
    tpu.vector_store %arg24[%c7, %c0_31], %137 {strides = array<i32>} : memref<8x32xf32, #tpu.memory_space<vmem>>, vector<1x32xf32>,
    %c0_32 = arith.constant 0 : index
    %c0_33 = arith.constant 0 : index
    %139 = vector.load %arg24[%c0_32, %c0_33] : memref<8x32xf32, #tpu.memory_space<vmem>>, vector<8x32xf32>
    %c0_34 = arith.constant 0 : index
    %140 = memref.load %arg1[%c0_34] : memref<16xi32, #tpu.memory_space<smem>>
    %141 = arith.index_cast %140 : i32 to index
    %c0_35 = arith.constant 0 : index
    %c0_36 = arith.constant 0 : index
    %142 = vector.load %arg9[%141, %c0_35, %c0_36] : memref<20x1x1800xf32, #tpu.memory_space<vmem>>, vector<1x1x1800xf32>
    %143 = vector.shape_cast %142 : vector<1x1x1800xf32> to vector<1x1800xf32>
    %c1_37 = arith.constant 1 : index
    %144 = memref.load %arg1[%c1_37] : memref<16xi32, #tpu.memory_space<smem>>
    %145 = arith.index_cast %144 : i32 to index
    %c0_38 = arith.constant 0 : index
    %c0_39 = arith.constant 0 : index
    %146 = vector.load %arg9[%145, %c0_38, %c0_39] : memref<20x1x1800xf32, #tpu.memory_space<vmem>>, vector<1x1x1800xf32>
    %147 = vector.shape_cast %146 : vector<1x1x1800xf32> to vector<1x1800xf32>
    %148 = arith.addf %143, %147 : vector<1x1800xf32>
    %cst_40 = arith.constant 5.000000e-01 : f32
    %149 = vector.broadcast %cst_40 : f32 to vector<1x1800xf32>
    %150 = arith.mulf %148, %149 : vector<1x1800xf32>
    %c0_41 = arith.constant 0 : index
    %c0_42 = arith.constant 0 : index
    %151 = vector.load %arg25[%c0_41, %c0_42] : memref<8x1800xf32, #tpu.memory_space<vmem>>, vector<1x1800xf32>
    tpu.vector_store %arg25[%c0_41, %c0_42], %150 {strides = array<i32>} : memref<8x1800xf32, #tpu.memory_space<vmem>>, vector<1x1800xf32>,
    %c2_43 = arith.constant 2 : index
    %152 = memref.load %arg1[%c2_43] : memref<16xi32, #tpu.memory_space<smem>>
    %153 = arith.index_cast %152 : i32 to index
    %c0_44 = arith.constant 0 : index
    %c0_45 = arith.constant 0 : index
    %154 = vector.load %arg9[%153, %c0_44, %c0_45] : memref<20x1x1800xf32, #tpu.memory_space<vmem>>, vector<1x1x1800xf32>
    %155 = vector.shape_cast %154 : vector<1x1x1800xf32> to vector<1x1800xf32>
    %c3_46 = arith.constant 3 : index
    %156 = memref.load %arg1[%c3_46] : memref<16xi32, #tpu.memory_space<smem>>
    %157 = arith.index_cast %156 : i32 to index
    %c0_47 = arith.constant 0 : index
    %c0_48 = arith.constant 0 : index
    %158 = vector.load %arg9[%157, %c0_47, %c0_48] : memref<20x1x1800xf32, #tpu.memory_space<vmem>>, vector<1x1x1800xf32>
    %159 = vector.shape_cast %158 : vector<1x1x1800xf32> to vector<1x1800xf32>
    %160 = arith.addf %155, %159 : vector<1x1800xf32>
    %cst_49 = arith.constant 5.000000e-01 : f32
    %161 = vector.broadcast %cst_49 : f32 to vector<1x1800xf32>
    %162 = arith.mulf %160, %161 : vector<1x1800xf32>
    %c1_50 = arith.constant 1 : index
    %c0_51 = arith.constant 0 : index
    %163 = vector.load %arg25[%c1_50, %c0_51] : memref<8x1800xf32, #tpu.memory_space<vmem>>, vector<1x1800xf32>
    tpu.vector_store %arg25[%c1_50, %c0_51], %162 {strides = array<i32>} : memref<8x1800xf32, #tpu.memory_space<vmem>>, vector<1x1800xf32>,
    %c4_52 = arith.constant 4 : index
    %164 = memref.load %arg1[%c4_52] : memref<16xi32, #tpu.memory_space<smem>>
    %165 = arith.index_cast %164 : i32 to index
    %c0_53 = arith.constant 0 : index
    %c0_54 = arith.constant 0 : index
    %166 = vector.load %arg9[%165, %c0_53, %c0_54] : memref<20x1x1800xf32, #tpu.memory_space<vmem>>, vector<1x1x1800xf32>
    %167 = vector.shape_cast %166 : vector<1x1x1800xf32> to vector<1x1800xf32>
    %c5_55 = arith.constant 5 : index
    %168 = memref.load %arg1[%c5_55] : memref<16xi32, #tpu.memory_space<smem>>
    %169 = arith.index_cast %168 : i32 to index
    %c0_56 = arith.constant 0 : index
    %c0_57 = arith.constant 0 : index
    %170 = vector.load %arg9[%169, %c0_56, %c0_57] : memref<20x1x1800xf32, #tpu.memory_space<vmem>>, vector<1x1x1800xf32>
    %171 = vector.shape_cast %170 : vector<1x1x1800xf32> to vector<1x1800xf32>
    %172 = arith.addf %167, %171 : vector<1x1800xf32>
    %cst_58 = arith.constant 5.000000e-01 : f32
    %173 = vector.broadcast %cst_58 : f32 to vector<1x1800xf32>
    %174 = arith.mulf %172, %173 : vector<1x1800xf32>
    %c2_59 = arith.constant 2 : index
    %c0_60 = arith.constant 0 : index
    %175 = vector.load %arg25[%c2_59, %c0_60] : memref<8x1800xf32, #tpu.memory_space<vmem>>, vector<1x1800xf32>
    tpu.vector_store %arg25[%c2_59, %c0_60], %174 {strides = array<i32>} : memref<8x1800xf32, #tpu.memory_space<vmem>>, vector<1x1800xf32>,
    %c6_61 = arith.constant 6 : index
    %176 = memref.load %arg1[%c6_61] : memref<16xi32, #tpu.memory_space<smem>>
    %177 = arith.index_cast %176 : i32 to index
    %c0_62 = arith.constant 0 : index
    %c0_63 = arith.constant 0 : index
    %178 = vector.load %arg9[%177, %c0_62, %c0_63] : memref<20x1x1800xf32, #tpu.memory_space<vmem>>, vector<1x1x1800xf32>
    %179 = vector.shape_cast %178 : vector<1x1x1800xf32> to vector<1x1800xf32>
    %c7_64 = arith.constant 7 : index
    %180 = memref.load %arg1[%c7_64] : memref<16xi32, #tpu.memory_space<smem>>
    %181 = arith.index_cast %180 : i32 to index
    %c0_65 = arith.constant 0 : index
    %c0_66 = arith.constant 0 : index
    %182 = vector.load %arg9[%181, %c0_65, %c0_66] : memref<20x1x1800xf32, #tpu.memory_space<vmem>>, vector<1x1x1800xf32>
    %183 = vector.shape_cast %182 : vector<1x1x1800xf32> to vector<1x1800xf32>
    %184 = arith.addf %179, %183 : vector<1x1800xf32>
    %cst_67 = arith.constant 5.000000e-01 : f32
    %185 = vector.broadcast %cst_67 : f32 to vector<1x1800xf32>
    %186 = arith.mulf %184, %185 : vector<1x1800xf32>
    %c3_68 = arith.constant 3 : index
    %c0_69 = arith.constant 0 : index
    %187 = vector.load %arg25[%c3_68, %c0_69] : memref<8x1800xf32, #tpu.memory_space<vmem>>, vector<1x1800xf32>
    tpu.vector_store %arg25[%c3_68, %c0_69], %186 {strides = array<i32>} : memref<8x1800xf32, #tpu.memory_space<vmem>>, vector<1x1800xf32>,
    %c8 = arith.constant 8 : index
    %188 = memref.load %arg1[%c8] : memref<16xi32, #tpu.memory_space<smem>>
    %189 = arith.index_cast %188 : i32 to index
    %c0_70 = arith.constant 0 : index
    %c0_71 = arith.constant 0 : index
    %190 = vector.load %arg9[%189, %c0_70, %c0_71] : memref<20x1x1800xf32, #tpu.memory_space<vmem>>, vector<1x1x1800xf32>
    %191 = vector.shape_cast %190 : vector<1x1x1800xf32> to vector<1x1800xf32>
    %c9 = arith.constant 9 : index
    %192 = memref.load %arg1[%c9] : memref<16xi32, #tpu.memory_space<smem>>
    %193 = arith.index_cast %192 : i32 to index
    %c0_72 = arith.constant 0 : index
    %c0_73 = arith.constant 0 : index
    %194 = vector.load %arg9[%193, %c0_72, %c0_73] : memref<20x1x1800xf32, #tpu.memory_space<vmem>>, vector<1x1x1800xf32>
    %195 = vector.shape_cast %194 : vector<1x1x1800xf32> to vector<1x1800xf32>
    %196 = arith.addf %191, %195 : vector<1x1800xf32>
    %cst_74 = arith.constant 5.000000e-01 : f32
    %197 = vector.broadcast %cst_74 : f32 to vector<1x1800xf32>
    %198 = arith.mulf %196, %197 : vector<1x1800xf32>
    %c4_75 = arith.constant 4 : index
    %c0_76 = arith.constant 0 : index
    %199 = vector.load %arg25[%c4_75, %c0_76] : memref<8x1800xf32, #tpu.memory_space<vmem>>, vector<1x1800xf32>
    tpu.vector_store %arg25[%c4_75, %c0_76], %198 {strides = array<i32>} : memref<8x1800xf32, #tpu.memory_space<vmem>>, vector<1x1800xf32>,
    %c10 = arith.constant 10 : index
    %200 = memref.load %arg1[%c10] : memref<16xi32, #tpu.memory_space<smem>>
    %201 = arith.index_cast %200 : i32 to index
    %c0_77 = arith.constant 0 : index
    %c0_78 = arith.constant 0 : index
    %202 = vector.load %arg9[%201, %c0_77, %c0_78] : memref<20x1x1800xf32, #tpu.memory_space<vmem>>, vector<1x1x1800xf32>
    %203 = vector.shape_cast %202 : vector<1x1x1800xf32> to vector<1x1800xf32>
    %c11 = arith.constant 11 : index
    %204 = memref.load %arg1[%c11] : memref<16xi32, #tpu.memory_space<smem>>
    %205 = arith.index_cast %204 : i32 to index
    %c0_79 = arith.constant 0 : index
    %c0_80 = arith.constant 0 : index
    %206 = vector.load %arg9[%205, %c0_79, %c0_80] : memref<20x1x1800xf32, #tpu.memory_space<vmem>>, vector<1x1x1800xf32>
    %207 = vector.shape_cast %206 : vector<1x1x1800xf32> to vector<1x1800xf32>
    %208 = arith.addf %203, %207 : vector<1x1800xf32>
    %cst_81 = arith.constant 5.000000e-01 : f32
    %209 = vector.broadcast %cst_81 : f32 to vector<1x1800xf32>
    %210 = arith.mulf %208, %209 : vector<1x1800xf32>
    %c5_82 = arith.constant 5 : index
    %c0_83 = arith.constant 0 : index
    %211 = vector.load %arg25[%c5_82, %c0_83] : memref<8x1800xf32, #tpu.memory_space<vmem>>, vector<1x1800xf32>
    tpu.vector_store %arg25[%c5_82, %c0_83], %210 {strides = array<i32>} : memref<8x1800xf32, #tpu.memory_space<vmem>>, vector<1x1800xf32>,
    %c12 = arith.constant 12 : index
    %212 = memref.load %arg1[%c12] : memref<16xi32, #tpu.memory_space<smem>>
    %213 = arith.index_cast %212 : i32 to index
    %c0_84 = arith.constant 0 : index
    %c0_85 = arith.constant 0 : index
    %214 = vector.load %arg9[%213, %c0_84, %c0_85] : memref<20x1x1800xf32, #tpu.memory_space<vmem>>, vector<1x1x1800xf32>
    %215 = vector.shape_cast %214 : vector<1x1x1800xf32> to vector<1x1800xf32>
    %c13 = arith.constant 13 : index
    %216 = memref.load %arg1[%c13] : memref<16xi32, #tpu.memory_space<smem>>
    %217 = arith.index_cast %216 : i32 to index
    %c0_86 = arith.constant 0 : index
    %c0_87 = arith.constant 0 : index
    %218 = vector.load %arg9[%217, %c0_86, %c0_87] : memref<20x1x1800xf32, #tpu.memory_space<vmem>>, vector<1x1x1800xf32>
    %219 = vector.shape_cast %218 : vector<1x1x1800xf32> to vector<1x1800xf32>
    %220 = arith.addf %215, %219 : vector<1x1800xf32>
    %cst_88 = arith.constant 5.000000e-01 : f32
    %221 = vector.broadcast %cst_88 : f32 to vector<1x1800xf32>
    %222 = arith.mulf %220, %221 : vector<1x1800xf32>
    %c6_89 = arith.constant 6 : index
    %c0_90 = arith.constant 0 : index
    %223 = vector.load %arg25[%c6_89, %c0_90] : memref<8x1800xf32, #tpu.memory_space<vmem>>, vector<1x1800xf32>
    tpu.vector_store %arg25[%c6_89, %c0_90], %222 {strides = array<i32>} : memref<8x1800xf32, #tpu.memory_space<vmem>>, vector<1x1800xf32>,
    %c14 = arith.constant 14 : index
    %224 = memref.load %arg1[%c14] : memref<16xi32, #tpu.memory_space<smem>>
    %225 = arith.index_cast %224 : i32 to index
    %c0_91 = arith.constant 0 : index
    %c0_92 = arith.constant 0 : index
    %226 = vector.load %arg9[%225, %c0_91, %c0_92] : memref<20x1x1800xf32, #tpu.memory_space<vmem>>, vector<1x1x1800xf32>
    %227 = vector.shape_cast %226 : vector<1x1x1800xf32> to vector<1x1800xf32>
    %c15 = arith.constant 15 : index
    %228 = memref.load %arg1[%c15] : memref<16xi32, #tpu.memory_space<smem>>
    %229 = arith.index_cast %228 : i32 to index
    %c0_93 = arith.constant 0 : index
    %c0_94 = arith.constant 0 : index
    %230 = vector.load %arg9[%229, %c0_93, %c0_94] : memref<20x1x1800xf32, #tpu.memory_space<vmem>>, vector<1x1x1800xf32>
    %231 = vector.shape_cast %230 : vector<1x1x1800xf32> to vector<1x1800xf32>
    %232 = arith.addf %227, %231 : vector<1x1800xf32>
    %cst_95 = arith.constant 5.000000e-01 : f32
    %233 = vector.broadcast %cst_95 : f32 to vector<1x1800xf32>
    %234 = arith.mulf %232, %233 : vector<1x1800xf32>
    %c7_96 = arith.constant 7 : index
    %c0_97 = arith.constant 0 : index
    %235 = vector.load %arg25[%c7_96, %c0_97] : memref<8x1800xf32, #tpu.memory_space<vmem>>, vector<1x1800xf32>
    tpu.vector_store %arg25[%c7_96, %c0_97], %234 {strides = array<i32>} : memref<8x1800xf32, #tpu.memory_space<vmem>>, vector<1x1800xf32>,
    %c0_98 = arith.constant 0 : index
    %c0_99 = arith.constant 0 : index
    %c0_100 = arith.constant 0 : index
    %236 = vector.load %arg3[%c0_98, %c0_99, %c0_100] : memref<8x6x40xf32, #tpu.memory_space<vmem>>, vector<8x6x40xf32>
    %c0_101 = arith.constant 0 : index
    %c0_102 = arith.constant 0 : index
    %237 = vector.load %arg15[%c0_101, %c0_102] : memref<32x40xf32, #tpu.memory_space<vmem>>, vector<32x40xf32>
    %cst_103 = arith.constant dense<0.000000e+00> : vector<8x40xf32>
    %238 = tpu.matmul %139, %237, %cst_103 {dimension_numbers = #tpu.dot_dimension_numbers<[1], [0], [0], [1], [0, 0, 1, 1], [], []>} : vector<8x32xf32>, vector<32x40xf32>, vector<8x40xf32> -> vector<8x40xf32>
    %239 = vector.shape_cast %238 : vector<8x40xf32> to vector<8x1x40xf32>
    %240 = vector.broadcast %239 : vector<8x1x40xf32> to vector<8x6x40xf32>
    %241 = arith.mulf %240, %236 : vector<8x6x40xf32>
    %cst_104 = arith.constant dense<0.000000e+00> : vector<8x6xf32>
    %242 = vector.multi_reduction <add>, %241, %cst_104 [2] : vector<8x6x40xf32> to vector<8x6xf32>
    %cst_105 = arith.constant dense<0xFF800000> : vector<8xf32>
    %243 = vector.multi_reduction <maximumf>, %242, %cst_105 [1] : vector<8x6xf32> to vector<8xf32>
    %244 = vector.shape_cast %243 : vector<8xf32> to vector<8x1xf32>
    %245 = vector.broadcast %244 : vector<8x1xf32> to vector<8x6xf32>
    %246 = arith.subf %242, %245 : vector<8x6xf32>
    %247 = math.exp %246 : vector<8x6xf32>
    %cst_106 = arith.constant dense<0.000000e+00> : vector<8xf32>
    %248 = vector.multi_reduction <add>, %247, %cst_106 [1] : vector<8x6xf32> to vector<8xf32>
    %249 = vector.shape_cast %248 : vector<8xf32> to vector<8x1xf32>
    %250 = vector.broadcast %249 : vector<8x1xf32> to vector<8x6xf32>
    %251 = arith.divf %247, %250 : vector<8x6xf32>
    %252 = vector.shape_cast %251 : vector<8x6xf32> to vector<8x6x1xf32>
    %253 = vector.broadcast %252 : vector<8x6x1xf32> to vector<8x6x40xf32>
    %254 = arith.mulf %253, %236 : vector<8x6x40xf32>
    %cst_107 = arith.constant dense<0.000000e+00> : vector<8x40xf32>
    %255 = vector.multi_reduction <add>, %254, %cst_107 [1] : vector<8x6x40xf32> to vector<8x40xf32>
    %c0_108 = arith.constant 0 : index
    %c0_109 = arith.constant 0 : index
    %256 = vector.load %arg26[%c0_108, %c0_109] : memref<8x1072xf32, #tpu.memory_space<vmem>>, vector<8x40xf32>
    tpu.vector_store %arg26[%c0_108, %c0_109], %255 {strides = array<i32>} : memref<8x1072xf32, #tpu.memory_space<vmem>>, vector<8x40xf32>,
    %c0_110 = arith.constant 0 : index
    %c40 = arith.constant 40 : index
    %257 = vector.load %arg26[%c0_110, %c40] : memref<8x1072xf32, #tpu.memory_space<vmem>>, vector<8x32xf32>
    tpu.vector_store %arg26[%c0_110, %c40], %139 {strides = array<i32>} : memref<8x1072xf32, #tpu.memory_space<vmem>>, vector<8x32xf32>,
    %c0_111 = arith.constant 0 : index
    %c0_112 = arith.constant 0 : index
    %258 = vector.load %arg13[%c0_111, %c0_112] : memref<300x100xbf16, #tpu.memory_space<vmem>>, vector<300x100xbf16>
    %c0_113 = arith.constant 0 : index
    %c0_114 = arith.constant 0 : index
    %259 = vector.load %arg14[%c0_113, %c0_114] : memref<1x100xf32, #tpu.memory_space<vmem>>, vector<1x100xf32>
    %c0_115 = arith.constant 0 : index
    %c0_116 = arith.constant 0 : index
    %260 = vector.load %arg25[%c0_115, %c0_116] : memref<8x1800xf32, #tpu.memory_space<vmem>>, vector<8x300xf32>
    %261 = arith.truncf %260 : vector<8x300xf32> to vector<8x300xbf16>
    %cst_117 = arith.constant dense<0.000000e+00> : vector<8x100xf32>
    %262 = tpu.matmul %261, %258, %cst_117 {dimension_numbers = #tpu.dot_dimension_numbers<[1], [0], [0], [1], [0, 0, 1, 1], [], []>} : vector<8x300xbf16>, vector<300x100xbf16>, vector<8x100xf32> -> vector<8x100xf32>
    %263 = vector.broadcast %259 : vector<1x100xf32> to vector<8x100xf32>
    %264 = arith.addf %262, %263 : vector<8x100xf32>
    %c0_118 = arith.constant 0 : index
    %c72 = arith.constant 72 : index
    %265 = vector.load %arg26[%c0_118, %c72] : memref<8x1072xf32, #tpu.memory_space<vmem>>, vector<8x100xf32>
    tpu.vector_store %arg26[%c0_118, %c72], %264 {strides = array<i32>} : memref<8x1072xf32, #tpu.memory_space<vmem>>, vector<8x100xf32>,
    %c0_119 = arith.constant 0 : index
    %c300 = arith.constant 300 : index
    %266 = vector.load %arg25[%c0_119, %c300] : memref<8x1800xf32, #tpu.memory_space<vmem>>, vector<8x300xf32>
    %267 = arith.truncf %266 : vector<8x300xf32> to vector<8x300xbf16>
    %cst_120 = arith.constant dense<0.000000e+00> : vector<8x100xf32>
    %268 = tpu.matmul %267, %258, %cst_120 {dimension_numbers = #tpu.dot_dimension_numbers<[1], [0], [0], [1], [0, 0, 1, 1], [], []>} : vector<8x300xbf16>, vector<300x100xbf16>, vector<8x100xf32> -> vector<8x100xf32>
    %269 = vector.broadcast %259 : vector<1x100xf32> to vector<8x100xf32>
    %270 = arith.addf %268, %269 : vector<8x100xf32>
    %c0_121 = arith.constant 0 : index
    %c172 = arith.constant 172 : index
    %271 = vector.load %arg26[%c0_121, %c172] : memref<8x1072xf32, #tpu.memory_space<vmem>>, vector<8x100xf32>
    tpu.vector_store %arg26[%c0_121, %c172], %270 {strides = array<i32>} : memref<8x1072xf32, #tpu.memory_space<vmem>>, vector<8x100xf32>,
    %c0_122 = arith.constant 0 : index
    %c600 = arith.constant 600 : index
    %272 = vector.load %arg25[%c0_122, %c600] : memref<8x1800xf32, #tpu.memory_space<vmem>>, vector<8x300xf32>
    %273 = arith.truncf %272 : vector<8x300xf32> to vector<8x300xbf16>
    %cst_123 = arith.constant dense<0.000000e+00> : vector<8x100xf32>
    %274 = tpu.matmul %273, %258, %cst_123 {dimension_numbers = #tpu.dot_dimension_numbers<[1], [0], [0], [1], [0, 0, 1, 1], [], []>} : vector<8x300xbf16>, vector<300x100xbf16>, vector<8x100xf32> -> vector<8x100xf32>
    %275 = vector.broadcast %259 : vector<1x100xf32> to vector<8x100xf32>
    %276 = arith.addf %274, %275 : vector<8x100xf32>
    %c0_124 = arith.constant 0 : index
    %c272 = arith.constant 272 : index
    %277 = vector.load %arg26[%c0_124, %c272] : memref<8x1072xf32, #tpu.memory_space<vmem>>, vector<8x100xf32>
    tpu.vector_store %arg26[%c0_124, %c272], %276 {strides = array<i32>} : memref<8x1072xf32, #tpu.memory_space<vmem>>, vector<8x100xf32>,
    %c0_125 = arith.constant 0 : index
    %c900 = arith.constant 900 : index
    %278 = vector.load %arg25[%c0_125, %c900] : memref<8x1800xf32, #tpu.memory_space<vmem>>, vector<8x300xf32>
    %279 = arith.truncf %278 : vector<8x300xf32> to vector<8x300xbf16>
    %cst_126 = arith.constant dense<0.000000e+00> : vector<8x100xf32>
    %280 = tpu.matmul %279, %258, %cst_126 {dimension_numbers = #tpu.dot_dimension_numbers<[1], [0], [0], [1], [0, 0, 1, 1], [], []>} : vector<8x300xbf16>, vector<300x100xbf16>, vector<8x100xf32> -> vector<8x100xf32>
    %281 = vector.broadcast %259 : vector<1x100xf32> to vector<8x100xf32>
    %282 = arith.addf %280, %281 : vector<8x100xf32>
    %c0_127 = arith.constant 0 : index
    %c372 = arith.constant 372 : index
    %283 = vector.load %arg26[%c0_127, %c372] : memref<8x1072xf32, #tpu.memory_space<vmem>>, vector<8x100xf32>
    tpu.vector_store %arg26[%c0_127, %c372], %282 {strides = array<i32>} : memref<8x1072xf32, #tpu.memory_space<vmem>>, vector<8x100xf32>,
    %c0_128 = arith.constant 0 : index
    %c1200 = arith.constant 1200 : index
    %284 = vector.load %arg25[%c0_128, %c1200] : memref<8x1800xf32, #tpu.memory_space<vmem>>, vector<8x300xf32>
    %285 = arith.truncf %284 : vector<8x300xf32> to vector<8x300xbf16>
    %cst_129 = arith.constant dense<0.000000e+00> : vector<8x100xf32>
    %286 = tpu.matmul %285, %258, %cst_129 {dimension_numbers = #tpu.dot_dimension_numbers<[1], [0], [0], [1], [0, 0, 1, 1], [], []>} : vector<8x300xbf16>, vector<300x100xbf16>, vector<8x100xf32> -> vector<8x100xf32>
    %287 = vector.broadcast %259 : vector<1x100xf32> to vector<8x100xf32>
    %288 = arith.addf %286, %287 : vector<8x100xf32>
    %c0_130 = arith.constant 0 : index
    %c472 = arith.constant 472 : index
    %289 = vector.load %arg26[%c0_130, %c472] : memref<8x1072xf32, #tpu.memory_space<vmem>>, vector<8x100xf32>
    tpu.vector_store %arg26[%c0_130, %c472], %288 {strides = array<i32>} : memref<8x1072xf32, #tpu.memory_space<vmem>>, vector<8x100xf32>,
    %c0_131 = arith.constant 0 : index
    %c1500 = arith.constant 1500 : index
    %290 = vector.load %arg25[%c0_131, %c1500] : memref<8x1800xf32, #tpu.memory_space<vmem>>, vector<8x300xf32>
    %291 = arith.truncf %290 : vector<8x300xf32> to vector<8x300xbf16>
    %cst_132 = arith.constant dense<0.000000e+00> : vector<8x100xf32>
    %292 = tpu.matmul %291, %258, %cst_132 {dimension_numbers = #tpu.dot_dimension_numbers<[1], [0], [0], [1], [0, 0, 1, 1], [], []>} : vector<8x300xbf16>, vector<300x100xbf16>, vector<8x100xf32> -> vector<8x100xf32>
    %293 = vector.broadcast %259 : vector<1x100xf32> to vector<8x100xf32>
    %294 = arith.addf %292, %293 : vector<8x100xf32>
    %c0_133 = arith.constant 0 : index
    %c572 = arith.constant 572 : index
    %295 = vector.load %arg26[%c0_133, %c572] : memref<8x1072xf32, #tpu.memory_space<vmem>>, vector<8x100xf32>
    tpu.vector_store %arg26[%c0_133, %c572], %294 {strides = array<i32>} : memref<8x1072xf32, #tpu.memory_space<vmem>>, vector<8x100xf32>,
    %c0_134 = arith.constant 0 : index
    %c0_135 = arith.constant 0 : index
    %296 = vector.load %arg7[%c0_134, %c0_135] : memref<8x150xf32, #tpu.memory_space<vmem>>, vector<8x150xf32>
    %c0_136 = arith.constant 0 : index
    %c672 = arith.constant 672 : index
    %297 = vector.load %arg26[%c0_136, %c672] : memref<8x1072xf32, #tpu.memory_space<vmem>>, vector<8x150xf32>
    tpu.vector_store %arg26[%c0_136, %c672], %296 {strides = array<i32>} : memref<8x1072xf32, #tpu.memory_space<vmem>>, vector<8x150xf32>,
    %c0_137 = arith.constant 0 : index
    %c0_138 = arith.constant 0 : index
    %298 = vector.load %arg8[%c0_137, %c0_138] : memref<8x150xf32, #tpu.memory_space<vmem>>, vector<8x150xf32>
    %c0_139 = arith.constant 0 : index
    %c822 = arith.constant 822 : index
    %299 = vector.load %arg26[%c0_139, %c822] : memref<8x1072xf32, #tpu.memory_space<vmem>>, vector<8x150xf32>
    tpu.vector_store %arg26[%c0_139, %c822], %298 {strides = array<i32>} : memref<8x1072xf32, #tpu.memory_space<vmem>>, vector<8x150xf32>,
    %c0_140 = arith.constant 0 : index
    %c0_141 = arith.constant 0 : index
    %300 = vector.load %arg4[%c0_140, %c0_141] : memref<8x100xf32, #tpu.memory_space<vmem>>, vector<8x100xf32>
    %c0_142 = arith.constant 0 : index
    %c972 = arith.constant 972 : index
    %301 = vector.load %arg26[%c0_142, %c972] : memref<8x1072xf32, #tpu.memory_space<vmem>>, vector<8x100xf32>
    tpu.vector_store %arg26[%c0_142, %c972], %300 {strides = array<i32>} : memref<8x1072xf32, #tpu.memory_space<vmem>>, vector<8x100xf32>,
    %c0_143 = arith.constant 0 : index
    %c0_144 = arith.constant 0 : index
    %302 = vector.load %arg26[%c0_143, %c0_144] : memref<8x1072xf32, #tpu.memory_space<vmem>>, vector<8x1072xf32>
    %303 = arith.truncf %302 : vector<8x1072xf32> to vector<8x1072xbf16>
    %c0_145 = arith.constant 0 : index
    %c0_146 = arith.constant 0 : index
    %304 = vector.load %arg16[%c0_145, %c0_146] : memref<1072x32xbf16, #tpu.memory_space<vmem>>, vector<1072x32xbf16>
    %cst_147 = arith.constant dense<0.000000e+00> : vector<8x32xf32>
    %305 = tpu.matmul %303, %304, %cst_147 {dimension_numbers = #tpu.dot_dimension_numbers<[1], [0], [0], [1], [0, 0, 1, 1], [], []>} : vector<8x1072xbf16>, vector<1072x32xbf16>, vector<8x32xf32> -> vector<8x32xf32>
    %c0_148 = arith.constant 0 : index
    %c0_149 = arith.constant 0 : index
    %306 = vector.load %arg17[%c0_148, %c0_149] : memref<1x32xf32, #tpu.memory_space<vmem>>, vector<1x32xf32>
    %307 = vector.broadcast %306 : vector<1x32xf32> to vector<8x32xf32>
    %308 = arith.addf %305, %307 : vector<8x32xf32>
    %c0_150 = arith.constant 0 : index
    %c0_151 = arith.constant 0 : index
    %309 = vector.load %arg5[%c0_150, %c0_151] : memref<8x1xf32, #tpu.memory_space<vmem>>, vector<8x1xf32>
    %c0_152 = arith.constant 0 : index
    %c0_153 = arith.constant 0 : index
    %310 = vector.load %arg18[%c0_152, %c0_153] : memref<1x32xf32, #tpu.memory_space<vmem>>, vector<1x32xf32>
    %311 = vector.broadcast %309 : vector<8x1xf32> to vector<8x32xf32>
    %312 = vector.broadcast %310 : vector<1x32xf32> to vector<8x32xf32>
    %313 = arith.mulf %311, %312 : vector<8x32xf32>
    %314 = arith.addf %308, %313 : vector<8x32xf32>
    %c0_154 = arith.constant 0 : index
    %c0_155 = arith.constant 0 : index
    %315 = vector.load %arg6[%c0_154, %c0_155] : memref<8x1xf32, #tpu.memory_space<vmem>>, vector<8x1xf32>
    %c0_156 = arith.constant 0 : index
    %c0_157 = arith.constant 0 : index
    %316 = vector.load %arg19[%c0_156, %c0_157] : memref<1x32xf32, #tpu.memory_space<vmem>>, vector<1x32xf32>
    %317 = vector.broadcast %315 : vector<8x1xf32> to vector<8x32xf32>
    %318 = vector.broadcast %316 : vector<1x32xf32> to vector<8x32xf32>
    %319 = arith.mulf %317, %318 : vector<8x32xf32>
    %320 = arith.addf %314, %319 : vector<8x32xf32>
    %321 = math.tanh %320 : vector<8x32xf32>
    %c0_158 = arith.constant 0 : index
    %c0_159 = arith.constant 0 : index
    %322 = vector.load %arg20[%c0_158, %c0_159] : memref<32x128xf32, #tpu.memory_space<vmem>>, vector<32x128xf32>
    %cst_160 = arith.constant dense<0.000000e+00> : vector<8x128xf32>
    %323 = tpu.matmul %321, %322, %cst_160 {dimension_numbers = #tpu.dot_dimension_numbers<[1], [0], [0], [1], [0, 0, 1, 1], [], []>} : vector<8x32xf32>, vector<32x128xf32>, vector<8x128xf32> -> vector<8x128xf32>
    %c0_161 = arith.constant 0 : index
    %c0_162 = arith.constant 0 : index
    %324 = vector.load %arg21[%c0_161, %c0_162] : memref<32x128xf32, #tpu.memory_space<vmem>>, vector<32x128xf32>
    %c0_163 = arith.constant 0 : index
    %c0_164 = arith.constant 0 : index
    %325 = vector.load %arg22[%c0_163, %c0_164] : memref<1x128xf32, #tpu.memory_space<vmem>>, vector<1x128xf32>
    %cst_165 = arith.constant 0.000000e+00 : f32
    %326 = vector.broadcast %cst_165 : f32 to vector<2x32xf32>
    %cst_166 = arith.constant 0.000000e+00 : f32
    %327 = vector.broadcast %cst_166 : f32 to vector<2x32xf32>
    %328 = vector.extract_strided_slice %323 {offsets = [0, 0], sizes = [1, 128], strides = [1, 1]} : vector<8x128xf32> to vector<1x128xf32>
    %329 = vector.extract_strided_slice %323 {offsets = [4, 0], sizes = [1, 128], strides = [1, 1]} : vector<8x128xf32> to vector<1x128xf32>
    %330 = tpu.concatenate %328, %329 in 0 : vector<1x128xf32>, vector<1x128xf32> -> vector<2x128xf32>
    %cst_167 = arith.constant dense<0.000000e+00> : vector<2x128xf32>
    %331 = tpu.matmul %326, %324, %cst_167 {dimension_numbers = #tpu.dot_dimension_numbers<[1], [0], [0], [1], [0, 0, 1, 1], [], []>} : vector<2x32xf32>, vector<32x128xf32>, vector<2x128xf32> -> vector<2x128xf32>
    %332 = arith.addf %330, %331 : vector<2x128xf32>
    %333 = vector.broadcast %325 : vector<1x128xf32> to vector<2x128xf32>
    %334 = arith.addf %332, %333 : vector<2x128xf32>
    %335 = tpu.iota {dimensions = array<i32: 1>} : vector<2x128xi32>
    %c64_i32_168 = arith.constant 64 : i32
    %336 = vector.broadcast %c64_i32_168 : i32 to vector<2x128xi32>
    %337 = arith.cmpi sge, %335, %336 : vector<2x128xi32>
    %c96_i32_169 = arith.constant 96 : i32
    %338 = vector.broadcast %c96_i32_169 : i32 to vector<2x128xi32>
    %339 = arith.cmpi slt, %335, %338 : vector<2x128xi32>
    %340 = arith.andi %337, %339 : vector<2x128xi1>
    %341 = math.tanh %334 : vector<2x128xf32>
    %342 = arith.negf %334 : vector<2x128xf32>
    %343 = math.exp %342 : vector<2x128xf32>
    %cst_170 = arith.constant 1.000000e+00 : f32
    %344 = vector.broadcast %cst_170 : f32 to vector<2x128xf32>
    %345 = arith.addf %344, %343 : vector<2x128xf32>
    %346 = arith.divf %344, %345 : vector<2x128xf32>
    %347 = arith.select %340, %341, %346 : vector<2x128xi1>, vector<2x128xf32>
    %348 = vector.extract_strided_slice %347 {offsets = [0, 0], sizes = [2, 32], strides = [1, 1]} : vector<2x128xf32> to vector<2x32xf32>
    %349 = vector.extract_strided_slice %347 {offsets = [0, 32], sizes = [2, 32], strides = [1, 1]} : vector<2x128xf32> to vector<2x32xf32>
    %350 = vector.extract_strided_slice %347 {offsets = [0, 64], sizes = [2, 32], strides = [1, 1]} : vector<2x128xf32> to vector<2x32xf32>
    %351 = vector.extract_strided_slice %347 {offsets = [0, 96], sizes = [2, 32], strides = [1, 1]} : vector<2x128xf32> to vector<2x32xf32>
    %352 = arith.mulf %349, %327 : vector<2x32xf32>
    %353 = arith.mulf %348, %350 : vector<2x32xf32>
    %354 = arith.addf %352, %353 : vector<2x32xf32>
    %355 = math.tanh %354 : vector<2x32xf32>
    %356 = arith.mulf %351, %355 : vector<2x32xf32>
    %357 = vector.extract_strided_slice %356 {offsets = [0, 0], sizes = [1, 32], strides = [1, 1]} : vector<2x32xf32> to vector<1x32xf32>
    %c0_171 = arith.constant 0 : index
    %c0_172 = arith.constant 0 : index
    %358 = vector.load %arg23[%c0_171, %c0_172] : memref<8x32xf32, #tpu.memory_space<vmem>>, vector<1x32xf32>
    tpu.vector_store %arg23[%c0_171, %c0_172], %357 {strides = array<i32>} : memref<8x32xf32, #tpu.memory_space<vmem>>, vector<1x32xf32>,
    %359 = vector.extract_strided_slice %356 {offsets = [1, 0], sizes = [1, 32], strides = [1, 1]} : vector<2x32xf32> to vector<1x32xf32>
    %c4_173 = arith.constant 4 : index
    %c0_174 = arith.constant 0 : index
    %360 = vector.load %arg23[%c4_173, %c0_174] : memref<8x32xf32, #tpu.memory_space<vmem>>, vector<1x32xf32>
    tpu.vector_store %arg23[%c4_173, %c0_174], %359 {strides = array<i32>} : memref<8x32xf32, #tpu.memory_space<vmem>>, vector<1x32xf32>,
    %361 = vector.extract_strided_slice %323 {offsets = [1, 0], sizes = [1, 128], strides = [1, 1]} : vector<8x128xf32> to vector<1x128xf32>
    %362 = vector.extract_strided_slice %323 {offsets = [5, 0], sizes = [1, 128], strides = [1, 1]} : vector<8x128xf32> to vector<1x128xf32>
    %363 = tpu.concatenate %361, %362 in 0 : vector<1x128xf32>, vector<1x128xf32> -> vector<2x128xf32>
    %cst_175 = arith.constant dense<0.000000e+00> : vector<2x128xf32>
    %364 = tpu.matmul %356, %324, %cst_175 {dimension_numbers = #tpu.dot_dimension_numbers<[1], [0], [0], [1], [0, 0, 1, 1], [], []>} : vector<2x32xf32>, vector<32x128xf32>, vector<2x128xf32> -> vector<2x128xf32>
    %365 = arith.addf %363, %364 : vector<2x128xf32>
    %366 = vector.broadcast %325 : vector<1x128xf32> to vector<2x128xf32>
    %367 = arith.addf %365, %366 : vector<2x128xf32>
    %368 = tpu.iota {dimensions = array<i32: 1>} : vector<2x128xi32>
    %c64_i32_176 = arith.constant 64 : i32
    %369 = vector.broadcast %c64_i32_176 : i32 to vector<2x128xi32>
    %370 = arith.cmpi sge, %368, %369 : vector<2x128xi32>
    %c96_i32_177 = arith.constant 96 : i32
    %371 = vector.broadcast %c96_i32_177 : i32 to vector<2x128xi32>
    %372 = arith.cmpi slt, %368, %371 : vector<2x128xi32>
    %373 = arith.andi %370, %372 : vector<2x128xi1>
    %374 = math.tanh %367 : vector<2x128xf32>
    %375 = arith.negf %367 : vector<2x128xf32>
    %376 = math.exp %375 : vector<2x128xf32>
    %cst_178 = arith.constant 1.000000e+00 : f32
    %377 = vector.broadcast %cst_178 : f32 to vector<2x128xf32>
    %378 = arith.addf %377, %376 : vector<2x128xf32>
    %379 = arith.divf %377, %378 : vector<2x128xf32>
    %380 = arith.select %373, %374, %379 : vector<2x128xi1>, vector<2x128xf32>
    %381 = vector.extract_strided_slice %380 {offsets = [0, 0], sizes = [2, 32], strides = [1, 1]} : vector<2x128xf32> to vector<2x32xf32>
    %382 = vector.extract_strided_slice %380 {offsets = [0, 32], sizes = [2, 32], strides = [1, 1]} : vector<2x128xf32> to vector<2x32xf32>
    %383 = vector.extract_strided_slice %380 {offsets = [0, 64], sizes = [2, 32], strides = [1, 1]} : vector<2x128xf32> to vector<2x32xf32>
    %384 = vector.extract_strided_slice %380 {offsets = [0, 96], sizes = [2, 32], strides = [1, 1]} : vector<2x128xf32> to vector<2x32xf32>
    %385 = arith.mulf %382, %354 : vector<2x32xf32>
    %386 = arith.mulf %381, %383 : vector<2x32xf32>
    %387 = arith.addf %385, %386 : vector<2x32xf32>
    %388 = math.tanh %387 : vector<2x32xf32>
    %389 = arith.mulf %384, %388 : vector<2x32xf32>
    %390 = vector.extract_strided_slice %389 {offsets = [0, 0], sizes = [1, 32], strides = [1, 1]} : vector<2x32xf32> to vector<1x32xf32>
    %c1_179 = arith.constant 1 : index
    %c0_180 = arith.constant 0 : index
    %391 = vector.load %arg23[%c1_179, %c0_180] : memref<8x32xf32, #tpu.memory_space<vmem>>, vector<1x32xf32>
    tpu.vector_store %arg23[%c1_179, %c0_180], %390 {strides = array<i32>} : memref<8x32xf32, #tpu.memory_space<vmem>>, vector<1x32xf32>,
    %392 = vector.extract_strided_slice %389 {offsets = [1, 0], sizes = [1, 32], strides = [1, 1]} : vector<2x32xf32> to vector<1x32xf32>
    %c5_181 = arith.constant 5 : index
    %c0_182 = arith.constant 0 : index
    %393 = vector.load %arg23[%c5_181, %c0_182] : memref<8x32xf32, #tpu.memory_space<vmem>>, vector<1x32xf32>
    tpu.vector_store %arg23[%c5_181, %c0_182], %392 {strides = array<i32>} : memref<8x32xf32, #tpu.memory_space<vmem>>, vector<1x32xf32>,
    %394 = vector.extract_strided_slice %323 {offsets = [2, 0], sizes = [1, 128], strides = [1, 1]} : vector<8x128xf32> to vector<1x128xf32>
    %395 = vector.extract_strided_slice %323 {offsets = [6, 0], sizes = [1, 128], strides = [1, 1]} : vector<8x128xf32> to vector<1x128xf32>
    %396 = tpu.concatenate %394, %395 in 0 : vector<1x128xf32>, vector<1x128xf32> -> vector<2x128xf32>
    %cst_183 = arith.constant dense<0.000000e+00> : vector<2x128xf32>
    %397 = tpu.matmul %389, %324, %cst_183 {dimension_numbers = #tpu.dot_dimension_numbers<[1], [0], [0], [1], [0, 0, 1, 1], [], []>} : vector<2x32xf32>, vector<32x128xf32>, vector<2x128xf32> -> vector<2x128xf32>
    %398 = arith.addf %396, %397 : vector<2x128xf32>
    %399 = vector.broadcast %325 : vector<1x128xf32> to vector<2x128xf32>
    %400 = arith.addf %398, %399 : vector<2x128xf32>
    %401 = tpu.iota {dimensions = array<i32: 1>} : vector<2x128xi32>
    %c64_i32_184 = arith.constant 64 : i32
    %402 = vector.broadcast %c64_i32_184 : i32 to vector<2x128xi32>
    %403 = arith.cmpi sge, %401, %402 : vector<2x128xi32>
    %c96_i32_185 = arith.constant 96 : i32
    %404 = vector.broadcast %c96_i32_185 : i32 to vector<2x128xi32>
    %405 = arith.cmpi slt, %401, %404 : vector<2x128xi32>
    %406 = arith.andi %403, %405 : vector<2x128xi1>
    %407 = math.tanh %400 : vector<2x128xf32>
    %408 = arith.negf %400 : vector<2x128xf32>
    %409 = math.exp %408 : vector<2x128xf32>
    %cst_186 = arith.constant 1.000000e+00 : f32
    %410 = vector.broadcast %cst_186 : f32 to vector<2x128xf32>
    %411 = arith.addf %410, %409 : vector<2x128xf32>
    %412 = arith.divf %410, %411 : vector<2x128xf32>
    %413 = arith.select %406, %407, %412 : vector<2x128xi1>, vector<2x128xf32>
    %414 = vector.extract_strided_slice %413 {offsets = [0, 0], sizes = [2, 32], strides = [1, 1]} : vector<2x128xf32> to vector<2x32xf32>
    %415 = vector.extract_strided_slice %413 {offsets = [0, 32], sizes = [2, 32], strides = [1, 1]} : vector<2x128xf32> to vector<2x32xf32>
    %416 = vector.extract_strided_slice %413 {offsets = [0, 64], sizes = [2, 32], strides = [1, 1]} : vector<2x128xf32> to vector<2x32xf32>
    %417 = vector.extract_strided_slice %413 {offsets = [0, 96], sizes = [2, 32], strides = [1, 1]} : vector<2x128xf32> to vector<2x32xf32>
    %418 = arith.mulf %415, %387 : vector<2x32xf32>
    %419 = arith.mulf %414, %416 : vector<2x32xf32>
    %420 = arith.addf %418, %419 : vector<2x32xf32>
    %421 = math.tanh %420 : vector<2x32xf32>
    %422 = arith.mulf %417, %421 : vector<2x32xf32>
    %423 = vector.extract_strided_slice %422 {offsets = [0, 0], sizes = [1, 32], strides = [1, 1]} : vector<2x32xf32> to vector<1x32xf32>
    %c2_187 = arith.constant 2 : index
    %c0_188 = arith.constant 0 : index
    %424 = vector.load %arg23[%c2_187, %c0_188] : memref<8x32xf32, #tpu.memory_space<vmem>>, vector<1x32xf32>
    tpu.vector_store %arg23[%c2_187, %c0_188], %423 {strides = array<i32>} : memref<8x32xf32, #tpu.memory_space<vmem>>, vector<1x32xf32>,
    %425 = vector.extract_strided_slice %422 {offsets = [1, 0], sizes = [1, 32], strides = [1, 1]} : vector<2x32xf32> to vector<1x32xf32>
    %c6_189 = arith.constant 6 : index
    %c0_190 = arith.constant 0 : index
    %426 = vector.load %arg23[%c6_189, %c0_190] : memref<8x32xf32, #tpu.memory_space<vmem>>, vector<1x32xf32>
    tpu.vector_store %arg23[%c6_189, %c0_190], %425 {strides = array<i32>} : memref<8x32xf32, #tpu.memory_space<vmem>>, vector<1x32xf32>,
    %427 = vector.extract_strided_slice %323 {offsets = [3, 0], sizes = [1, 128], strides = [1, 1]} : vector<8x128xf32> to vector<1x128xf32>
    %428 = vector.extract_strided_slice %323 {offsets = [7, 0], sizes = [1, 128], strides = [1, 1]} : vector<8x128xf32> to vector<1x128xf32>
    %429 = tpu.concatenate %427, %428 in 0 : vector<1x128xf32>, vector<1x128xf32> -> vector<2x128xf32>
    %cst_191 = arith.constant dense<0.000000e+00> : vector<2x128xf32>
    %430 = tpu.matmul %422, %324, %cst_191 {dimension_numbers = #tpu.dot_dimension_numbers<[1], [0], [0], [1], [0, 0, 1, 1], [], []>} : vector<2x32xf32>, vector<32x128xf32>, vector<2x128xf32> -> vector<2x128xf32>
    %431 = arith.addf %429, %430 : vector<2x128xf32>
    %432 = vector.broadcast %325 : vector<1x128xf32> to vector<2x128xf32>
    %433 = arith.addf %431, %432 : vector<2x128xf32>
    %434 = tpu.iota {dimensions = array<i32: 1>} : vector<2x128xi32>
    %c64_i32_192 = arith.constant 64 : i32
    %435 = vector.broadcast %c64_i32_192 : i32 to vector<2x128xi32>
    %436 = arith.cmpi sge, %434, %435 : vector<2x128xi32>
    %c96_i32_193 = arith.constant 96 : i32
    %437 = vector.broadcast %c96_i32_193 : i32 to vector<2x128xi32>
    %438 = arith.cmpi slt, %434, %437 : vector<2x128xi32>
    %439 = arith.andi %436, %438 : vector<2x128xi1>
    %440 = math.tanh %433 : vector<2x128xf32>
    %441 = arith.negf %433 : vector<2x128xf32>
    %442 = math.exp %441 : vector<2x128xf32>
    %cst_194 = arith.constant 1.000000e+00 : f32
    %443 = vector.broadcast %cst_194 : f32 to vector<2x128xf32>
    %444 = arith.addf %443, %442 : vector<2x128xf32>
    %445 = arith.divf %443, %444 : vector<2x128xf32>
    %446 = arith.select %439, %440, %445 : vector<2x128xi1>, vector<2x128xf32>
    %447 = vector.extract_strided_slice %446 {offsets = [0, 0], sizes = [2, 32], strides = [1, 1]} : vector<2x128xf32> to vector<2x32xf32>
    %448 = vector.extract_strided_slice %446 {offsets = [0, 32], sizes = [2, 32], strides = [1, 1]} : vector<2x128xf32> to vector<2x32xf32>
    %449 = vector.extract_strided_slice %446 {offsets = [0, 64], sizes = [2, 32], strides = [1, 1]} : vector<2x128xf32> to vector<2x32xf32>
    %450 = vector.extract_strided_slice %446 {offsets = [0, 96], sizes = [2, 32], strides = [1, 1]} : vector<2x128xf32> to vector<2x32xf32>
    %451 = arith.mulf %448, %420 : vector<2x32xf32>
    %452 = arith.mulf %447, %449 : vector<2x32xf32>
    %453 = arith.addf %451, %452 : vector<2x32xf32>
    %454 = math.tanh %453 : vector<2x32xf32>
    %455 = arith.mulf %450, %454 : vector<2x32xf32>
    %456 = vector.extract_strided_slice %455 {offsets = [0, 0], sizes = [1, 32], strides = [1, 1]} : vector<2x32xf32> to vector<1x32xf32>
    %c3_195 = arith.constant 3 : index
    %c0_196 = arith.constant 0 : index
    %457 = vector.load %arg23[%c3_195, %c0_196] : memref<8x32xf32, #tpu.memory_space<vmem>>, vector<1x32xf32>
    tpu.vector_store %arg23[%c3_195, %c0_196], %456 {strides = array<i32>} : memref<8x32xf32, #tpu.memory_space<vmem>>, vector<1x32xf32>,
    %458 = vector.extract_strided_slice %455 {offsets = [1, 0], sizes = [1, 32], strides = [1, 1]} : vector<2x32xf32> to vector<1x32xf32>
    %c7_197 = arith.constant 7 : index
    %c0_198 = arith.constant 0 : index
    %459 = vector.load %arg23[%c7_197, %c0_198] : memref<8x32xf32, #tpu.memory_space<vmem>>, vector<1x32xf32>
    tpu.vector_store %arg23[%c7_197, %c0_198], %458 {strides = array<i32>} : memref<8x32xf32, #tpu.memory_space<vmem>>, vector<1x32xf32>,
    return
  }
  func.func @transform_0(%arg0: i32, %arg1: memref<16xi32, #tpu.memory_space<smem>>) -> (i32, i32) {
    %c0_i32 = arith.constant 0 : i32
    %c0_i32_0 = arith.constant 0 : i32
    %c0_i32_1 = arith.constant 0 : i32
    return %c0_i32, %c0_i32_0 : i32, i32
  }
  func.func @transform_1(%arg0: i32, %arg1: memref<16xi32, #tpu.memory_space<smem>>) -> (i32, i32, i32) {
    %c0_i32 = arith.constant 0 : i32
    %c0_i32_0 = arith.constant 0 : i32
    %c0_i32_1 = arith.constant 0 : i32
    %c0_i32_2 = arith.constant 0 : i32
    return %c0_i32, %c0_i32_0, %c0_i32_1 : i32, i32, i32
  }
  func.func @transform_2(%arg0: i32, %arg1: memref<16xi32, #tpu.memory_space<smem>>) -> (i32, i32) {
    %c0_i32 = arith.constant 0 : i32
    %c0_i32_0 = arith.constant 0 : i32
    %c0_i32_1 = arith.constant 0 : i32
    return %c0_i32, %c0_i32_0 : i32, i32
  }
  func.func @transform_3(%arg0: i32, %arg1: memref<16xi32, #tpu.memory_space<smem>>) -> (i32, i32) {
    %c0_i32 = arith.constant 0 : i32
    %c0_i32_0 = arith.constant 0 : i32
    %c0_i32_1 = arith.constant 0 : i32
    return %c0_i32, %c0_i32_0 : i32, i32
  }
  func.func @transform_4(%arg0: i32, %arg1: memref<16xi32, #tpu.memory_space<smem>>) -> (i32, i32) {
    %c0_i32 = arith.constant 0 : i32
    %c0_i32_0 = arith.constant 0 : i32
    %c0_i32_1 = arith.constant 0 : i32
    return %c0_i32, %c0_i32_0 : i32, i32
  }
  func.func @transform_5(%arg0: i32, %arg1: memref<16xi32, #tpu.memory_space<smem>>) -> (i32, i32) {
    %c0_i32 = arith.constant 0 : i32
    %c0_i32_0 = arith.constant 0 : i32
    %c0_i32_1 = arith.constant 0 : i32
    return %c0_i32, %c0_i32_0 : i32, i32
  }
  func.func @transform_6(%arg0: i32, %arg1: memref<16xi32, #tpu.memory_space<smem>>) -> (i32, i32) {
    %c0_i32 = arith.constant 0 : i32
    %c0_i32_0 = arith.constant 0 : i32
    %c0_i32_1 = arith.constant 0 : i32
    return %c0_i32, %c0_i32_0 : i32, i32
  }
  func.func @transform_7(%arg0: i32, %arg1: memref<16xi32, #tpu.memory_space<smem>>) -> (i32, i32, i32) {
    %c0_i32 = arith.constant 0 : i32
    %c0_i32_0 = arith.constant 0 : i32
    %c0_i32_1 = arith.constant 0 : i32
    %c0_i32_2 = arith.constant 0 : i32
    return %c0_i32, %c0_i32_0, %c0_i32_1 : i32, i32, i32
  }
  func.func @transform_8(%arg0: i32, %arg1: memref<16xi32, #tpu.memory_space<smem>>) -> (i32, i32) {
    %c0_i32 = arith.constant 0 : i32
    %c0_i32_0 = arith.constant 0 : i32
    %c0_i32_1 = arith.constant 0 : i32
    return %c0_i32, %c0_i32_0 : i32, i32
  }
  func.func @transform_9(%arg0: i32, %arg1: memref<16xi32, #tpu.memory_space<smem>>) -> (i32, i32) {
    %c0_i32 = arith.constant 0 : i32
    %c0_i32_0 = arith.constant 0 : i32
    %c0_i32_1 = arith.constant 0 : i32
    return %c0_i32, %c0_i32_0 : i32, i32
  }
  func.func @transform_10(%arg0: i32, %arg1: memref<16xi32, #tpu.memory_space<smem>>) -> (i32, i32) {
    %c0_i32 = arith.constant 0 : i32
    %c0_i32_0 = arith.constant 0 : i32
    %c0_i32_1 = arith.constant 0 : i32
    return %c0_i32, %c0_i32_0 : i32, i32
  }
  func.func @transform_11(%arg0: i32, %arg1: memref<16xi32, #tpu.memory_space<smem>>) -> (i32, i32) {
    %c0_i32 = arith.constant 0 : i32
    %c0_i32_0 = arith.constant 0 : i32
    %c0_i32_1 = arith.constant 0 : i32
    return %c0_i32, %c0_i32_0 : i32, i32
  }
  func.func @transform_12(%arg0: i32, %arg1: memref<16xi32, #tpu.memory_space<smem>>) -> (i32, i32) {
    %c0_i32 = arith.constant 0 : i32
    %c0_i32_0 = arith.constant 0 : i32
    %c0_i32_1 = arith.constant 0 : i32
    return %c0_i32, %c0_i32_0 : i32, i32
  }
  func.func @transform_13(%arg0: i32, %arg1: memref<16xi32, #tpu.memory_space<smem>>) -> (i32, i32) {
    %c0_i32 = arith.constant 0 : i32
    %c0_i32_0 = arith.constant 0 : i32
    %c0_i32_1 = arith.constant 0 : i32
    return %c0_i32, %c0_i32_0 : i32, i32
  }
  func.func @transform_14(%arg0: i32, %arg1: memref<16xi32, #tpu.memory_space<smem>>) -> (i32, i32) {
    %c0_i32 = arith.constant 0 : i32
    %c0_i32_0 = arith.constant 0 : i32
    %c0_i32_1 = arith.constant 0 : i32
    return %c0_i32, %c0_i32_0 : i32, i32
  }
  func.func @transform_15(%arg0: i32, %arg1: memref<16xi32, #tpu.memory_space<smem>>) -> (i32, i32) {
    %c0_i32 = arith.constant 0 : i32
    %c0_i32_0 = arith.constant 0 : i32
    %c0_i32_1 = arith.constant 0 : i32
    return %c0_i32, %c0_i32_0 : i32, i32
  }
  func.func @transform_16(%arg0: i32, %arg1: memref<16xi32, #tpu.memory_space<smem>>) -> (i32, i32) {
    %c0_i32 = arith.constant 0 : i32
    %c0_i32_0 = arith.constant 0 : i32
    %c0_i32_1 = arith.constant 0 : i32
    return %c0_i32, %c0_i32_0 : i32, i32
  }
  func.func @transform_17(%arg0: i32, %arg1: memref<16xi32, #tpu.memory_space<smem>>) -> (i32, i32) {
    %c0_i32 = arith.constant 0 : i32
    %c0_i32_0 = arith.constant 0 : i32
    %c0_i32_1 = arith.constant 0 : i32
    return %c0_i32, %c0_i32_0 : i32, i32
  }
  func.func @transform_18(%arg0: i32, %arg1: memref<16xi32, #tpu.memory_space<smem>>) -> (i32, i32) {
    %c0_i32 = arith.constant 0 : i32
    %c0_i32_0 = arith.constant 0 : i32
    %c0_i32_1 = arith.constant 0 : i32
    return %c0_i32, %c0_i32_0 : i32, i32
  }
  func.func @transform_19(%arg0: i32, %arg1: memref<16xi32, #tpu.memory_space<smem>>) -> (i32, i32) {
    %c0_i32 = arith.constant 0 : i32
    %c0_i32_0 = arith.constant 0 : i32
    %c0_i32_1 = arith.constant 0 : i32
    return %c0_i32, %c0_i32_0 : i32, i32
  }
  func.func @transform_20(%arg0: i32, %arg1: memref<16xi32, #tpu.memory_space<smem>>) -> (i32, i32) {
    %c0_i32 = arith.constant 0 : i32
    %c0_i32_0 = arith.constant 0 : i32
    %c0_i32_1 = arith.constant 0 : i32
    return %c0_i32, %c0_i32_0 : i32, i32
  }
  func.func @transform_21(%arg0: i32, %arg1: memref<16xi32, #tpu.memory_space<smem>>) -> (i32, i32) {
    %c0_i32 = arith.constant 0 : i32
    %c0_i32_0 = arith.constant 0 : i32
    %c0_i32_1 = arith.constant 0 : i32
    return %c0_i32, %c0_i32_0 : i32, i32
  }
}

</mosaic_0001>

<llo_original>
// kernel: speaker_encoder_forward.1
$region0: #{speaker_encoder_forward.1}
  #allocation0 [shape = 'u32[]', space=smem, size = 0x4, offset = 0x4, fixed_abs, tag = 'smem constant byte address 0x4 - core index']
  #allocation1 [shape = 'u32[144,128]{1,0:T(1,128)}', space=vmem, size = 0x12000, scoped, tag = 'internal scratch']
  #allocation2 [shape = 'f32[8,32]{1,0:T(8,128)}', space=vmem, size = 0x1000, scoped, tag = 'scratch operand']
  #allocation3 [shape = 'f32[8,1800]{1,0:T(8,128)}', space=vmem, size = 0xf000, scoped, tag = 'scratch operand']
  #allocation4 [shape = 'f32[8,1072]{1,0:T(8,128)}', space=vmem, size = 0x9000, scoped, tag = 'scratch operand']
  #allocation5 [shape = 's32[1]{0}', space=sflag, size = 0x4, scoped, tag = 'scoped memory for speaker_encoder_forward.1']
  #allocation6 [shape = 'u8[512]{0}', space=smem, size = 0x200, scoped, tag = 'prefetched SMEM operand 0']
  %s0 = inlined_call_operand.vmem [shape: s32[16], index: 0, kind: input, shape index: {}]
  %s1 = inlined_call_operand.vmem [shape: f32[8,40], index: 1, kind: input, shape index: {}]
  %s2 = inlined_call_operand.vmem [shape: f32[8,6,40], index: 2, kind: input, shape index: {}]
  %s3 = inlined_call_operand.vmem [shape: f32[8,100], index: 3, kind: input, shape index: {}]
  %s4 = inlined_call_operand.vmem [shape: f32[8,1], index: 4, kind: input, shape index: {}]
  %s5 = inlined_call_operand.vmem [shape: f32[8,1], index: 5, kind: input, shape index: {}]
  %s6 = inlined_call_operand.vmem [shape: f32[8,150], index: 6, kind: input, shape index: {}]
  %s7 = inlined_call_operand.vmem [shape: f32[8,150], index: 7, kind: input, shape index: {}]
  %s8 = inlined_call_operand.vmem [shape: f32[20,1,1800], index: 8, kind: input, shape index: {}]
  %s9 = inlined_call_operand.vmem [shape: f32[40,128], index: 9, kind: input, shape index: {}]
  %s10 = inlined_call_operand.vmem [shape: f32[32,128], index: 10, kind: input, shape index: {}]
  %s11 = inlined_call_operand.vmem [shape: f32[1,128], index: 11, kind: input, shape index: {}]
  %s12 = inlined_call_operand.vmem [shape: bf16[300,100], index: 12, kind: input, shape index: {}]
  %s13 = inlined_call_operand.vmem [shape: f32[1,100], index: 13, kind: input, shape index: {}]
  %s14 = inlined_call_operand.vmem [shape: f32[32,40], index: 14, kind: input, shape index: {}]
  %s15 = inlined_call_operand.vmem [shape: bf16[1072,32], index: 15, kind: input, shape index: {}]
  %s16 = inlined_call_operand.vmem [shape: f32[1,32], index: 16, kind: input, shape index: {}]
  %s17 = inlined_call_operand.vmem [shape: f32[1,32], index: 17, kind: input, shape index: {}]
  %s18 = inlined_call_operand.vmem [shape: f32[1,32], index: 18, kind: input, shape index: {}]
  %s19 = inlined_call_operand.vmem [shape: f32[32,128], index: 19, kind: input, shape index: {}]
  %s20 = inlined_call_operand.vmem [shape: f32[32,128], index: 20, kind: input, shape index: {}]
  %s21 = inlined_call_operand.vmem [shape: f32[1,128], index: 21, kind: input, shape index: {}]
  %s22 = inlined_call_operand.hbm [shape: f32[8,32], index: 22, kind: output, shape index: {}]
  %s23 = sld [smem:[#allocation0]]
  $region94: #{speaker_encoder_forward.1} parent=0
    _
  %s25 = ssub.s32 1, %s23
  %s26 = scalar_select 0, %s25, %s23
  %s27 = sshll.u32 %s0, 4
  %s28 = int_to_ptr.vmem [resolvable:$true] %s27
  %30 = dma.vmem_to_smem %s28, 16, [#allocation6], [#allocation5]
  %31 = dma.done [#allocation5], 16
  %32 = sfence
  $region1: #{speaker_encoder_forward.1} parent=0
    #allocation7 [shape = 'u8[4096]{0}', space=vmem, size = 0x1000, scoped, tag = 'output window, operand 0, single buffered']
    #allocation8 [shape = 's32[1]{0}', space=sflag, size = 0x4, scoped, tag = 'scoped memory for speaker_encoder_forward.1']
    %33 = vsyncpa [#allocation8], 0
    // Predicated region
    $region2: #{speaker_encoder_forward.1} parent=1 // pred_check
      _
    $region3: #{speaker_encoder_forward.1} parent=1 // pred_check_branch
      %35 = sbr.rel (0) target = $region5
    $region4: #{speaker_encoder_forward.1} parent=1 // pred_region
      _
    $region5: #{speaker_encoder_forward.1} parent=1 // pred_fallthru
      _
    // Predicated region
    $region6: #{speaker_encoder_forward.1} parent=1 // pred_check
      _
    $region7: #{speaker_encoder_forward.1} parent=1 // pred_check_branch
      %37 = sbr.rel (0) target = $region9
    $region8: #{speaker_encoder_forward.1} parent=1 // pred_region
      _
    $region9: #{speaker_encoder_forward.1} parent=1 // pred_fallthru
      _
    // Predicated region
    $region10: #{speaker_encoder_forward.1} parent=1 // pred_check
      _
    $region11: #{speaker_encoder_forward.1} parent=1 // pred_check_branch
      %39 = sbr.rel (0) target = $region13
    $region12: #{speaker_encoder_forward.1} parent=1 // pred_region
      _
    $region13: #{speaker_encoder_forward.1} parent=1 // pred_fallthru
      _
    // Predicated region
    $region14: #{speaker_encoder_forward.1} parent=1 // pred_check
      _
    $region15: #{speaker_encoder_forward.1} parent=1 // pred_check_branch
      %41 = sbr.rel (0) target = $region17
    $region16: #{speaker_encoder_forward.1} parent=1 // pred_region
      _
    $region17: #{speaker_encoder_forward.1} parent=1 // pred_fallthru
      _
    // Predicated region
    $region18: #{speaker_encoder_forward.1} parent=1 // pred_check
      _
    $region19: #{speaker_encoder_forward.1} parent=1 // pred_check_branch
      %43 = sbr.rel (0) target = $region21
    $region20: #{speaker_encoder_forward.1} parent=1 // pred_region
      _
    $region21: #{speaker_encoder_forward.1} parent=1 // pred_fallthru
      _
    // Predicated region
    $region22: #{speaker_encoder_forward.1} parent=1 // pred_check
      _
    $region23: #{speaker_encoder_forward.1} parent=1 // pred_check_branch
      %45 = sbr.rel (0) target = $region25
    $region24: #{speaker_encoder_forward.1} parent=1 // pred_region
      _
    $region25: #{speaker_encoder_forward.1} parent=1 // pred_fallthru
      _
    // Predicated region
    $region26: #{speaker_encoder_forward.1} parent=1 // pred_check
      _
    $region27: #{speaker_encoder_forward.1} parent=1 // pred_check_branch
      %47 = sbr.rel (0) target = $region29
    $region28: #{speaker_encoder_forward.1} parent=1 // pred_region
      _
    $region29: #{speaker_encoder_forward.1} parent=1 // pred_fallthru
      _
    // Predicated region
    $region30: #{speaker_encoder_forward.1} parent=1 // pred_check
      _
    $region31: #{speaker_encoder_forward.1} parent=1 // pred_check_branch
      %49 = sbr.rel (0) target = $region33
    $region32: #{speaker_encoder_forward.1} parent=1 // pred_region
      _
    $region33: #{speaker_encoder_forward.1} parent=1 // pred_fallthru
      _
    // Predicated region
    $region34: #{speaker_encoder_forward.1} parent=1 // pred_check
      _
    $region35: #{speaker_encoder_forward.1} parent=1 // pred_check_branch
      %51 = sbr.rel (0) target = $region37
    $region36: #{speaker_encoder_forward.1} parent=1 // pred_region
      _
    $region37: #{speaker_encoder_forward.1} parent=1 // pred_fallthru
      _
    // Predicated region
    $region38: #{speaker_encoder_forward.1} parent=1 // pred_check
      _
    $region39: #{speaker_encoder_forward.1} parent=1 // pred_check_branch
      %53 = sbr.rel (0) target = $region41
    $region40: #{speaker_encoder_forward.1} parent=1 // pred_region
      _
    $region41: #{speaker_encoder_forward.1} parent=1 // pred_fallthru
      _
    // Predicated region
    $region42: #{speaker_encoder_forward.1} parent=1 // pred_check
      _
    $region43: #{speaker_encoder_forward.1} parent=1 // pred_check_branch
      %55 = sbr.rel (0) target = $region45
    $region44: #{speaker_encoder_forward.1} parent=1 // pred_region
      _
    $region45: #{speaker_encoder_forward.1} parent=1 // pred_fallthru
      _
    // Predicated region
    $region46: #{speaker_encoder_forward.1} parent=1 // pred_check
      _
    $region47: #{speaker_encoder_forward.1} parent=1 // pred_check_branch
      %57 = sbr.rel (0) target = $region49
    $region48: #{speaker_encoder_forward.1} parent=1 // pred_region
      _
    $region49: #{speaker_encoder_forward.1} parent=1 // pred_fallthru
      _
    // Predicated region
    $region50: #{speaker_encoder_forward.1} parent=1 // pred_check
      _
    $region51: #{speaker_encoder_forward.1} parent=1 // pred_check_branch
      %59 = sbr.rel (0) target = $region53
    $region52: #{speaker_encoder_forward.1} parent=1 // pred_region
      _
    $region53: #{speaker_encoder_forward.1} parent=1 // pred_fallthru
      _
    // Predicated region
    $region54: #{speaker_encoder_forward.1} parent=1 // pred_check
      _
    $region55: #{speaker_encoder_forward.1} parent=1 // pred_check_branch
      %61 = sbr.rel (0) target = $region57
    $region56: #{speaker_encoder_forward.1} parent=1 // pred_region
      _
    $region57: #{speaker_encoder_forward.1} parent=1 // pred_fallthru
      _
    // Predicated region
    $region58: #{speaker_encoder_forward.1} parent=1 // pred_check
      _
    $region59: #{speaker_encoder_forward.1} parent=1 // pred_check_branch
      %63 = sbr.rel (0) target = $region61
    $region60: #{speaker_encoder_forward.1} parent=1 // pred_region
      _
    $region61: #{speaker_encoder_forward.1} parent=1 // pred_fallthru
      _
    // Predicated region
    $region62: #{speaker_encoder_forward.1} parent=1 // pred_check
      _
    $region63: #{speaker_encoder_forward.1} parent=1 // pred_check_branch
      %65 = sbr.rel (0) target = $region65
    $region64: #{speaker_encoder_forward.1} parent=1 // pred_region
      _
    $region65: #{speaker_encoder_forward.1} parent=1 // pred_fallthru
      _
    // Predicated region
    $region66: #{speaker_encoder_forward.1} parent=1 // pred_check
      _
    $region67: #{speaker_encoder_forward.1} parent=1 // pred_check_branch
      %67 = sbr.rel (0) target = $region69
    $region68: #{speaker_encoder_forward.1} parent=1 // pred_region
      _
    $region69: #{speaker_encoder_forward.1} parent=1 // pred_fallthru
      _
    // Predicated region
    $region70: #{speaker_encoder_forward.1} parent=1 // pred_check
      _
    $region71: #{speaker_encoder_forward.1} parent=1 // pred_check_branch
      %69 = sbr.rel (0) target = $region73
    $region72: #{speaker_encoder_forward.1} parent=1 // pred_region
      _
    $region73: #{speaker_encoder_forward.1} parent=1 // pred_fallthru
      _
    // Predicated region
    $region74: #{speaker_encoder_forward.1} parent=1 // pred_check
      _
    $region75: #{speaker_encoder_forward.1} parent=1 // pred_check_branch
      %71 = sbr.rel (0) target = $region77
    $region76: #{speaker_encoder_forward.1} parent=1 // pred_region
      _
    $region77: #{speaker_encoder_forward.1} parent=1 // pred_fallthru
      _
    // Predicated region
    $region78: #{speaker_encoder_forward.1} parent=1 // pred_check
      _
    $region79: #{speaker_encoder_forward.1} parent=1 // pred_check_branch
      %73 = sbr.rel (0) target = $region81
    $region80: #{speaker_encoder_forward.1} parent=1 // pred_region
      _
    $region81: #{speaker_encoder_forward.1} parent=1 // pred_fallthru
      _
    // Predicated region
    $region82: #{speaker_encoder_forward.1} parent=1 // pred_check
      _
    $region83: #{speaker_encoder_forward.1} parent=1 // pred_check_branch
      %75 = sbr.rel (0) target = $region85
    $region84: #{speaker_encoder_forward.1} parent=1 // pred_region
      _
    $region85: #{speaker_encoder_forward.1} parent=1 // pred_fallthru
      _
    %v77 = vld [vmem:[%s1] sm:$0xff]
    %v78 = vld [vmem:[%s9] sm:$0xff]
    %v79 = vld [vmem:[%s9 + $0x8] sm:$0xff]
    %v80 = vld [vmem:[%s9 + $0x10] sm:$0xff]
    %v81 = vld [vmem:[%s9 + $0x18] sm:$0xff]
    %v82 = vld [vmem:[%s9 + $0x20] sm:$0xff]
    %vm83 = vcmask 326656
    %v85 = vsel %vm83, %v77, 0
    %87 = vmatprep.subr.mxu0 0.0
    %88 = vmatpush1.msra.mxu0 %v78
    %89 = vmatprep.subr.mxu0 0.0
    %90 = vmatpush1.msra.mxu0 %v79
    %91 = vmatprep.subr.mxu0 0.0
    %92 = vmatpush1.msra.mxu0 %v80
    %93 = vmatprep.subr.mxu0 0.0
    %94 = vmatpush1.msra.mxu0 %v81
    %95 = vmatprep.subr.mxu0 0.0
    %96 = vmatpush1.msra.mxu0 %v82
    %97 = vmatprep.subr.mxu0 0.0
    %98 = vmatpush1.msra.mxu0 0.0
    %99 = vmatprep.subr.mxu0 0.0
    %100 = vmatpush1.msra.mxu0 0.0
    %101 = vmatprep.subr.mxu0 0.0
    %102 = vmatpush1.msra.mxu0 0.0
    %103 = vmatprep.subr.mxu0 0.0
    %104 = vmatpush1.msra.mxu0 0.0
    %105 = vmatprep.subr.mxu0 0.0
    %106 = vmatpush1.msra.mxu0 0.0
    %107 = vmatprep.subr.mxu0 0.0
    %108 = vmatpush1.msra.mxu0 0.0
    %109 = vmatprep.subr.mxu0 0.0
    %110 = vmatpush1.msra.mxu0 0.0
    %111 = vmatprep.subr.mxu0 0.0
    %112 = vmatpush1.msra.mxu0 0.0
    %113 = vmatprep.subr.mxu0 0.0
    %114 = vmatpush1.msra.mxu0 0.0
    %115 = vmatprep.subr.mxu0 0.0
    %116 = vmatpush1.msra.mxu0 0.0
    %117 = vmatprep.subr.mxu0 0.0
    %118 = vmatpush1.msra.mxu0 0.0
    %119 = vmatprep.subr.mxu0 0.0
    %120 = vmatpush1.msra.mxu0 0.0
    %121 = vmatprep.subr.mxu0 0.0
    %122 = vmatpush1.msra.mxu0 0.0
    %123 = vmatprep.subr.mxu0 0.0
    %124 = vmatpush1.msra.mxu0 0.0
    %125 = vmatprep.subr.mxu0 0.0
    %126 = vmatpush1.msra.mxu0 0.0
    %127 = vmatprep.subr.mxu0 0.0
    %128 = vmatpush1.msra.mxu0 0.0
    %129 = vmatprep.subr.mxu0 0.0
    %130 = vmatpush1.msra.mxu0 0.0
    %131 = vmatprep.subr.mxu0 0.0
    %132 = vmatpush1.msra.mxu0 0.0
    %133 = vmatprep.subr.mxu0 0.0
    %134 = vmatpush1.msra.mxu0 0.0
    %135 = vmatprep.subr.mxu0 0.0
    %136 = vmatpush1.msra.mxu0 0.0
    %137 = vmatprep.subr.mxu0 0.0
    %138 = vmatpush1.msra.mxu0 0.0
    %139 = vmatprep.subr.mxu0 0.0
    %140 = vmatpush1.msra.mxu0 0.0
    %141 = vmatprep.subr.mxu0 0.0
    %142 = vmatpush1.msra.mxu0 0.0
    %143 = vmatprep.subr.mxu0 0.0
    %144 = vmatpush1.msra.mxu0 0.0
    %145 = vmatprep.subr.mxu0 0.0
    %146 = vmatpush1.msra.mxu0 0.0
    %147 = vmatprep.subr.mxu0 0.0
    %148 = vmatpush1.msra.mxu0 0.0
    %149 = vmatprep.subr.mxu0 0.0
    %150 = vmatpush1.msra.mxu0 0.0
    %151 = vmatprep.mubr.f32.mxu0 0.0
    %152 = vmatmul.mubr.f32.gmra.mrb[0].mxu0 %v85
    %v153 = vpop.f32.mrb[0].mxu0
    %v154 = vadd.f32 0.0, %v153
    %v155 = vpop.f32.mrb[0].mxu0
    %156 = vdwg.mxu0
    %v157 = vld [vmem:[%s10] sm:$0xff]
    %v158 = vld [vmem:[%s10 + $0x8] sm:$0xff]
    %v159 = vld [vmem:[%s10 + $0x10] sm:$0xff]
    %v160 = vld [vmem:[%s10 + $0x18] sm:$0xff]
    %v161 = vld [vmem:[%s11] sm:$0x1]
    %v163 = vrot.slane %v154, 3
    %vm165 = vcmask 1040384
    %v166 = vsel %vm165, %v154, %v163
    %vm167 = vcmask 261120
    %v169 = vsel %vm167, 0.0, 0
    %171 = vmatprep.subr.mxu0 0.0
    %172 = vmatpush1.msra.mxu0 %v157
    %173 = vmatprep.subr.mxu0 0.0
    %174 = vmatpush1.msra.mxu0 %v158
    %175 = vmatprep.subr.mxu0 0.0
    %176 = vmatpush1.msra.mxu0 %v159
    %177 = vmatprep.subr.mxu0 0.0
    %178 = vmatpush1.msra.mxu0 %v160
    %179 = vmatprep.subr.mxu0 0.0
    %180 = vmatpush1.msra.mxu0 0.0
    %181 = vmatprep.subr.mxu0 0.0
    %182 = vmatpush1.msra.mxu0 0.0
    %183 = vmatprep.subr.mxu0 0.0
    %184 = vmatpush1.msra.mxu0 0.0
    %185 = vmatprep.subr.mxu0 0.0
    %186 = vmatpush1.msra.mxu0 0.0
    %187 = vmatprep.subr.mxu0 0.0
    %188 = vmatpush1.msra.mxu0 0.0
    %189 = vmatprep.subr.mxu0 0.0
    %190 = vmatpush1.msra.mxu0 0.0
    %191 = vmatprep.subr.mxu0 0.0
    %192 = vmatpush1.msra.mxu0 0.0
    %193 = vmatprep.subr.mxu0 0.0
    %194 = vmatpush1.msra.mxu0 0.0
    %195 = vmatprep.subr.mxu0 0.0
    %196 = vmatpush1.msra.mxu0 0.0
    %197 = vmatprep.subr.mxu0 0.0
    %198 = vmatpush1.msra.mxu0 0.0
    %199 = vmatprep.subr.mxu0 0.0
    %200 = vmatpush1.msra.mxu0 0.0
    %201 = vmatprep.subr.mxu0 0.0
    %202 = vmatpush1.msra.mxu0 0.0
    %203 = vmatprep.subr.mxu0 0.0
    %204 = vmatpush1.msra.mxu0 0.0
    %205 = vmatprep.subr.mxu0 0.0
    %206 = vmatpush1.msra.mxu0 0.0
    %207 = vmatprep.subr.mxu0 0.0
    %208 = vmatpush1.msra.mxu0 0.0
    %209 = vmatprep.subr.mxu0 0.0
    %210 = vmatpush1.msra.mxu0 0.0
    %211 = vmatprep.subr.mxu0 0.0
    %212 = vmatpush1.msra.mxu0 0.0
    %213 = vmatprep.subr.mxu0 0.0
    %214 = vmatpush1.msra.mxu0 0.0
    %215 = vmatprep.subr.mxu0 0.0
    %216 = vmatpush1.msra.mxu0 0.0
    %217 = vmatprep.subr.mxu0 0.0
    %218 = vmatpush1.msra.mxu0 0.0
    %219 = vmatprep.subr.mxu0 0.0
    %220 = vmatpush1.msra.mxu0 0.0
    %221 = vmatprep.subr.mxu0 0.0
    %222 = vmatpush1.msra.mxu0 0.0
    %223 = vmatprep.subr.mxu0 0.0
    %224 = vmatpush1.msra.mxu0 0.0
    %225 = vmatprep.subr.mxu0 0.0
    %226 = vmatpush1.msra.mxu0 0.0
    %227 = vmatprep.subr.mxu0 0.0
    %228 = vmatpush1.msra.mxu0 0.0
    %229 = vmatprep.subr.mxu0 0.0
    %230 = vmatpush1.msra.mxu0 0.0
    %231 = vmatprep.subr.mxu0 0.0
    %232 = vmatpush1.msra.mxu0 0.0
    %233 = vmatprep.subr.mxu0 0.0
    %234 = vmatpush1.msra.mxu0 0.0
    %235 = vmatprep.mubr.f32.mxu0 0.0
    %236 = vmatmul.mubr.f32.gmra.mrb[0].mxu0 %v169
    %v237 = vpop.f32.mrb[0].mxu0
    %v238 = vadd.f32 0.0, %v237
    %v239 = vpop.f32.mrb[0].mxu0
    %240 = vdwg.mxu0
    %v241 = vadd.f32 %v166, %v238
    %v243 = vlaneseq
    %v244 = vshrl.u32 %v243, 7
    %v245 = vsub.s32 0, %v244
    %v246 = vrot.slane %v161, %v245
    %v248 = vadd.f32 %v241, %v246
    %v249 = vlaneseq
    %v250 = vand.u32 %v249, 127
    %vm251 = vcmp.ge.s32.totalorder %v250, 64
    %vm252 = vcmp.lt.s32.totalorder %v250, 96
    %vm253 = vmand %vm251, %vm252
    %v254 = vtanh.pop %v248
    %v255 = vxor.u32 %v248, 2147483648
    %v256 = vmul.f32 %v255, 1.442695
    %v257 = vpow.pop %v256
    %v258 = vadd.f32 %v257, 1.0
    %v259 = vrcp.pop %v258
    %v260 = vmul.f32 1.0, %v259
    %v261 = vsel %vm253, %v254, %v260
    %v262 = vmul.f32 %v261, 0.0
    %264 = vrot.lane.b32.xlu0 %v261, 64
    %v265 = vpop.permute.xlu0 %264
    %v267 = vmul.f32 %v261, %v265
    %269 = vrot.lane.b32.xlu0 %v267, 32
    %v270 = vpop.permute.xlu0 %269
    %v272 = vadd.f32 %v262, %v270
    %v273 = vtanh.pop %v272
    %275 = vrot.lane.b32.xlu0 %v273, 64
    %v276 = vpop.permute.xlu0 %275
    %v278 = vmul.f32 %v261, %v276
    %280 = vrot.lane.b32.xlu0 %v278, 32
    %v281 = vpop.permute.xlu0 %280
    %vm283 = vcmask 253952
    %284 = vst.msk [vmem:[#allocation2] sm:$0x1] %vm283, %v281
    %vm285 = vcmask 254977
    %286 = vst.msk [vmem:[#allocation2 + $0x3] sm:$0x2] %vm285, %v281
    %v287 = vrot.slane %v154, 1
    %v289 = vrot.slane %v154, 4
    %v291 = vsel %vm165, %v287, %v289
    %v292 = vsel %vm167, %v281, 0
    %294 = vmatprep.subr.mxu0 0.0
    %295 = vmatpush1.msra.mxu0 %v157
    %296 = vmatprep.subr.mxu0 0.0
    %297 = vmatpush1.msra.mxu0 %v158
    %298 = vmatprep.subr.mxu0 0.0
    %299 = vmatpush1.msra.mxu0 %v159
    %300 = vmatprep.subr.mxu0 0.0
    %301 = vmatpush1.msra.mxu0 %v160
    %302 = vmatprep.subr.mxu0 0.0
    %303 = vmatpush1.msra.mxu0 0.0
    %304 = vmatprep.subr.mxu0 0.0
    %305 = vmatpush1.msra.mxu0 0.0
    %306 = vmatprep.subr.mxu0 0.0
    %307 = vmatpush1.msra.mxu0 0.0
    %308 = vmatprep.subr.mxu0 0.0
    %309 = vmatpush1.msra.mxu0 0.0
    %310 = vmatprep.subr.mxu0 0.0
    %311 = vmatpush1.msra.mxu0 0.0
    %312 = vmatprep.subr.mxu0 0.0
    %313 = vmatpush1.msra.mxu0 0.0
    %314 = vmatprep.subr.mxu0 0.0
    %315 = vmatpush1.msra.mxu0 0.0
    %316 = vmatprep.subr.mxu0 0.0
    %317 = vmatpush1.msra.mxu0 0.0
    %318 = vmatprep.subr.mxu0 0.0
    %319 = vmatpush1.msra.mxu0 0.0
    %320 = vmatprep.subr.mxu0 0.0
    %321 = vmatpush1.msra.mxu0 0.0
    %322 = vmatprep.subr.mxu0 0.0
    %323 = vmatpush1.msra.mxu0 0.0
    %324 = vmatprep.subr.mxu0 0.0
    %325 = vmatpush1.msra.mxu0 0.0
    %326 = vmatprep.subr.mxu0 0.0
    %327 = vmatpush1.msra.mxu0 0.0
    %328 = vmatprep.subr.mxu0 0.0
    %329 = vmatpush1.msra.mxu0 0.0
    %330 = vmatprep.subr.mxu0 0.0
    %331 = vmatpush1.msra.mxu0 0.0
    %332 = vmatprep.subr.mxu0 0.0
    %333 = vmatpush1.msra.mxu0 0.0
    %334 = vmatprep.subr.mxu0 0.0
    %335 = vmatpush1.msra.mxu0 0.0
    %336 = vmatprep.subr.mxu0 0.0
    %337 = vmatpush1.msra.mxu0 0.0
    %338 = vmatprep.subr.mxu0 0.0
    %339 = vmatpush1.msra.mxu0 0.0
    %340 = vmatprep.subr.mxu0 0.0
    %341 = vmatpush1.msra.mxu0 0.0
    %342 = vmatprep.subr.mxu0 0.0
    %343 = vmatpush1.msra.mxu0 0.0
    %344 = vmatprep.subr.mxu0 0.0
    %345 = vmatpush1.msra.mxu0 0.0
    %346 = vmatprep.subr.mxu0 0.0
    %347 = vmatpush1.msra.mxu0 0.0
    %348 = vmatprep.subr.mxu0 0.0
    %349 = vmatpush1.msra.mxu0 0.0
    %350 = vmatprep.subr.mxu0 0.0
    %351 = vmatpush1.msra.mxu0 0.0
    %352 = vmatprep.subr.mxu0 0.0
    %353 = vmatpush1.msra.mxu0 0.0
    %354 = vmatprep.subr.mxu0 0.0
    %355 = vmatpush1.msra.mxu0 0.0
    %356 = vmatprep.subr.mxu0 0.0
    %357 = vmatpush1.msra.mxu0 0.0
    %358 = vmatprep.mubr.f32.mxu0 0.0
    %359 = vmatmul.mubr.f32.gmra.mrb[0].mxu0 %v292
    %v360 = vpop.f32.mrb[0].mxu0
    %v361 = vadd.f32 0.0, %v360
    %v362 = vpop.f32.mrb[0].mxu0
    %363 = vdwg.mxu0
    %v364 = vadd.f32 %v291, %v361
    %v365 = vadd.f32 %v364, %v246
    %v366 = vtanh.pop %v365
    %v367 = vxor.u32 %v365, 2147483648
    %v368 = vmul.f32 %v367, 1.442695
    %v369 = vpow.pop %v368
    %v370 = vadd.f32 %v369, 1.0
    %v371 = vrcp.pop %v370
    %v372 = vmul.f32 1.0, %v371
    %v373 = vsel %vm253, %v366, %v372
    %v374 = vmul.f32 %v373, %v272
    %376 = vrot.lane.b32.xlu0 %v373, 64
    %v377 = vpop.permute.xlu0 %376
    %v379 = vmul.f32 %v373, %v377
    %381 = vrot.lane.b32.xlu0 %v379, 32
    %v382 = vpop.permute.xlu0 %381
    %v384 = vadd.f32 %v374, %v382
    %v385 = vtanh.pop %v384
    %387 = vrot.lane.b32.xlu0 %v385, 64
    %v388 = vpop.permute.xlu0 %387
    %v390 = vmul.f32 %v373, %v388
    %392 = vrot.lane.b32.xlu0 %v390, 32
    %v393 = vpop.permute.xlu0 %392
    %395 = vst.msk [vmem:[#allocation2 + $0x1] sm:$0x1] %vm283, %v393
    %396 = vst.msk [vmem:[#allocation2 + $0x4] sm:$0x2] %vm285, %v393
    %v397 = vrot.slane %v154, 2
    %v399 = vrot.slane %v154, 5
    %v401 = vsel %vm165, %v397, %v399
    %v402 = vsel %vm167, %v393, 0
    %404 = vmatprep.subr.mxu0 0.0
    %405 = vmatpush1.msra.mxu0 %v157
    %406 = vmatprep.subr.mxu0 0.0
    %407 = vmatpush1.msra.mxu0 %v158
    %408 = vmatprep.subr.mxu0 0.0
    %409 = vmatpush1.msra.mxu0 %v159
    %410 = vmatprep.subr.mxu0 0.0
    %411 = vmatpush1.msra.mxu0 %v160
    %412 = vmatprep.subr.mxu0 0.0
    %413 = vmatpush1.msra.mxu0 0.0
    %414 = vmatprep.subr.mxu0 0.0
    %415 = vmatpush1.msra.mxu0 0.0
    %416 = vmatprep.subr.mxu0 0.0
    %417 = vmatpush1.msra.mxu0 0.0
    %418 = vmatprep.subr.mxu0 0.0
    %419 = vmatpush1.msra.mxu0 0.0
    %420 = vmatprep.subr.mxu0 0.0
    %421 = vmatpush1.msra.mxu0 0.0
    %422 = vmatprep.subr.mxu0 0.0
    %423 = vmatpush1.msra.mxu0 0.0
    %424 = vmatprep.subr.mxu0 0.0
    %425 = vmatpush1.msra.mxu0 0.0
    %426 = vmatprep.subr.mxu0 0.0
    %427 = vmatpush1.msra.mxu0 0.0
    %428 = vmatprep.subr.mxu0 0.0
    %429 = vmatpush1.msra.mxu0 0.0
    %430 = vmatprep.subr.mxu0 0.0
    %431 = vmatpush1.msra.mxu0 0.0
    %432 = vmatprep.subr.mxu0 0.0
    %433 = vmatpush1.msra.mxu0 0.0
    %434 = vmatprep.subr.mxu0 0.0
    %435 = vmatpush1.msra.mxu0 0.0
    %436 = vmatprep.subr.mxu0 0.0
    %437 = vmatpush1.msra.mxu0 0.0
    %438 = vmatprep.subr.mxu0 0.0
    %439 = vmatpush1.msra.mxu0 0.0
    %440 = vmatprep.subr.mxu0 0.0
    %441 = vmatpush1.msra.mxu0 0.0
    %442 = vmatprep.subr.mxu0 0.0
    %443 = vmatpush1.msra.mxu0 0.0
    %444 = vmatprep.subr.mxu0 0.0
    %445 = vmatpush1.msra.mxu0 0.0
    %446 = vmatprep.subr.mxu0 0.0
    %447 = vmatpush1.msra.mxu0 0.0
    %448 = vmatprep.subr.mxu0 0.0
    %449 = vmatpush1.msra.mxu0 0.0
    %450 = vmatprep.subr.mxu0 0.0
    %451 = vmatpush1.msra.mxu0 0.0
    %452 = vmatprep.subr.mxu0 0.0
    %453 = vmatpush1.msra.mxu0 0.0
    %454 = vmatprep.subr.mxu0 0.0
    %455 = vmatpush1.msra.mxu0 0.0
    %456 = vmatprep.subr.mxu0 0.0
    %457 = vmatpush1.msra.mxu0 0.0
    %458 = vmatprep.subr.mxu0 0.0
    %459 = vmatpush1.msra.mxu0 0.0
    %460 = vmatprep.subr.mxu0 0.0
    %461 = vmatpush1.msra.mxu0 0.0
    %462 = vmatprep.subr.mxu0 0.0
    %463 = vmatpush1.msra.mxu0 0.0
    %464 = vmatprep.subr.mxu0 0.0
    %465 = vmatpush1.msra.mxu0 0.0
    %466 = vmatprep.subr.mxu0 0.0
    %467 = vmatpush1.msra.mxu0 0.0
    %468 = vmatprep.mubr.f32.mxu0 0.0
    %469 = vmatmul.mubr.f32.gmra.mrb[0].mxu0 %v402
    %v470 = vpop.f32.mrb[0].mxu0
    %v471 = vadd.f32 0.0, %v470
    %v472 = vpop.f32.mrb[0].mxu0
    %473 = vdwg.mxu0
    %v474 = vadd.f32 %v401, %v471
    %v475 = vadd.f32 %v474, %v246
    %v476 = vtanh.pop %v475
    %v477 = vxor.u32 %v475, 2147483648
    %v478 = vmul.f32 %v477, 1.442695
    %v479 = vpow.pop %v478
    %v480 = vadd.f32 %v479, 1.0
    %v481 = vrcp.pop %v480
    %v482 = vmul.f32 1.0, %v481
    %v483 = vsel %vm253, %v476, %v482
    %v484 = vmul.f32 %v483, %v384
    %486 = vrot.lane.b32.xlu0 %v483, 64
    %v487 = vpop.permute.xlu0 %486
    %v489 = vmul.f32 %v483, %v487
    %491 = vrot.lane.b32.xlu0 %v489, 32
    %v492 = vpop.permute.xlu0 %491
    %v494 = vadd.f32 %v484, %v492
    %v495 = vtanh.pop %v494
    %497 = vrot.lane.b32.xlu0 %v495, 64
    %v498 = vpop.permute.xlu0 %497
    %v500 = vmul.f32 %v483, %v498
    %502 = vrot.lane.b32.xlu0 %v500, 32
    %v503 = vpop.permute.xlu0 %502
    %505 = vst.msk [vmem:[#allocation2 + $0x2] sm:$0x1] %vm283, %v503
    %506 = vst.msk [vmem:[#allocation2 + $0x5] sm:$0x2] %vm285, %v503
    %v507 = vrot.slane %v154, 6
    %v509 = vsel %vm165, %v163, %v507
    %v510 = vsel %vm167, %v503, 0
    %512 = vmatprep.subr.mxu0 0.0
    %513 = vmatpush1.msra.mxu0 %v157
    %514 = vmatprep.subr.mxu0 0.0
    %515 = vmatpush1.msra.mxu0 %v158
    %516 = vmatprep.subr.mxu0 0.0
    %517 = vmatpush1.msra.mxu0 %v159
    %518 = vmatprep.subr.mxu0 0.0
    %519 = vmatpush1.msra.mxu0 %v160
    %520 = vmatprep.subr.mxu0 0.0
    %521 = vmatpush1.msra.mxu0 0.0
    %522 = vmatprep.subr.mxu0 0.0
    %523 = vmatpush1.msra.mxu0 0.0
    %524 = vmatprep.subr.mxu0 0.0
    %525 = vmatpush1.msra.mxu0 0.0
    %526 = vmatprep.subr.mxu0 0.0
    %527 = vmatpush1.msra.mxu0 0.0
    %528 = vmatprep.subr.mxu0 0.0
    %529 = vmatpush1.msra.mxu0 0.0
    %530 = vmatprep.subr.mxu0 0.0
    %531 = vmatpush1.msra.mxu0 0.0
    %532 = vmatprep.subr.mxu0 0.0
    %533 = vmatpush1.msra.mxu0 0.0
    %534 = vmatprep.subr.mxu0 0.0
    %535 = vmatpush1.msra.mxu0 0.0
    %536 = vmatprep.subr.mxu0 0.0
    %537 = vmatpush1.msra.mxu0 0.0
    %538 = vmatprep.subr.mxu0 0.0
    %539 = vmatpush1.msra.mxu0 0.0
    %540 = vmatprep.subr.mxu0 0.0
    %541 = vmatpush1.msra.mxu0 0.0
    %542 = vmatprep.subr.mxu0 0.0
    %543 = vmatpush1.msra.mxu0 0.0
    %544 = vmatprep.subr.mxu0 0.0
    %545 = vmatpush1.msra.mxu0 0.0
    %546 = vmatprep.subr.mxu0 0.0
    %547 = vmatpush1.msra.mxu0 0.0
    %548 = vmatprep.subr.mxu0 0.0
    %549 = vmatpush1.msra.mxu0 0.0
    %550 = vmatprep.subr.mxu0 0.0
    %551 = vmatpush1.msra.mxu0 0.0
    %552 = vmatprep.subr.mxu0 0.0
    %553 = vmatpush1.msra.mxu0 0.0
    %554 = vmatprep.subr.mxu0 0.0
    %555 = vmatpush1.msra.mxu0 0.0
    %556 = vmatprep.subr.mxu0 0.0
    %557 = vmatpush1.msra.mxu0 0.0
    %558 = vmatprep.subr.mxu0 0.0
    %559 = vmatpush1.msra.mxu0 0.0
    %560 = vmatprep.subr.mxu0 0.0
    %561 = vmatpush1.msra.mxu0 0.0
    %562 = vmatprep.subr.mxu0 0.0
    %563 = vmatpush1.msra.mxu0 0.0
    %564 = vmatprep.subr.mxu0 0.0
    %565 = vmatpush1.msra.mxu0 0.0
    %566 = vmatprep.subr.mxu0 0.0
    %567 = vmatpush1.msra.mxu0 0.0
    %568 = vmatprep.subr.mxu0 0.0
    %569 = vmatpush1.msra.mxu0 0.0
    %570 = vmatprep.subr.mxu0 0.0
    %571 = vmatpush1.msra.mxu0 0.0
    %572 = vmatprep.subr.mxu0 0.0
    %573 = vmatpush1.msra.mxu0 0.0
    %574 = vmatprep.subr.mxu0 0.0
    %575 = vmatpush1.msra.mxu0 0.0
    %576 = vmatprep.mubr.f32.mxu0 0.0
    %577 = vmatmul.mubr.f32.gmra.mrb[0].mxu0 %v510
    %v578 = vpop.f32.mrb[0].mxu0
    %v579 = vadd.f32 0.0, %v578
    %v580 = vpop.f32.mrb[0].mxu0
    %581 = vdwg.mxu0
    %v582 = vadd.f32 %v509, %v579
    %v583 = vadd.f32 %v582, %v246
    %v584 = vtanh.pop %v583
    %v585 = vxor.u32 %v583, 2147483648
    %v586 = vmul.f32 %v585, 1.442695
    %v587 = vpow.pop %v586
    %v588 = vadd.f32 %v587, 1.0
    %v589 = vrcp.pop %v588
    %v590 = vmul.f32 1.0, %v589
    %v591 = vsel %vm253, %v584, %v590
    %v592 = vmul.f32 %v591, %v494
    %594 = vrot.lane.b32.xlu0 %v591, 64
    %v595 = vpop.permute.xlu0 %594
    %v597 = vmul.f32 %v591, %v595
    %599 = vrot.lane.b32.xlu0 %v597, 32
    %v600 = vpop.permute.xlu0 %599
    %v602 = vadd.f32 %v592, %v600
    %v603 = vtanh.pop %v602
    %605 = vrot.lane.b32.xlu0 %v603, 64
    %v606 = vpop.permute.xlu0 %605
    %v608 = vmul.f32 %v591, %v606
    %610 = vrot.lane.b32.xlu0 %v608, 32
    %v611 = vpop.permute.xlu0 %610
    %613 = vst.msk [vmem:[#allocation2 + $0x3] sm:$0x1] %vm283, %v611
    %614 = vst.msk [vmem:[#allocation2 + $0x6] sm:$0x2] %vm285, %v611
    %v615 = vld [vmem:[#allocation2] sm:$0xff]
    %s616 = sld [smem:[#allocation6]]
    %s617 = smul.u32 %s616, 15
    %s618 = scalar_lea.vmem %s8, %s617
    %v619 = vld [vmem:[%s618] sm:$0xff]
    %v620 = vld [vmem:[%s618 + $0x8] sm:$0x7f]
    %s621 = sld [smem:[#allocation6 + $0x1]]
    %s622 = smul.u32 %s621, 15
    %s623 = scalar_lea.vmem %s8, %s622
    %v624 = vld [vmem:[%s623] sm:$0xff]
    %v625 = vld [vmem:[%s623 + $0x8] sm:$0x7f]
    %v626 = vadd.f32 %v619, %v624
    %v627 = vadd.f32 %v620, %v625
    %v628 = vmul.f32 %v626, 0.5
    %v629 = vmul.f32 %v627, 0.5
    %630 = vst [vmem:[#allocation3] ss:$8 sm:$0xf] %v628
    %631 = vst [vmem:[#allocation3] ss:$8 sm:$0xf0] %v628
    %v632 = vlaneseq
    %vm633 = vcmp.ge.s32.totalorder %v632, 0
    %vm634 = vcmp.lt.s32.totalorder %v632, 776
    %vm635 = vmand %vm633, %vm634
    %s636 = scalar_lea.vmem [#allocation3], 64
    %637 = vst.msk [vmem:[%s636] ss:$8 sm:$0xf] %vm635, %v629
    %638 = vst.msk [vmem:[%s636] ss:$8 sm:$0x70] %vm635, %v629
    %s639 = sld [smem:[#allocation6 + $0x2]]
    %s640 = smul.u32 %s639, 15
    %s641 = scalar_lea.vmem %s8, %s640
    %v642 = vld [vmem:[%s641] sm:$0xff]
    %v643 = vld [vmem:[%s641 + $0x8] sm:$0x7f]
    %s644 = sld [smem:[#allocation6 + $0x3]]
    %s645 = smul.u32 %s644, 15
    %s646 = scalar_lea.vmem %s8, %s645
    %v647 = vld [vmem:[%s646] sm:$0xff]
    %v648 = vld [vmem:[%s646 + $0x8] sm:$0x7f]
    %v649 = vadd.f32 %v642, %v647
    %v650 = vadd.f32 %v643, %v648
    %v651 = vmul.f32 %v649, 0.5
    %v652 = vmul.f32 %v650, 0.5
    %s653 = scalar_lea.vmem [#allocation3], 1
    %654 = vst [vmem:[%s653] ss:$8 sm:$0xf] %v651
    %655 = vst [vmem:[%s653] ss:$8 sm:$0xf0] %v651
    %s656 = scalar_lea.vmem [#allocation3], 65
    %657 = vst.msk [vmem:[%s656] ss:$8 sm:$0xf] %vm635, %v652
    %658 = vst.msk [vmem:[%s656] ss:$8 sm:$0x70] %vm635, %v652
    %s659 = sld [smem:[#allocation6 + $0x4]]
    %s660 = smul.u32 %s659, 15
    %s661 = scalar_lea.vmem %s8, %s660
    %v662 = vld [vmem:[%s661] sm:$0xff]
    %v663 = vld [vmem:[%s661 + $0x8] sm:$0x7f]
    %s664 = sld [smem:[#allocation6 + $0x5]]
    %s665 = smul.u32 %s664, 15
    %s666 = scalar_lea.vmem %s8, %s665
    %v667 = vld [vmem:[%s666] sm:$0xff]
    %v668 = vld [vmem:[%s666 + $0x8] sm:$0x7f]
    %v669 = vadd.f32 %v662, %v667
    %v670 = vadd.f32 %v663, %v668
    %v671 = vmul.f32 %v669, 0.5
    %v672 = vmul.f32 %v670, 0.5
    %s673 = scalar_lea.vmem [#allocation3], 2
    %674 = vst [vmem:[%s673] ss:$8 sm:$0xf] %v671
    %675 = vst [vmem:[%s673] ss:$8 sm:$0xf0] %v671
    %s676 = scalar_lea.vmem [#allocation3], 66
    %677 = vst.msk [vmem:[%s676] ss:$8 sm:$0xf] %vm635, %v672
    %678 = vst.msk [vmem:[%s676] ss:$8 sm:$0x70] %vm635, %v672
    %s679 = sld [smem:[#allocation6 + $0x6]]
    %s680 = smul.u32 %s679, 15
    %s681 = scalar_lea.vmem %s8, %s680
    %v682 = vld [vmem:[%s681] sm:$0xff]
    %v683 = vld [vmem:[%s681 + $0x8] sm:$0x7f]
    %s684 = sld [smem:[#allocation6 + $0x7]]
    %s685 = smul.u32 %s684, 15
    %s686 = scalar_lea.vmem %s8, %s685
    %v687 = vld [vmem:[%s686] sm:$0xff]
    %v688 = vld [vmem:[%s686 + $0x8] sm:$0x7f]
    %v689 = vadd.f32 %v682, %v687
    %v690 = vadd.f32 %v683, %v688
    %v691 = vmul.f32 %v689, 0.5
    %v692 = vmul.f32 %v690, 0.5
    %s693 = scalar_lea.vmem [#allocation3], 3
    %694 = vst [vmem:[%s693] ss:$8 sm:$0xf] %v691
    %695 = vst [vmem:[%s693] ss:$8 sm:$0xf0] %v691
    %s696 = scalar_lea.vmem [#allocation3], 67
    %697 = vst.msk [vmem:[%s696] ss:$8 sm:$0xf] %vm635, %v692
    %698 = vst.msk [vmem:[%s696] ss:$8 sm:$0x70] %vm635, %v692
    %s699 = sld [smem:[#allocation6 + $0x8]]
    %s700 = smul.u32 %s699, 15
    %s701 = scalar_lea.vmem %s8, %s700
    %v702 = vld [vmem:[%s701] sm:$0xff]
    %v703 = vld [vmem:[%s701 + $0x8] sm:$0x7f]
    %s704 = sld [smem:[#allocation6 + $0x9]]
    %s705 = smul.u32 %s704, 15
    %s706 = scalar_lea.vmem %s8, %s705
    %v707 = vld [vmem:[%s706] sm:$0xff]
    %v708 = vld [vmem:[%s706 + $0x8] sm:$0x7f]
    %v709 = vadd.f32 %v702, %v707
    %v710 = vadd.f32 %v703, %v708
    %v711 = vmul.f32 %v709, 0.5
    %v712 = vmul.f32 %v710, 0.5
    %s713 = scalar_lea.vmem [#allocation3], 4
    %714 = vst [vmem:[%s713] ss:$8 sm:$0xf] %v711
    %715 = vst [vmem:[%s713] ss:$8 sm:$0xf0] %v711
    %s716 = scalar_lea.vmem [#allocation3], 68
    %717 = vst.msk [vmem:[%s716] ss:$8 sm:$0xf] %vm635, %v712
    %718 = vst.msk [vmem:[%s716] ss:$8 sm:$0x70] %vm635, %v712
    %s719 = sld [smem:[#allocation6 + $0xa]]
    %s720 = smul.u32 %s719, 15
    %s721 = scalar_lea.vmem %s8, %s720
    %v722 = vld [vmem:[%s721] sm:$0xff]
    %v723 = vld [vmem:[%s721 + $0x8] sm:$0x7f]
    %s724 = sld [smem:[#allocation6 + $0xb]]
    %s725 = smul.u32 %s724, 15
    %s726 = scalar_lea.vmem %s8, %s725
    %v727 = vld [vmem:[%s726] sm:$0xff]
    %v728 = vld [vmem:[%s726 + $0x8] sm:$0x7f]
    %v729 = vadd.f32 %v722, %v727
    %v730 = vadd.f32 %v723, %v728
    %v731 = vmul.f32 %v729, 0.5
    %v732 = vmul.f32 %v730, 0.5
    %s733 = scalar_lea.vmem [#allocation3], 5
    %734 = vst [vmem:[%s733] ss:$8 sm:$0xf] %v731
    %735 = vst [vmem:[%s733] ss:$8 sm:$0xf0] %v731
    %s736 = scalar_lea.vmem [#allocation3], 69
    %737 = vst.msk [vmem:[%s736] ss:$8 sm:$0xf] %vm635, %v732
    %738 = vst.msk [vmem:[%s736] ss:$8 sm:$0x70] %vm635, %v732
    %s739 = sld [smem:[#allocation6 + $0xc]]
    %s740 = smul.u32 %s739, 15
    %s741 = scalar_lea.vmem %s8, %s740
    %v742 = vld [vmem:[%s741] sm:$0xff]
    %v743 = vld [vmem:[%s741 + $0x8] sm:$0x7f]
    %s744 = sld [smem:[#allocation6 + $0xd]]
    %s745 = smul.u32 %s744, 15
    %s746 = scalar_lea.vmem %s8, %s745
    %v747 = vld [vmem:[%s746] sm:$0xff]
    %v748 = vld [vmem:[%s746 + $0x8] sm:$0x7f]
    %v749 = vadd.f32 %v742, %v747
    %v750 = vadd.f32 %v743, %v748
    %v751 = vmul.f32 %v749, 0.5
    %v752 = vmul.f32 %v750, 0.5
    %s753 = scalar_lea.vmem [#allocation3], 6
    %754 = vst [vmem:[%s753] ss:$8 sm:$0xf] %v751
    %755 = vst [vmem:[%s753] ss:$8 sm:$0xf0] %v751
    %s756 = scalar_lea.vmem [#allocation3], 70
    %757 = vst.msk [vmem:[%s756] ss:$8 sm:$0xf] %vm635, %v752
    %758 = vst.msk [vmem:[%s756] ss:$8 sm:$0x70] %vm635, %v752
    %s759 = sld [smem:[#allocation6 + $0xe]]
    %s760 = smul.u32 %s759, 15
    %s761 = scalar_lea.vmem %s8, %s760
    %v762 = vld [vmem:[%s761] sm:$0xff]
    %v763 = vld [vmem:[%s761 + $0x8] sm:$0x7f]
    %s764 = sld [smem:[#allocation6 + $0xf]]
    %s765 = smul.u32 %s764, 15
    %s766 = scalar_lea.vmem %s8, %s765
    %v767 = vld [vmem:[%s766] sm:$0xff]
    %v768 = vld [vmem:[%s766 + $0x8] sm:$0x7f]
    %v769 = vadd.f32 %v762, %v767
    %v770 = vadd.f32 %v763, %v768
    %v771 = vmul.f32 %v769, 0.5
    %v772 = vmul.f32 %v770, 0.5
    %s773 = scalar_lea.vmem [#allocation3], 7
    %774 = vst [vmem:[%s773] ss:$8 sm:$0xf] %v771
    %775 = vst [vmem:[%s773] ss:$8 sm:$0xf0] %v771
    %s776 = scalar_lea.vmem [#allocation3], 71
    %777 = vst.msk [vmem:[%s776] ss:$8 sm:$0xf] %vm635, %v772
    %778 = vst.msk [vmem:[%s776] ss:$8 sm:$0x70] %vm635, %v772
    %v779 = vld [vmem:[%s2] sm:$0x3f]
    %v780 = vld [vmem:[%s2 + $0x8] sm:$0x3f]
    %v781 = vld [vmem:[%s2 + $0x10] sm:$0x3f]
    %v782 = vld [vmem:[%s2 + $0x18] sm:$0x3f]
    %v783 = vld [vmem:[%s2 + $0x20] sm:$0x3f]
    %v784 = vld [vmem:[%s2 + $0x28] sm:$0x3f]
    %v785 = vld [vmem:[%s2 + $0x30] sm:$0x3f]
    %v786 = vld [vmem:[%s2 + $0x38] sm:$0x3f]
    %v787 = vld [vmem:[%s14] sm:$0xff]
    %v788 = vld [vmem:[%s14 + $0x8] sm:$0xff]
    %v789 = vld [vmem:[%s14 + $0x10] sm:$0xff]
    %v790 = vld [vmem:[%s14 + $0x18] sm:$0xff]
    %v792 = vsel %vm167, %v615, 0
    %794 = vmatprep.subr.mxu0 0.0
    %795 = vmatpush1.msra.mxu0 %v787
    %796 = vmatprep.subr.mxu0 0.0
    %797 = vmatpush1.msra.mxu0 %v788
    %798 = vmatprep.subr.mxu0 0.0
    %799 = vmatpush1.msra.mxu0 %v789
    %800 = vmatprep.subr.mxu0 0.0
    %801 = vmatpush1.msra.mxu0 %v790
    %802 = vmatprep.subr.mxu0 0.0
    %803 = vmatpush1.msra.mxu0 0.0
    %804 = vmatprep.subr.mxu0 0.0
    %805 = vmatpush1.msra.mxu0 0.0
    %806 = vmatprep.subr.mxu0 0.0
    %807 = vmatpush1.msra.mxu0 0.0
    %808 = vmatprep.subr.mxu0 0.0
    %809 = vmatpush1.msra.mxu0 0.0
    %810 = vmatprep.subr.mxu0 0.0
    %811 = vmatpush1.msra.mxu0 0.0
    %812 = vmatprep.subr.mxu0 0.0
    %813 = vmatpush1.msra.mxu0 0.0
    %814 = vmatprep.subr.mxu0 0.0
    %815 = vmatpush1.msra.mxu0 0.0
    %816 = vmatprep.subr.mxu0 0.0
    %817 = vmatpush1.msra.mxu0 0.0
    %818 = vmatprep.subr.mxu0 0.0
    %819 = vmatpush1.msra.mxu0 0.0
    %820 = vmatprep.subr.mxu0 0.0
    %821 = vmatpush1.msra.mxu0 0.0
    %822 = vmatprep.subr.mxu0 0.0
    %823 = vmatpush1.msra.mxu0 0.0
    %824 = vmatprep.subr.mxu0 0.0
    %825 = vmatpush1.msra.mxu0 0.0
    %826 = vmatprep.subr.mxu0 0.0
    %827 = vmatpush1.msra.mxu0 0.0
    %828 = vmatprep.subr.mxu0 0.0
    %829 = vmatpush1.msra.mxu0 0.0
    %830 = vmatprep.subr.mxu0 0.0
    %831 = vmatpush1.msra.mxu0 0.0
    %832 = vmatprep.subr.mxu0 0.0
    %833 = vmatpush1.msra.mxu0 0.0
    %834 = vmatprep.subr.mxu0 0.0
    %835 = vmatpush1.msra.mxu0 0.0
    %836 = vmatprep.subr.mxu0 0.0
    %837 = vmatpush1.msra.mxu0 0.0
    %838 = vmatprep.subr.mxu0 0.0
    %839 = vmatpush1.msra.mxu0 0.0
    %840 = vmatprep.subr.mxu0 0.0
    %841 = vmatpush1.msra.mxu0 0.0
    %842 = vmatprep.subr.mxu0 0.0
    %843 = vmatpush1.msra.mxu0 0.0
    %844 = vmatprep.subr.mxu0 0.0
    %845 = vmatpush1.msra.mxu0 0.0
    %846 = vmatprep.subr.mxu0 0.0
    %847 = vmatpush1.msra.mxu0 0.0
    %848 = vmatprep.subr.mxu0 0.0
    %849 = vmatpush1.msra.mxu0 0.0
    %850 = vmatprep.subr.mxu0 0.0
    %851 = vmatpush1.msra.mxu0 0.0
    %852 = vmatprep.subr.mxu0 0.0
    %853 = vmatpush1.msra.mxu0 0.0
    %854 = vmatprep.subr.mxu0 0.0
    %855 = vmatpush1.msra.mxu0 0.0
    %856 = vmatprep.subr.mxu0 0.0
    %857 = vmatpush1.msra.mxu0 0.0
    %858 = vmatprep.mubr.f32.mxu0 0.0
    %859 = vmatmul.mubr.f32.gmra.mrb[0].mxu0 %v792
    %v860 = vpop.f32.mrb[0].mxu0
    %v861 = vadd.f32 0.0, %v860
    %v862 = vpop.f32.mrb[0].mxu0
    %863 = vdwg.mxu0
    %v865 = vcombine.high %v861, %v861
    %v867 = vunpack.c.l.s4 1966171168
    %v868 = vunpack.c.0.s8 %v867
    %v869 = vlaneseq
    %v870 = vshrl.u32 %v869, 7
    %v871 = vsub.s32 %v868, %v870
    %v872 = vrot.slane %v861, %v871
    %v874 = vunpack.c.l.s4 1966171168
    %v875 = vunpack.c.0.s8 %v874
    %v876 = vlaneseq
    %v877 = vshrl.u32 %v876, 7
    %v878 = vsub.s32 %v875, %v877
    %v879 = vrot.slane %v865, %v878
    %v880 = vcombine.high %v872, %v872
    %v881 = vcombine.high %v879, %v879
    %v883 = vunpack.c.l.s4 1966171168
    %v884 = vunpack.c.0.s8 %v883
    %v885 = vlaneseq
    %v886 = vshrl.u32 %v885, 7
    %v887 = vsub.s32 %v884, %v886
    %v888 = vrot.slane %v872, %v887
    %v890 = vunpack.c.l.s4 1966171168
    %v891 = vunpack.c.0.s8 %v890
    %v892 = vlaneseq
    %v893 = vshrl.u32 %v892, 7
    %v894 = vsub.s32 %v891, %v893
    %v895 = vrot.slane %v879, %v894
    %v897 = vunpack.c.l.s4 1966171168
    %v898 = vunpack.c.0.s8 %v897
    %v899 = vlaneseq
    %v900 = vshrl.u32 %v899, 7
    %v901 = vsub.s32 %v898, %v900
    %v902 = vrot.slane %v880, %v901
    %v904 = vunpack.c.l.s4 1966171168
    %v905 = vunpack.c.0.s8 %v904
    %v906 = vlaneseq
    %v907 = vshrl.u32 %v906, 7
    %v908 = vsub.s32 %v905, %v907
    %v909 = vrot.slane %v881, %v908
    %v910 = vcombine.high %v888, %v888
    %v911 = vcombine.high %v895, %v895
    %v912 = vcombine.high %v902, %v902
    %v913 = vcombine.high %v909, %v909
    %v914 = vlaneseq
    %v915 = vshrl.u32 %v914, 7
    %v916 = vsub.s32 0, %v915
    %v917 = vrot.slane %v888, %v916
    %v918 = vlaneseq
    %v919 = vshrl.u32 %v918, 7
    %v920 = vsub.s32 0, %v919
    %v921 = vrot.slane %v902, %v920
    %v922 = vlaneseq
    %v923 = vshrl.u32 %v922, 7
    %v924 = vsub.s32 0, %v923
    %v925 = vrot.slane %v910, %v924
    %v926 = vlaneseq
    %v927 = vshrl.u32 %v926, 7
    %v928 = vsub.s32 0, %v927
    %v929 = vrot.slane %v912, %v928
    %v930 = vlaneseq
    %v931 = vshrl.u32 %v930, 7
    %v932 = vsub.s32 0, %v931
    %v933 = vrot.slane %v895, %v932
    %v934 = vlaneseq
    %v935 = vshrl.u32 %v934, 7
    %v936 = vsub.s32 0, %v935
    %v937 = vrot.slane %v909, %v936
    %v938 = vlaneseq
    %v939 = vshrl.u32 %v938, 7
    %v940 = vsub.s32 0, %v939
    %v941 = vrot.slane %v911, %v940
    %v942 = vlaneseq
    %v943 = vshrl.u32 %v942, 7
    %v944 = vsub.s32 0, %v943
    %v945 = vrot.slane %v913, %v944
    %v954 = vmul.f32 %v917, %v779
    %v955 = vmul.f32 %v921, %v780
    %v956 = vmul.f32 %v925, %v781
    %v957 = vmul.f32 %v929, %v782
    %v958 = vmul.f32 %v933, %v783
    %v959 = vmul.f32 %v937, %v784
    %v960 = vmul.f32 %v941, %v785
    %v961 = vmul.f32 %v945, %v786
    %vm962 = vcmask 324608
    %v963 = vsel %vm962, %v954, 0.0
    %964 = vadd.xlane.f32.xlu0 %v963
    %v965 = vpop.xlane.xlu0 %964
    %v966 = vsel %vm962, %v955, 0.0
    %967 = vadd.xlane.f32.xlu0 %v966
    %v968 = vpop.xlane.xlu0 %967
    %v969 = vsel %vm962, %v956, 0.0
    %970 = vadd.xlane.f32.xlu0 %v969
    %v971 = vpop.xlane.xlu0 %970
    %v972 = vsel %vm962, %v957, 0.0
    %973 = vadd.xlane.f32.xlu0 %v972
    %v974 = vpop.xlane.xlu0 %973
    %v975 = vsel %vm962, %v958, 0.0
    %976 = vadd.xlane.f32.xlu0 %v975
    %v977 = vpop.xlane.xlu0 %976
    %v978 = vsel %vm962, %v959, 0.0
    %979 = vadd.xlane.f32.xlu0 %v978
    %v980 = vpop.xlane.xlu0 %979
    %v981 = vsel %vm962, %v960, 0.0
    %982 = vadd.xlane.f32.xlu0 %v981
    %v983 = vpop.xlane.xlu0 %982
    %v984 = vsel %vm962, %v961, 0.0
    %985 = vadd.xlane.f32.xlu0 %v984
    %v986 = vpop.xlane.xlu0 %985
    %v995 = vlaneseq
    %v996 = vshrl.u32 %v995, 7
    %v997 = vsub.s32 %v250, %v996
    %v998 = vrot.slane %v965, %v997
    %v999 = vlaneseq
    %v1000 = vshrl.u32 %v999, 7
    %v1001 = vsub.s32 %v250, %v1000
    %v1002 = vrot.slane %v968, %v1001
    %v1003 = vlaneseq
    %v1004 = vshrl.u32 %v1003, 7
    %v1005 = vsub.s32 %v250, %v1004
    %v1006 = vrot.slane %v971, %v1005
    %v1007 = vlaneseq
    %v1008 = vshrl.u32 %v1007, 7
    %v1009 = vsub.s32 %v250, %v1008
    %v1010 = vrot.slane %v974, %v1009
    %v1011 = vlaneseq
    %v1012 = vshrl.u32 %v1011, 7
    %v1013 = vsub.s32 %v250, %v1012
    %v1014 = vrot.slane %v977, %v1013
    %v1015 = vlaneseq
    %v1016 = vshrl.u32 %v1015, 7
    %v1017 = vsub.s32 %v250, %v1016
    %v1018 = vrot.slane %v980, %v1017
    %v1019 = vlaneseq
    %v1020 = vshrl.u32 %v1019, 7
    %v1021 = vsub.s32 %v250, %v1020
    %v1022 = vrot.slane %v983, %v1021
    %v1023 = vlaneseq
    %v1024 = vshrl.u32 %v1023, 7
    %v1025 = vsub.s32 %v250, %v1024
    %v1026 = vrot.slane %v986, %v1025
    %vm1027 = vcmask 1041409
    %v1028 = vsel %vm1027, %v1002, %v998
    %vm1029 = vcmask 1042434
    %v1030 = vsel %vm1029, %v1006, %v1028
    %vm1031 = vcmask 1043459
    %v1032 = vsel %vm1031, %v1010, %v1030
    %vm1033 = vcmask 1044484
    %v1034 = vsel %vm1033, %v1014, %v1032
    %vm1035 = vcmask 1045509
    %v1036 = vsel %vm1035, %v1018, %v1034
    %vm1037 = vcmask 1046534
    %v1038 = vsel %vm1037, %v1022, %v1036
    %vm1039 = vcmask 1047559
    %v1040 = vsel %vm1039, %v1026, %v1038
    %vm1042 = vcmask 48128
    %v1043 = vsel %vm1042, %v1040, -inf
    %1044 = vmax.xlane.f32.xlu0 %v1043
    %v1045 = vpop.xlane.xlu0 %1044
    %v1047 = vlaneseq
    %v1048 = vshrl.u32 %v1047, 7
    %v1049 = vsub.s32 0, %v1048
    %v1050 = vrot.slane %v1045, %v1049
    %v1051 = vlaneseq
    %v1052 = vshrl.u32 %v1051, 7
    %v1053 = vsub.s32 1, %v1052
    %v1054 = vrot.slane %v1045, %v1053
    %v1055 = vlaneseq
    %v1056 = vshrl.u32 %v1055, 7
    %v1057 = vsub.s32 2, %v1056
    %v1058 = vrot.slane %v1045, %v1057
    %v1059 = vlaneseq
    %v1060 = vshrl.u32 %v1059, 7
    %v1061 = vsub.s32 3, %v1060
    %v1062 = vrot.slane %v1045, %v1061
    %v1063 = vlaneseq
    %v1064 = vshrl.u32 %v1063, 7
    %v1065 = vsub.s32 4, %v1064
    %v1066 = vrot.slane %v1045, %v1065
    %v1067 = vlaneseq
    %v1068 = vshrl.u32 %v1067, 7
    %v1069 = vsub.s32 5, %v1068
    %v1070 = vrot.slane %v1045, %v1069
    %v1071 = vlaneseq
    %v1072 = vshrl.u32 %v1071, 7
    %v1073 = vsub.s32 6, %v1072
    %v1074 = vrot.slane %v1045, %v1073
    %v1075 = vlaneseq
    %v1076 = vshrl.u32 %v1075, 7
    %v1077 = vsub.s32 7, %v1076
    %v1078 = vrot.slane %v1045, %v1077
    %v1087 = vsub.f32 %v965, %v1050
    %v1088 = vsub.f32 %v968, %v1054
    %v1089 = vsub.f32 %v971, %v1058
    %v1090 = vsub.f32 %v974, %v1062
    %v1091 = vsub.f32 %v977, %v1066
    %v1092 = vsub.f32 %v980, %v1070
    %v1093 = vsub.f32 %v983, %v1074
    %v1094 = vsub.f32 %v986, %v1078
    %v1095 = vmul.f32 %v1087, 1.442695
    %v1096 = vpow.pop %v1095
    %v1097 = vmul.f32 %v1088, 1.442695
    %v1098 = vpow.pop %v1097
    %v1099 = vmul.f32 %v1089, 1.442695
    %v1100 = vpow.pop %v1099
    %v1101 = vmul.f32 %v1090, 1.442695
    %v1102 = vpow.pop %v1101
    %v1103 = vmul.f32 %v1091, 1.442695
    %v1104 = vpow.pop %v1103
    %v1105 = vmul.f32 %v1092, 1.442695
    %v1106 = vpow.pop %v1105
    %v1107 = vmul.f32 %v1093, 1.442695
    %v1108 = vpow.pop %v1107
    %v1109 = vmul.f32 %v1094, 1.442695
    %v1110 = vpow.pop %v1109
    %1119 = vset.pattern.permute.xlu0 0
    %1120 = vperm.xlu0 %1119, %v1096
    %v1121 = vpop.permute.xlu0 %1120
    %1122 = vset.pattern.permute.xlu0 0
    %1123 = vperm.xlu0 %1122, %v1098
    %v1124 = vpop.permute.xlu0 %1123
    %1125 = vset.pattern.permute.xlu0 0
    %1126 = vperm.xlu0 %1125, %v1100
    %v1127 = vpop.permute.xlu0 %1126
    %1128 = vset.pattern.permute.xlu0 0
    %1129 = vperm.xlu0 %1128, %v1102
    %v1130 = vpop.permute.xlu0 %1129
    %1131 = vset.pattern.permute.xlu0 0
    %1132 = vperm.xlu0 %1131, %v1104
    %v1133 = vpop.permute.xlu0 %1132
    %1134 = vset.pattern.permute.xlu0 0
    %1135 = vperm.xlu0 %1134, %v1106
    %v1136 = vpop.permute.xlu0 %1135
    %1137 = vset.pattern.permute.xlu0 0
    %1138 = vperm.xlu0 %1137, %v1108
    %v1139 = vpop.permute.xlu0 %1138
    %1140 = vset.pattern.permute.xlu0 0
    %1141 = vperm.xlu0 %1140, %v1110
    %v1142 = vpop.permute.xlu0 %1141
    %v1143 = vlaneseq
    %v1144 = vshrl.u32 %v1143, 7
    %v1145 = vsub.s32 %v250, %v1144
    %v1146 = vrot.slane %v1121, %v1145
    %v1147 = vlaneseq
    %v1148 = vshrl.u32 %v1147, 7
    %v1149 = vsub.s32 %v250, %v1148
    %v1150 = vrot.slane %v1124, %v1149
    %v1151 = vlaneseq
    %v1152 = vshrl.u32 %v1151, 7
    %v1153 = vsub.s32 %v250, %v1152
    %v1154 = vrot.slane %v1127, %v1153
    %v1155 = vlaneseq
    %v1156 = vshrl.u32 %v1155, 7
    %v1157 = vsub.s32 %v250, %v1156
    %v1158 = vrot.slane %v1130, %v1157
    %v1159 = vlaneseq
    %v1160 = vshrl.u32 %v1159, 7
    %v1161 = vsub.s32 %v250, %v1160
    %v1162 = vrot.slane %v1133, %v1161
    %v1163 = vlaneseq
    %v1164 = vshrl.u32 %v1163, 7
    %v1165 = vsub.s32 %v250, %v1164
    %v1166 = vrot.slane %v1136, %v1165
    %v1167 = vlaneseq
    %v1168 = vshrl.u32 %v1167, 7
    %v1169 = vsub.s32 %v250, %v1168
    %v1170 = vrot.slane %v1139, %v1169
    %v1171 = vlaneseq
    %v1172 = vshrl.u32 %v1171, 7
    %v1173 = vsub.s32 %v250, %v1172
    %v1174 = vrot.slane %v1142, %v1173
    %v1175 = vsel %vm1027, %v1150, %v1146
    %v1176 = vsel %vm1029, %v1154, %v1175
    %v1177 = vsel %vm1031, %v1158, %v1176
    %v1178 = vsel %vm1033, %v1162, %v1177
    %v1179 = vsel %vm1035, %v1166, %v1178
    %v1180 = vsel %vm1037, %v1170, %v1179
    %v1181 = vsel %vm1039, %v1174, %v1180
    %v1183 = vsel %vm1042, %v1181, 0.0
    %1184 = vadd.xlane.f32.xlu0 %v1183
    %v1185 = vpop.xlane.xlu0 %1184
    %v1187 = vlaneseq
    %v1188 = vshrl.u32 %v1187, 7
    %v1189 = vsub.s32 0, %v1188
    %v1190 = vrot.slane %v1185, %v1189
    %v1191 = vlaneseq
    %v1192 = vshrl.u32 %v1191, 7
    %v1193 = vsub.s32 1, %v1192
    %v1194 = vrot.slane %v1185, %v1193
    %v1195 = vlaneseq
    %v1196 = vshrl.u32 %v1195, 7
    %v1197 = vsub.s32 2, %v1196
    %v1198 = vrot.slane %v1185, %v1197
    %v1199 = vlaneseq
    %v1200 = vshrl.u32 %v1199, 7
    %v1201 = vsub.s32 3, %v1200
    %v1202 = vrot.slane %v1185, %v1201
    %v1203 = vlaneseq
    %v1204 = vshrl.u32 %v1203, 7
    %v1205 = vsub.s32 4, %v1204
    %v1206 = vrot.slane %v1185, %v1205
    %v1207 = vlaneseq
    %v1208 = vshrl.u32 %v1207, 7
    %v1209 = vsub.s32 5, %v1208
    %v1210 = vrot.slane %v1185, %v1209
    %v1211 = vlaneseq
    %v1212 = vshrl.u32 %v1211, 7
    %v1213 = vsub.s32 6, %v1212
    %v1214 = vrot.slane %v1185, %v1213
    %v1215 = vlaneseq
    %v1216 = vshrl.u32 %v1215, 7
    %v1217 = vsub.s32 7, %v1216
    %v1218 = vrot.slane %v1185, %v1217
    %v1227 = vrcp.pop %v1190
    %v1228 = vmul.f32 %v1096, %v1227
    %v1229 = vrcp.pop %v1194
    %v1230 = vmul.f32 %v1098, %v1229
    %v1231 = vrcp.pop %v1198
    %v1232 = vmul.f32 %v1100, %v1231
    %v1233 = vrcp.pop %v1202
    %v1234 = vmul.f32 %v1102, %v1233
    %v1235 = vrcp.pop %v1206
    %v1236 = vmul.f32 %v1104, %v1235
    %v1237 = vrcp.pop %v1210
    %v1238 = vmul.f32 %v1106, %v1237
    %v1239 = vrcp.pop %v1214
    %v1240 = vmul.f32 %v1108, %v1239
    %v1241 = vrcp.pop %v1218
    %v1242 = vmul.f32 %v1110, %v1241
    %1244 = vset.pattern.permute.xlu0 0
    %1245 = vperm.xlu0 %1244, %v1228
    %v1246 = vpop.permute.xlu0 %1245
    %1249 = vset.pattern.permute.xlu0 0
    %1250 = vperm.xlu0 %1249, %v1230
    %v1251 = vpop.permute.xlu0 %1250
    %1254 = vset.pattern.permute.xlu0 0
    %1255 = vperm.xlu0 %1254, %v1232
    %v1256 = vpop.permute.xlu0 %1255
    %1259 = vset.pattern.permute.xlu0 0
    %1260 = vperm.xlu0 %1259, %v1234
    %v1261 = vpop.permute.xlu0 %1260
    %1264 = vset.pattern.permute.xlu0 0
    %1265 = vperm.xlu0 %1264, %v1236
    %v1266 = vpop.permute.xlu0 %1265
    %1269 = vset.pattern.permute.xlu0 0
    %1270 = vperm.xlu0 %1269, %v1238
    %v1271 = vpop.permute.xlu0 %1270
    %1274 = vset.pattern.permute.xlu0 0
    %1275 = vperm.xlu0 %1274, %v1240
    %v1276 = vpop.permute.xlu0 %1275
    %1279 = vset.pattern.permute.xlu0 0
    %1280 = vperm.xlu0 %1279, %v1242
    %v1281 = vpop.permute.xlu0 %1280
    %v1283 = vmul.f32 %v1246, %v779
    %v1284 = vmul.f32 %v1251, %v780
    %v1285 = vmul.f32 %v1256, %v781
    %v1286 = vmul.f32 %v1261, %v782
    %v1287 = vmul.f32 %v1266, %v783
    %v1288 = vmul.f32 %v1271, %v784
    %v1289 = vmul.f32 %v1276, %v785
    %v1290 = vmul.f32 %v1281, %v786
    %v1291 = vsel %vm962, %v1283, 0.0
    %v1292 = vrot.slane %v1291, 4
    %v1293 = vadd.f32 %v1291, %v1292
    %v1294 = vrot.slane %v1293, 2
    %v1295 = vadd.f32 %v1293, %v1294
    %v1296 = vrot.slane %v1295, 1
    %v1297 = vadd.f32 %v1295, %v1296
    %v1298 = vsel %vm962, %v1284, 0.0
    %v1299 = vrot.slane %v1298, 4
    %v1300 = vadd.f32 %v1298, %v1299
    %v1301 = vrot.slane %v1300, 2
    %v1302 = vadd.f32 %v1300, %v1301
    %v1303 = vrot.slane %v1302, 1
    %v1304 = vadd.f32 %v1302, %v1303
    %v1305 = vsel %vm962, %v1285, 0.0
    %v1306 = vrot.slane %v1305, 4
    %v1307 = vadd.f32 %v1305, %v1306
    %v1308 = vrot.slane %v1307, 2
    %v1309 = vadd.f32 %v1307, %v1308
    %v1310 = vrot.slane %v1309, 1
    %v1311 = vadd.f32 %v1309, %v1310
    %v1312 = vsel %vm962, %v1286, 0.0
    %v1313 = vrot.slane %v1312, 4
    %v1314 = vadd.f32 %v1312, %v1313
    %v1315 = vrot.slane %v1314, 2
    %v1316 = vadd.f32 %v1314, %v1315
    %v1317 = vrot.slane %v1316, 1
    %v1318 = vadd.f32 %v1316, %v1317
    %v1319 = vsel %vm962, %v1287, 0.0
    %v1320 = vrot.slane %v1319, 4
    %v1321 = vadd.f32 %v1319, %v1320
    %v1322 = vrot.slane %v1321, 2
    %v1323 = vadd.f32 %v1321, %v1322
    %v1324 = vrot.slane %v1323, 1
    %v1325 = vadd.f32 %v1323, %v1324
    %v1326 = vsel %vm962, %v1288, 0.0
    %v1327 = vrot.slane %v1326, 4
    %v1328 = vadd.f32 %v1326, %v1327
    %v1329 = vrot.slane %v1328, 2
    %v1330 = vadd.f32 %v1328, %v1329
    %v1331 = vrot.slane %v1330, 1
    %v1332 = vadd.f32 %v1330, %v1331
    %v1333 = vsel %vm962, %v1289, 0.0
    %v1334 = vrot.slane %v1333, 4
    %v1335 = vadd.f32 %v1333, %v1334
    %v1336 = vrot.slane %v1335, 2
    %v1337 = vadd.f32 %v1335, %v1336
    %v1338 = vrot.slane %v1337, 1
    %v1339 = vadd.f32 %v1337, %v1338
    %v1340 = vsel %vm962, %v1290, 0.0
    %v1341 = vrot.slane %v1340, 4
    %v1342 = vadd.f32 %v1340, %v1341
    %v1343 = vrot.slane %v1342, 2
    %v1344 = vadd.f32 %v1342, %v1343
    %v1345 = vrot.slane %v1344, 1
    %v1346 = vadd.f32 %v1344, %v1345
    %v1355 = vsel %vm1027, %v1304, %v1297
    %v1356 = vsel %vm1029, %v1311, %v1355
    %v1357 = vsel %vm1031, %v1318, %v1356
    %v1358 = vsel %vm1033, %v1325, %v1357
    %v1359 = vsel %vm1035, %v1332, %v1358
    %v1360 = vsel %vm1037, %v1339, %v1359
    %v1361 = vsel %vm1039, %v1346, %v1360
    %1363 = vst.msk [vmem:[#allocation4] sm:$0xff] %vm83, %v1361
    %1364 = vrot.lane.b32.xlu0 %v615, 40
    %v1365 = vpop.permute.xlu0 %1364
    %vm1367 = vcmask 589120
    %1368 = vst.msk [vmem:[#allocation4] sm:$0xff] %vm1367, %v1365
    %v1369 = vld [vmem:[%s12] sm:$0xf]
    %v1370 = vld [vmem:[%s12 + $0x4] sm:$0xf]
    %v1371 = vld [vmem:[%s12 + $0x8] sm:$0xf]
    %v1372 = vld [vmem:[%s12 + $0xc] sm:$0xf]
    %v1373 = vld [vmem:[%s12 + $0x10] sm:$0xf]
    %v1374 = vld [vmem:[%s12 + $0x14] sm:$0xf]
    %v1375 = vld [vmem:[%s12 + $0x18] sm:$0xf]
    %v1376 = vld [vmem:[%s12 + $0x1c] sm:$0xf]
    %v1377 = vld [vmem:[%s12 + $0x20] sm:$0xf]
    %v1378 = vld [vmem:[%s12 + $0x24] sm:$0xf]
    %v1379 = vld [vmem:[%s12 + $0x28] sm:$0xf]
    %v1380 = vld [vmem:[%s12 + $0x2c] sm:$0xf]
    %v1381 = vld [vmem:[%s12 + $0x30] sm:$0xf]
    %v1382 = vld [vmem:[%s12 + $0x34] sm:$0xf]
    %v1383 = vld [vmem:[%s12 + $0x38] sm:$0xf]
    %v1384 = vld [vmem:[%s12 + $0x3c] sm:$0xf]
    %v1385 = vld [vmem:[%s12 + $0x40] sm:$0xf]
    %v1386 = vld [vmem:[%s12 + $0x44] sm:$0xf]
    %v1387 = vld [vmem:[%s12 + $0x48] sm:$0xf]
    %v1388 = vld [vmem:[%s12 + $0x4c] sm:$0xf]
    %v1389 = vld [vmem:[%s12 + $0x50] sm:$0xf]
    %v1390 = vld [vmem:[%s12 + $0x54] sm:$0xf]
    %v1391 = vld [vmem:[%s12 + $0x58] sm:$0xf]
    %v1392 = vld [vmem:[%s12 + $0x5c] sm:$0xf]
    %v1393 = vld [vmem:[%s12 + $0x60] sm:$0xf]
    %v1394 = vld [vmem:[%s12 + $0x64] sm:$0xf]
    %v1395 = vld [vmem:[%s12 + $0x68] sm:$0xf]
    %v1396 = vld [vmem:[%s12 + $0x6c] sm:$0xf]
    %v1397 = vld [vmem:[%s12 + $0x70] sm:$0xf]
    %v1398 = vld [vmem:[%s12 + $0x74] sm:$0xf]
    %v1399 = vld [vmem:[%s12 + $0x78] sm:$0xf]
    %v1400 = vld [vmem:[%s12 + $0x7c] sm:$0xf]
    %v1401 = vld [vmem:[%s12 + $0x80] sm:$0xf]
    %v1402 = vld [vmem:[%s12 + $0x84] sm:$0xf]
    %v1403 = vld [vmem:[%s12 + $0x88] sm:$0xf]
    %v1404 = vld [vmem:[%s12 + $0x8c] sm:$0xf]
    %v1405 = vld [vmem:[%s12 + $0x90] sm:$0xf]
    %v1406 = vld [vmem:[%s12 + $0x94] sm:$0x3]
    %v1407 = vld [vmem:[%s13] sm:$0x1]
    %v1408 = vld [vmem:[#allocation3] sm:$0xff]
    %v1409 = vld [vmem:[#allocation3 + $0x8] sm:$0xff]
    %v1410 = vld [vmem:[#allocation3 + $0x10] sm:$0xff]
    %v1411 = vpack.c.bf16 %v1408, %v1408
    %v1412 = vpack.c.bf16 %v1409, %v1409
    %v1413 = vpack.c.bf16 %v1410, %v1410
    %v1415 = vlaneseq
    %v1416 = vshrl.u32 %v1415, 7
    %v1417 = vsub.s32 0, %v1416
    %v1418 = vrot.slane %v1407, %v1417
    %v1458 = vunpack.c.l.b16 %v1369
    %v1459 = vunpack.c.l.b16 %v1370
    %v1460 = vunpack.c.l.b16 %v1371
    %v1461 = vunpack.c.l.b16 %v1372
    %v1462 = vunpack.c.l.b16 %v1373
    %v1463 = vunpack.c.l.b16 %v1374
    %v1464 = vunpack.c.l.b16 %v1375
    %v1465 = vunpack.c.l.b16 %v1376
    %v1466 = vunpack.c.l.b16 %v1377
    %v1467 = vunpack.c.l.b16 %v1378
    %v1468 = vunpack.c.l.b16 %v1379
    %v1469 = vunpack.c.l.b16 %v1380
    %v1470 = vunpack.c.l.b16 %v1381
    %v1471 = vunpack.c.l.b16 %v1382
    %v1472 = vunpack.c.l.b16 %v1383
    %v1473 = vunpack.c.l.b16 %v1384
    %v1474 = vunpack.c.l.b16 %v1385
    %v1475 = vunpack.c.l.b16 %v1386
    %v1476 = vunpack.c.l.b16 %v1387
    %v1477 = vunpack.c.l.b16 %v1388
    %v1478 = vunpack.c.l.b16 %v1389
    %v1479 = vunpack.c.l.b16 %v1390
    %v1480 = vunpack.c.l.b16 %v1391
    %v1481 = vunpack.c.l.b16 %v1392
    %v1482 = vunpack.c.l.b16 %v1393
    %v1483 = vunpack.c.l.b16 %v1394
    %v1484 = vunpack.c.l.b16 %v1395
    %v1485 = vunpack.c.l.b16 %v1396
    %v1486 = vunpack.c.l.b16 %v1397
    %v1487 = vunpack.c.l.b16 %v1398
    %v1488 = vunpack.c.l.b16 %v1399
    %v1489 = vunpack.c.l.b16 %v1400
    %v1490 = vunpack.c.l.b16 %v1401
    %v1491 = vunpack.c.l.b16 %v1402
    %v1492 = vunpack.c.l.b16 %v1403
    %v1493 = vunpack.c.l.b16 %v1404
    %v1494 = vunpack.c.l.b16 %v1405
    %v1495 = vunpack.c.l.b16 %v1406
    %v1496 = vpack.c.b16 %v1459, %v1458
    %v1497 = vpack.c.b16 %v1461, %v1460
    %v1498 = vpack.c.b16 %v1463, %v1462
    %v1499 = vpack.c.b16 %v1465, %v1464
    %v1500 = vpack.c.b16 %v1467, %v1466
    %v1501 = vpack.c.b16 %v1469, %v1468
    %v1502 = vpack.c.b16 %v1471, %v1470
    %v1503 = vpack.c.b16 %v1473, %v1472
    %v1504 = vpack.c.b16 %v1475, %v1474
    %v1505 = vpack.c.b16 %v1477, %v1476
    %v1506 = vpack.c.b16 %v1479, %v1478
    %v1507 = vpack.c.b16 %v1481, %v1480
    %v1508 = vpack.c.b16 %v1483, %v1482
    %v1509 = vpack.c.b16 %v1485, %v1484
    %v1510 = vpack.c.b16 %v1487, %v1486
    %v1511 = vpack.c.b16 %v1489, %v1488
    %v1512 = vpack.c.b16 %v1491, %v1490
    %v1513 = vpack.c.b16 %v1493, %v1492
    %v1514 = vpack.c.b16 %v1495, %v1494
    %vm1533 = vcmask 359424
    %v1535 = vsel %vm1533, %v1413, 0
    %vm1537 = vcmask 1045504
    %v1539 = vsel %vm1537, %v1514, 0
    %1541 = vmatprep.subr.bf16.mxu0 0
    %1542 = vmatpush1.bf16.msra.mxu0 %v1496
    %1543 = vmatprep.subr.bf16.mxu0 0
    %1544 = vmatpush1.bf16.msra.mxu0 %v1497
    %1545 = vmatprep.subr.bf16.mxu0 0
    %1546 = vmatpush1.bf16.msra.mxu0 %v1498
    %1547 = vmatprep.subr.bf16.mxu0 0
    %1548 = vmatpush1.bf16.msra.mxu0 %v1499
    %1549 = vmatprep.subr.bf16.mxu0 0
    %1550 = vmatpush1.bf16.msra.mxu0 %v1500
    %1551 = vmatprep.subr.bf16.mxu0 0
    %1552 = vmatpush1.bf16.msra.mxu0 %v1501
    %1553 = vmatprep.subr.bf16.mxu0 0
    %1554 = vmatpush1.bf16.msra.mxu0 %v1502
    %1555 = vmatprep.subr.bf16.mxu0 0
    %1556 = vmatpush1.bf16.msra.mxu0 %v1503
    %1557 = vmatprep.subr.bf16.mxu0 0
    %1558 = vmatpush1.bf16.msra.mxu0 %v1504
    %1559 = vmatprep.subr.bf16.mxu0 0
    %1560 = vmatpush1.bf16.msra.mxu0 %v1505
    %1561 = vmatprep.subr.bf16.mxu0 0
    %1562 = vmatpush1.bf16.msra.mxu0 %v1506
    %1563 = vmatprep.subr.bf16.mxu0 0
    %1564 = vmatpush1.bf16.msra.mxu0 %v1507
    %1565 = vmatprep.subr.bf16.mxu0 0
    %1566 = vmatpush1.bf16.msra.mxu0 %v1508
    %1567 = vmatprep.subr.bf16.mxu0 0
    %1568 = vmatpush1.bf16.msra.mxu0 %v1509
    %1569 = vmatprep.subr.bf16.mxu0 0
    %1570 = vmatpush1.bf16.msra.mxu0 %v1510
    %1571 = vmatprep.subr.bf16.mxu0 0
    %1572 = vmatpush1.bf16.msra.mxu0 %v1511
    %1573 = vmatprep.mubr.bf16.mxu0 %v1412
    %1574 = vmatmul.mubr.bf16.gmra.mrb[0].mxu0 %v1411
    %v1575 = vpop.f32.mrb[0].mxu0
    %v1576 = vadd.f32 %v1418, %v1575
    %v1577 = vpop.f32.mrb[0].mxu0
    %v1578 = vpop.f32.mrb[0].mxu0
    %v1579 = vpop.f32.mrb[0].mxu0
    %1580 = vdwg.mxu0
    %1581 = vmatprep.subr.bf16.mxu0 0
    %1582 = vmatpush1.bf16.msra.mxu0 %v1512
    %1583 = vmatprep.subr.bf16.mxu0 0
    %1584 = vmatpush1.bf16.msra.mxu0 %v1513
    %1585 = vmatprep.subr.bf16.mxu0 0
    %1586 = vmatpush1.bf16.msra.mxu0 %v1539
    %1587 = vmatprep.subr.bf16.mxu0 0
    %1588 = vmatpush1.bf16.msra.mxu0 0
    %1589 = vmatprep.subr.bf16.mxu0 0
    %1590 = vmatpush1.bf16.msra.mxu0 0
    %1591 = vmatprep.subr.bf16.mxu0 0
    %1592 = vmatpush1.bf16.msra.mxu0 0
    %1593 = vmatprep.subr.bf16.mxu0 0
    %1594 = vmatpush1.bf16.msra.mxu0 0
    %1595 = vmatprep.subr.bf16.mxu0 0
    %1596 = vmatpush1.bf16.msra.mxu0 0
    %1597 = vmatprep.subr.bf16.mxu0 0
    %1598 = vmatpush1.bf16.msra.mxu0 0
    %1599 = vmatprep.subr.bf16.mxu0 0
    %1600 = vmatpush1.bf16.msra.mxu0 0
    %1601 = vmatprep.subr.bf16.mxu0 0
    %1602 = vmatpush1.bf16.msra.mxu0 0
    %1603 = vmatprep.subr.bf16.mxu0 0
    %1604 = vmatpush1.bf16.msra.mxu0 0
    %1605 = vmatprep.subr.bf16.mxu0 0
    %1606 = vmatpush1.bf16.msra.mxu0 0
    %1607 = vmatprep.subr.bf16.mxu0 0
    %1608 = vmatpush1.bf16.msra.mxu0 0
    %1609 = vmatprep.subr.bf16.mxu0 0
    %1610 = vmatpush1.bf16.msra.mxu0 0
    %1611 = vmatprep.subr.bf16.mxu0 0
    %1612 = vmatpush1.bf16.msra.mxu0 0
    %1613 = vmatprep.mubr.bf16.mxu0 0
    %1614 = vmatmul.mubr.bf16.gmra.mrb[0].mxu0 %v1535
    %v1615 = vpop.f32.mrb[0].mxu0
    %v1616 = vadd.f32 %v1576, %v1615
    %v1617 = vpop.f32.mrb[0].mxu0
    %v1618 = vpop.f32.mrb[0].mxu0
    %v1619 = vpop.f32.mrb[0].mxu0
    %1620 = vdwg.mxu0
    %1622 = vrot.lane.b32.xlu0 %v1616, 72
    %v1623 = vpop.permute.xlu0 %1622
    %vm1625 = vcmask 1048128
    %1626 = vst.msk [vmem:[#allocation4] sm:$0xff] %vm1625, %v1623
    %1627 = vst.msk [vmem:[#allocation4 + $0x8] sm:$0xff] %vm1533, %v1623
    %v1628 = vld [vmem:[#allocation3 + $0x10] sm:$0xff]
    %v1629 = vld [vmem:[#allocation3 + $0x18] sm:$0xff]
    %v1630 = vld [vmem:[#allocation3 + $0x20] sm:$0xff]
    %v1631 = vpack.c.bf16 %v1628, %v1628
    %v1632 = vpack.c.bf16 %v1629, %v1629
    %v1633 = vpack.c.bf16 %v1630, %v1630
    %1637 = vrot.lane.b32.xlu0 %v1631, 84
    %v1638 = vpop.permute.xlu0 %1637
    %1639 = vrot.lane.b32.xlu0 %v1632, 84
    %v1640 = vpop.permute.xlu0 %1639
    %1641 = vrot.lane.b32.xlu0 %v1633, 84
    %v1642 = vpop.permute.xlu0 %1641
    %vm1643 = vcmask 687104
    %v1644 = vsel %vm1643, %v1638, %v1640
    %v1645 = vsel %vm1643, %v1640, %v1642
    %v1649 = vsel %vm1533, %v1642, 0
    %1651 = vmatprep.subr.bf16.mxu0 0
    %1652 = vmatpush1.bf16.msra.mxu0 %v1496
    %1653 = vmatprep.subr.bf16.mxu0 0
    %1654 = vmatpush1.bf16.msra.mxu0 %v1497
    %1655 = vmatprep.subr.bf16.mxu0 0
    %1656 = vmatpush1.bf16.msra.mxu0 %v1498
    %1657 = vmatprep.subr.bf16.mxu0 0
    %1658 = vmatpush1.bf16.msra.mxu0 %v1499
    %1659 = vmatprep.subr.bf16.mxu0 0
    %1660 = vmatpush1.bf16.msra.mxu0 %v1500
    %1661 = vmatprep.subr.bf16.mxu0 0
    %1662 = vmatpush1.bf16.msra.mxu0 %v1501
    %1663 = vmatprep.subr.bf16.mxu0 0
    %1664 = vmatpush1.bf16.msra.mxu0 %v1502
    %1665 = vmatprep.subr.bf16.mxu0 0
    %1666 = vmatpush1.bf16.msra.mxu0 %v1503
    %1667 = vmatprep.subr.bf16.mxu0 0
    %1668 = vmatpush1.bf16.msra.mxu0 %v1504
    %1669 = vmatprep.subr.bf16.mxu0 0
    %1670 = vmatpush1.bf16.msra.mxu0 %v1505
    %1671 = vmatprep.subr.bf16.mxu0 0
    %1672 = vmatpush1.bf16.msra.mxu0 %v1506
    %1673 = vmatprep.subr.bf16.mxu0 0
    %1674 = vmatpush1.bf16.msra.mxu0 %v1507
    %1675 = vmatprep.subr.bf16.mxu0 0
    %1676 = vmatpush1.bf16.msra.mxu0 %v1508
    %1677 = vmatprep.subr.bf16.mxu0 0
    %1678 = vmatpush1.bf16.msra.mxu0 %v1509
    %1679 = vmatprep.subr.bf16.mxu0 0
    %1680 = vmatpush1.bf16.msra.mxu0 %v1510
    %1681 = vmatprep.subr.bf16.mxu0 0
    %1682 = vmatpush1.bf16.msra.mxu0 %v1511
    %1683 = vmatprep.mubr.bf16.mxu0 %v1645
    %1684 = vmatmul.mubr.bf16.gmra.mrb[0].mxu0 %v1644
    %v1685 = vpop.f32.mrb[0].mxu0
    %v1686 = vadd.f32 %v1418, %v1685
    %v1687 = vpop.f32.mrb[0].mxu0
    %v1688 = vpop.f32.mrb[0].mxu0
    %v1689 = vpop.f32.mrb[0].mxu0
    %1690 = vdwg.mxu0
    %1691 = vmatprep.subr.bf16.mxu0 0
    %1692 = vmatpush1.bf16.msra.mxu0 %v1512
    %1693 = vmatprep.subr.bf16.mxu0 0
    %1694 = vmatpush1.bf16.msra.mxu0 %v1513
    %1695 = vmatprep.subr.bf16.mxu0 0
    %1696 = vmatpush1.bf16.msra.mxu0 %v1539
    %1697 = vmatprep.subr.bf16.mxu0 0
    %1698 = vmatpush1.bf16.msra.mxu0 0
    %1699 = vmatprep.subr.bf16.mxu0 0
    %1700 = vmatpush1.bf16.msra.mxu0 0
    %1701 = vmatprep.subr.bf16.mxu0 0
    %1702 = vmatpush1.bf16.msra.mxu0 0
    %1703 = vmatprep.subr.bf16.mxu0 0
    %1704 = vmatpush1.bf16.msra.mxu0 0
    %1705 = vmatprep.subr.bf16.mxu0 0
    %1706 = vmatpush1.bf16.msra.mxu0 0
    %1707 = vmatprep.subr.bf16.mxu0 0
    %1708 = vmatpush1.bf16.msra.mxu0 0
    %1709 = vmatprep.subr.bf16.mxu0 0
    %1710 = vmatpush1.bf16.msra.mxu0 0
    %1711 = vmatprep.subr.bf16.mxu0 0
    %1712 = vmatpush1.bf16.msra.mxu0 0
    %1713 = vmatprep.subr.bf16.mxu0 0
    %1714 = vmatpush1.bf16.msra.mxu0 0
    %1715 = vmatprep.subr.bf16.mxu0 0
    %1716 = vmatpush1.bf16.msra.mxu0 0
    %1717 = vmatprep.subr.bf16.mxu0 0
    %1718 = vmatpush1.bf16.msra.mxu0 0
    %1719 = vmatprep.subr.bf16.mxu0 0
    %1720 = vmatpush1.bf16.msra.mxu0 0
    %1721 = vmatprep.subr.bf16.mxu0 0
    %1722 = vmatpush1.bf16.msra.mxu0 0
    %1723 = vmatprep.mubr.bf16.mxu0 0
    %1724 = vmatmul.mubr.bf16.gmra.mrb[0].mxu0 %v1649
    %v1725 = vpop.f32.mrb[0].mxu0
    %v1726 = vadd.f32 %v1686, %v1725
    %v1727 = vpop.f32.mrb[0].mxu0
    %v1728 = vpop.f32.mrb[0].mxu0
    %v1729 = vpop.f32.mrb[0].mxu0
    %1730 = vdwg.mxu0
    %1732 = vrot.lane.b32.xlu0 %v1726, 44
    %v1733 = vpop.permute.xlu0 %1732
    %vm1735 = vcmask 1047904
    %1736 = vst.msk [vmem:[#allocation4 + $0x8] sm:$0xff] %vm1735, %v1733
    %vm1737 = vcmask 130048
    %1738 = vst.msk [vmem:[#allocation4 + $0x10] sm:$0xff] %vm1737, %v1733
    %v1739 = vld [vmem:[#allocation3 + $0x20] sm:$0xff]
    %v1740 = vld [vmem:[#allocation3 + $0x28] sm:$0xff]
    %v1741 = vld [vmem:[#allocation3 + $0x30] sm:$0xff]
    %v1742 = vld [vmem:[#allocation3 + $0x38] sm:$0xff]
    %v1743 = vpack.c.bf16 %v1739, %v1739
    %v1744 = vpack.c.bf16 %v1740, %v1740
    %v1745 = vpack.c.bf16 %v1741, %v1741
    %v1746 = vpack.c.bf16 %v1742, %v1742
    %1751 = vrot.lane.b32.xlu0 %v1743, 40
    %v1752 = vpop.permute.xlu0 %1751
    %1753 = vrot.lane.b32.xlu0 %v1744, 40
    %v1754 = vpop.permute.xlu0 %1753
    %1755 = vrot.lane.b32.xlu0 %v1745, 40
    %v1756 = vpop.permute.xlu0 %1755
    %1757 = vrot.lane.b32.xlu0 %v1746, 40
    %v1758 = vpop.permute.xlu0 %1757
    %vm1759 = vcmask 326656
    %v1760 = vsel %vm1759, %v1752, %v1754
    %v1761 = vsel %vm1759, %v1754, %v1756
    %v1762 = vsel %vm1759, %v1756, %v1758
    %v1766 = vsel %vm1533, %v1762, 0
    %1768 = vmatprep.subr.bf16.mxu0 0
    %1769 = vmatpush1.bf16.msra.mxu0 %v1496
    %1770 = vmatprep.subr.bf16.mxu0 0
    %1771 = vmatpush1.bf16.msra.mxu0 %v1497
    %1772 = vmatprep.subr.bf16.mxu0 0
    %1773 = vmatpush1.bf16.msra.mxu0 %v1498
    %1774 = vmatprep.subr.bf16.mxu0 0
    %1775 = vmatpush1.bf16.msra.mxu0 %v1499
    %1776 = vmatprep.subr.bf16.mxu0 0
    %1777 = vmatpush1.bf16.msra.mxu0 %v1500
    %1778 = vmatprep.subr.bf16.mxu0 0
    %1779 = vmatpush1.bf16.msra.mxu0 %v1501
    %1780 = vmatprep.subr.bf16.mxu0 0
    %1781 = vmatpush1.bf16.msra.mxu0 %v1502
    %1782 = vmatprep.subr.bf16.mxu0 0
    %1783 = vmatpush1.bf16.msra.mxu0 %v1503
    %1784 = vmatprep.subr.bf16.mxu0 0
    %1785 = vmatpush1.bf16.msra.mxu0 %v1504
    %1786 = vmatprep.subr.bf16.mxu0 0
    %1787 = vmatpush1.bf16.msra.mxu0 %v1505
    %1788 = vmatprep.subr.bf16.mxu0 0
    %1789 = vmatpush1.bf16.msra.mxu0 %v1506
    %1790 = vmatprep.subr.bf16.mxu0 0
    %1791 = vmatpush1.bf16.msra.mxu0 %v1507
    %1792 = vmatprep.subr.bf16.mxu0 0
    %1793 = vmatpush1.bf16.msra.mxu0 %v1508
    %1794 = vmatprep.subr.bf16.mxu0 0
    %1795 = vmatpush1.bf16.msra.mxu0 %v1509
    %1796 = vmatprep.subr.bf16.mxu0 0
    %1797 = vmatpush1.bf16.msra.mxu0 %v1510
    %1798 = vmatprep.subr.bf16.mxu0 0
    %1799 = vmatpush1.bf16.msra.mxu0 %v1511
    %1800 = vmatprep.mubr.bf16.mxu0 %v1761
    %1801 = vmatmul.mubr.bf16.gmra.mrb[0].mxu0 %v1760
    %v1802 = vpop.f32.mrb[0].mxu0
    %v1803 = vadd.f32 %v1418, %v1802
    %v1804 = vpop.f32.mrb[0].mxu0
    %v1805 = vpop.f32.mrb[0].mxu0
    %v1806 = vpop.f32.mrb[0].mxu0
    %1807 = vdwg.mxu0
    %1808 = vmatprep.subr.bf16.mxu0 0
    %1809 = vmatpush1.bf16.msra.mxu0 %v1512
    %1810 = vmatprep.subr.bf16.mxu0 0
    %1811 = vmatpush1.bf16.msra.mxu0 %v1513
    %1812 = vmatprep.subr.bf16.mxu0 0
    %1813 = vmatpush1.bf16.msra.mxu0 %v1539
    %1814 = vmatprep.subr.bf16.mxu0 0
    %1815 = vmatpush1.bf16.msra.mxu0 0
    %1816 = vmatprep.subr.bf16.mxu0 0
    %1817 = vmatpush1.bf16.msra.mxu0 0
    %1818 = vmatprep.subr.bf16.mxu0 0
    %1819 = vmatpush1.bf16.msra.mxu0 0
    %1820 = vmatprep.subr.bf16.mxu0 0
    %1821 = vmatpush1.bf16.msra.mxu0 0
    %1822 = vmatprep.subr.bf16.mxu0 0
    %1823 = vmatpush1.bf16.msra.mxu0 0
    %1824 = vmatprep.subr.bf16.mxu0 0
    %1825 = vmatpush1.bf16.msra.mxu0 0
    %1826 = vmatprep.subr.bf16.mxu0 0
    %1827 = vmatpush1.bf16.msra.mxu0 0
    %1828 = vmatprep.subr.bf16.mxu0 0
    %1829 = vmatpush1.bf16.msra.mxu0 0
    %1830 = vmatprep.subr.bf16.mxu0 0
    %1831 = vmatpush1.bf16.msra.mxu0 0
    %1832 = vmatprep.subr.bf16.mxu0 0
    %1833 = vmatpush1.bf16.msra.mxu0 0
    %1834 = vmatprep.subr.bf16.mxu0 0
    %1835 = vmatpush1.bf16.msra.mxu0 0
    %1836 = vmatprep.subr.bf16.mxu0 0
    %1837 = vmatpush1.bf16.msra.mxu0 0
    %1838 = vmatprep.subr.bf16.mxu0 0
    %1839 = vmatpush1.bf16.msra.mxu0 0
    %1840 = vmatprep.mubr.bf16.mxu0 0
    %1841 = vmatmul.mubr.bf16.gmra.mrb[0].mxu0 %v1766
    %v1842 = vpop.f32.mrb[0].mxu0
    %v1843 = vadd.f32 %v1803, %v1842
    %v1844 = vpop.f32.mrb[0].mxu0
    %v1845 = vpop.f32.mrb[0].mxu0
    %v1846 = vpop.f32.mrb[0].mxu0
    %1847 = vdwg.mxu0
    %1849 = vrot.lane.b32.xlu0 %v1843, 16
    %v1850 = vpop.permute.xlu0 %1849
    %vm1852 = vcmask 949376
    %1853 = vst.msk [vmem:[#allocation4 + $0x10] sm:$0xff] %vm1852, %v1850
    %v1854 = vld [vmem:[#allocation3 + $0x38] sm:$0xff]
    %v1855 = vld [vmem:[#allocation3 + $0x40] sm:$0xff]
    %v1856 = vld [vmem:[#allocation3 + $0x48] sm:$0xff]
    %v1857 = vpack.c.bf16 %v1854, %v1854
    %v1858 = vpack.c.bf16 %v1855, %v1855
    %v1859 = vpack.c.bf16 %v1856, %v1856
    %1863 = vrot.lane.b32.xlu0 %v1857, 124
    %v1864 = vpop.permute.xlu0 %1863
    %1865 = vrot.lane.b32.xlu0 %v1858, 124
    %v1866 = vpop.permute.xlu0 %1865
    %1867 = vrot.lane.b32.xlu0 %v1859, 124
    %v1868 = vpop.permute.xlu0 %1867
    %vm1869 = vcmask 1014784
    %v1870 = vsel %vm1869, %v1864, %v1866
    %v1871 = vsel %vm1869, %v1866, %v1868
    %v1875 = vsel %vm1533, %v1868, 0
    %1877 = vmatprep.subr.bf16.mxu0 0
    %1878 = vmatpush1.bf16.msra.mxu0 %v1496
    %1879 = vmatprep.subr.bf16.mxu0 0
    %1880 = vmatpush1.bf16.msra.mxu0 %v1497
    %1881 = vmatprep.subr.bf16.mxu0 0
    %1882 = vmatpush1.bf16.msra.mxu0 %v1498
    %1883 = vmatprep.subr.bf16.mxu0 0
    %1884 = vmatpush1.bf16.msra.mxu0 %v1499
    %1885 = vmatprep.subr.bf16.mxu0 0
    %1886 = vmatpush1.bf16.msra.mxu0 %v1500
    %1887 = vmatprep.subr.bf16.mxu0 0
    %1888 = vmatpush1.bf16.msra.mxu0 %v1501
    %1889 = vmatprep.subr.bf16.mxu0 0
    %1890 = vmatpush1.bf16.msra.mxu0 %v1502
    %1891 = vmatprep.subr.bf16.mxu0 0
    %1892 = vmatpush1.bf16.msra.mxu0 %v1503
    %1893 = vmatprep.subr.bf16.mxu0 0
    %1894 = vmatpush1.bf16.msra.mxu0 %v1504
    %1895 = vmatprep.subr.bf16.mxu0 0
    %1896 = vmatpush1.bf16.msra.mxu0 %v1505
    %1897 = vmatprep.subr.bf16.mxu0 0
    %1898 = vmatpush1.bf16.msra.mxu0 %v1506
    %1899 = vmatprep.subr.bf16.mxu0 0
    %1900 = vmatpush1.bf16.msra.mxu0 %v1507
    %1901 = vmatprep.subr.bf16.mxu0 0
    %1902 = vmatpush1.bf16.msra.mxu0 %v1508
    %1903 = vmatprep.subr.bf16.mxu0 0
    %1904 = vmatpush1.bf16.msra.mxu0 %v1509
    %1905 = vmatprep.subr.bf16.mxu0 0
    %1906 = vmatpush1.bf16.msra.mxu0 %v1510
    %1907 = vmatprep.subr.bf16.mxu0 0
    %1908 = vmatpush1.bf16.msra.mxu0 %v1511
    %1909 = vmatprep.mubr.bf16.mxu0 %v1871
    %1910 = vmatmul.mubr.bf16.gmra.mrb[0].mxu0 %v1870
    %v1911 = vpop.f32.mrb[0].mxu0
    %v1912 = vadd.f32 %v1418, %v1911
    %v1913 = vpop.f32.mrb[0].mxu0
    %v1914 = vpop.f32.mrb[0].mxu0
    %v1915 = vpop.f32.mrb[0].mxu0
    %1916 = vdwg.mxu0
    %1917 = vmatprep.subr.bf16.mxu0 0
    %1918 = vmatpush1.bf16.msra.mxu0 %v1512
    %1919 = vmatprep.subr.bf16.mxu0 0
    %1920 = vmatpush1.bf16.msra.mxu0 %v1513
    %1921 = vmatprep.subr.bf16.mxu0 0
    %1922 = vmatpush1.bf16.msra.mxu0 %v1539
    %1923 = vmatprep.subr.bf16.mxu0 0
    %1924 = vmatpush1.bf16.msra.mxu0 0
    %1925 = vmatprep.subr.bf16.mxu0 0
    %1926 = vmatpush1.bf16.msra.mxu0 0
    %1927 = vmatprep.subr.bf16.mxu0 0
    %1928 = vmatpush1.bf16.msra.mxu0 0
    %1929 = vmatprep.subr.bf16.mxu0 0
    %1930 = vmatpush1.bf16.msra.mxu0 0
    %1931 = vmatprep.subr.bf16.mxu0 0
    %1932 = vmatpush1.bf16.msra.mxu0 0
    %1933 = vmatprep.subr.bf16.mxu0 0
    %1934 = vmatpush1.bf16.msra.mxu0 0
    %1935 = vmatprep.subr.bf16.mxu0 0
    %1936 = vmatpush1.bf16.msra.mxu0 0
    %1937 = vmatprep.subr.bf16.mxu0 0
    %1938 = vmatpush1.bf16.msra.mxu0 0
    %1939 = vmatprep.subr.bf16.mxu0 0
    %1940 = vmatpush1.bf16.msra.mxu0 0
    %1941 = vmatprep.subr.bf16.mxu0 0
    %1942 = vmatpush1.bf16.msra.mxu0 0
    %1943 = vmatprep.subr.bf16.mxu0 0
    %1944 = vmatpush1.bf16.msra.mxu0 0
    %1945 = vmatprep.subr.bf16.mxu0 0
    %1946 = vmatpush1.bf16.msra.mxu0 0
    %1947 = vmatprep.subr.bf16.mxu0 0
    %1948 = vmatpush1.bf16.msra.mxu0 0
    %1949 = vmatprep.mubr.bf16.mxu0 0
    %1950 = vmatmul.mubr.bf16.gmra.mrb[0].mxu0 %v1875
    %v1951 = vpop.f32.mrb[0].mxu0
    %v1952 = vadd.f32 %v1912, %v1951
    %v1953 = vpop.f32.mrb[0].mxu0
    %v1954 = vpop.f32.mrb[0].mxu0
    %v1955 = vpop.f32.mrb[0].mxu0
    %1956 = vdwg.mxu0
    %1958 = vrot.lane.b32.xlu0 %v1952, 116
    %v1959 = vpop.permute.xlu0 %1958
    %vm1961 = vcmask 1048480
    %1962 = vst.msk [vmem:[#allocation4 + $0x10] sm:$0xff] %vm1961, %v1959
    %vm1963 = vcmask 719872
    %1964 = vst.msk [vmem:[#allocation4 + $0x18] sm:$0xff] %vm1963, %v1959
    %v1965 = vld [vmem:[#allocation3 + $0x48] sm:$0xff]
    %v1966 = vld [vmem:[#allocation3 + $0x50] sm:$0xff]
    %v1967 = vld [vmem:[#allocation3 + $0x58] sm:$0xff]
    %v1968 = vpack.c.bf16 %v1965, %v1965
    %v1969 = vpack.c.bf16 %v1966, %v1966
    %v1970 = vpack.c.bf16 %v1967, %v1967
    %1974 = vrot.lane.b32.xlu0 %v1968, 80
    %v1975 = vpop.permute.xlu0 %1974
    %1976 = vrot.lane.b32.xlu0 %v1969, 80
    %v1977 = vpop.permute.xlu0 %1976
    %1978 = vrot.lane.b32.xlu0 %v1970, 80
    %v1979 = vpop.permute.xlu0 %1978
    %vm1980 = vcmask 654336
    %v1981 = vsel %vm1980, %v1975, %v1977
    %v1982 = vsel %vm1980, %v1977, %v1979
    %v1986 = vsel %vm1533, %v1979, 0
    %1988 = vmatprep.subr.bf16.mxu0 0
    %1989 = vmatpush1.bf16.msra.mxu0 %v1496
    %1990 = vmatprep.subr.bf16.mxu0 0
    %1991 = vmatpush1.bf16.msra.mxu0 %v1497
    %1992 = vmatprep.subr.bf16.mxu0 0
    %1993 = vmatpush1.bf16.msra.mxu0 %v1498
    %1994 = vmatprep.subr.bf16.mxu0 0
    %1995 = vmatpush1.bf16.msra.mxu0 %v1499
    %1996 = vmatprep.subr.bf16.mxu0 0
    %1997 = vmatpush1.bf16.msra.mxu0 %v1500
    %1998 = vmatprep.subr.bf16.mxu0 0
    %1999 = vmatpush1.bf16.msra.mxu0 %v1501
    %2000 = vmatprep.subr.bf16.mxu0 0
    %2001 = vmatpush1.bf16.msra.mxu0 %v1502
    %2002 = vmatprep.subr.bf16.mxu0 0
    %2003 = vmatpush1.bf16.msra.mxu0 %v1503
    %2004 = vmatprep.subr.bf16.mxu0 0
    %2005 = vmatpush1.bf16.msra.mxu0 %v1504
    %2006 = vmatprep.subr.bf16.mxu0 0
    %2007 = vmatpush1.bf16.msra.mxu0 %v1505
    %2008 = vmatprep.subr.bf16.mxu0 0
    %2009 = vmatpush1.bf16.msra.mxu0 %v1506
    %2010 = vmatprep.subr.bf16.mxu0 0
    %2011 = vmatpush1.bf16.msra.mxu0 %v1507
    %2012 = vmatprep.subr.bf16.mxu0 0
    %2013 = vmatpush1.bf16.msra.mxu0 %v1508
    %2014 = vmatprep.subr.bf16.mxu0 0
    %2015 = vmatpush1.bf16.msra.mxu0 %v1509
    %2016 = vmatprep.subr.bf16.mxu0 0
    %2017 = vmatpush1.bf16.msra.mxu0 %v1510
    %2018 = vmatprep.subr.bf16.mxu0 0
    %2019 = vmatpush1.bf16.msra.mxu0 %v1511
    %2020 = vmatprep.mubr.bf16.mxu0 %v1982
    %2021 = vmatmul.mubr.bf16.gmra.mrb[0].mxu0 %v1981
    %v2022 = vpop.f32.mrb[0].mxu0
    %v2023 = vadd.f32 %v1418, %v2022
    %v2024 = vpop.f32.mrb[0].mxu0
    %v2025 = vpop.f32.mrb[0].mxu0
    %v2026 = vpop.f32.mrb[0].mxu0
    %2027 = vdwg.mxu0
    %2028 = vmatprep.subr.bf16.mxu0 0
    %2029 = vmatpush1.bf16.msra.mxu0 %v1512
    %2030 = vmatprep.subr.bf16.mxu0 0
    %2031 = vmatpush1.bf16.msra.mxu0 %v1513
    %2032 = vmatprep.subr.bf16.mxu0 0
    %2033 = vmatpush1.bf16.msra.mxu0 %v1539
    %2034 = vmatprep.subr.bf16.mxu0 0
    %2035 = vmatpush1.bf16.msra.mxu0 0
    %2036 = vmatprep.subr.bf16.mxu0 0
    %2037 = vmatpush1.bf16.msra.mxu0 0
    %2038 = vmatprep.subr.bf16.mxu0 0
    %2039 = vmatpush1.bf16.msra.mxu0 0
    %2040 = vmatprep.subr.bf16.mxu0 0
    %2041 = vmatpush1.bf16.msra.mxu0 0
    %2042 = vmatprep.subr.bf16.mxu0 0
    %2043 = vmatpush1.bf16.msra.mxu0 0
    %2044 = vmatprep.subr.bf16.mxu0 0
    %2045 = vmatpush1.bf16.msra.mxu0 0
    %2046 = vmatprep.subr.bf16.mxu0 0
    %2047 = vmatpush1.bf16.msra.mxu0 0
    %2048 = vmatprep.subr.bf16.mxu0 0
    %2049 = vmatpush1.bf16.msra.mxu0 0
    %2050 = vmatprep.subr.bf16.mxu0 0
    %2051 = vmatpush1.bf16.msra.mxu0 0
    %2052 = vmatprep.subr.bf16.mxu0 0
    %2053 = vmatpush1.bf16.msra.mxu0 0
    %2054 = vmatprep.subr.bf16.mxu0 0
    %2055 = vmatpush1.bf16.msra.mxu0 0
    %2056 = vmatprep.subr.bf16.mxu0 0
    %2057 = vmatpush1.bf16.msra.mxu0 0
    %2058 = vmatprep.subr.bf16.mxu0 0
    %2059 = vmatpush1.bf16.msra.mxu0 0
    %2060 = vmatprep.mubr.bf16.mxu0 0
    %2061 = vmatmul.mubr.bf16.gmra.mrb[0].mxu0 %v1986
    %v2062 = vpop.f32.mrb[0].mxu0
    %v2063 = vadd.f32 %v2023, %v2062
    %v2064 = vpop.f32.mrb[0].mxu0
    %v2065 = vpop.f32.mrb[0].mxu0
    %v2066 = vpop.f32.mrb[0].mxu0
    %2067 = vdwg.mxu0
    %2069 = vrot.lane.b32.xlu0 %v2063, 88
    %v2070 = vpop.permute.xlu0 %2069
    %vm2072 = vcmask 1048256
    %2073 = vst.msk [vmem:[#allocation4 + $0x18] sm:$0xff] %vm2072, %v2070
    %vm2074 = vcmask 490496
    %2075 = vst.msk [vmem:[#allocation4 + $0x20] sm:$0xff] %vm2074, %v2070
    %v2076 = vld [vmem:[#allocation3 + $0x58] sm:$0xff]
    %v2077 = vld [vmem:[#allocation3 + $0x60] sm:$0xff]
    %v2078 = vld [vmem:[#allocation3 + $0x68] sm:$0xff]
    %v2079 = vld [vmem:[#allocation3 + $0x70] sm:$0xff]
    %v2080 = vpack.c.bf16 %v2076, %v2076
    %v2081 = vpack.c.bf16 %v2077, %v2077
    %v2082 = vpack.c.bf16 %v2078, %v2078
    %v2083 = vpack.c.bf16 %v2079, %v2079
    %2088 = vrot.lane.b32.xlu0 %v2080, 36
    %v2089 = vpop.permute.xlu0 %2088
    %2090 = vrot.lane.b32.xlu0 %v2081, 36
    %v2091 = vpop.permute.xlu0 %2090
    %2092 = vrot.lane.b32.xlu0 %v2082, 36
    %v2093 = vpop.permute.xlu0 %2092
    %2094 = vrot.lane.b32.xlu0 %v2083, 36
    %v2095 = vpop.permute.xlu0 %2094
    %vm2096 = vcmask 293888
    %v2097 = vsel %vm2096, %v2089, %v2091
    %v2098 = vsel %vm2096, %v2091, %v2093
    %v2099 = vsel %vm2096, %v2093, %v2095
    %v2103 = vsel %vm1533, %v2099, 0
    %2105 = vmatprep.subr.bf16.mxu0 0
    %2106 = vmatpush1.bf16.msra.mxu0 %v1496
    %2107 = vmatprep.subr.bf16.mxu0 0
    %2108 = vmatpush1.bf16.msra.mxu0 %v1497
    %2109 = vmatprep.subr.bf16.mxu0 0
    %2110 = vmatpush1.bf16.msra.mxu0 %v1498
    %2111 = vmatprep.subr.bf16.mxu0 0
    %2112 = vmatpush1.bf16.msra.mxu0 %v1499
    %2113 = vmatprep.subr.bf16.mxu0 0
    %2114 = vmatpush1.bf16.msra.mxu0 %v1500
    %2115 = vmatprep.subr.bf16.mxu0 0
    %2116 = vmatpush1.bf16.msra.mxu0 %v1501
    %2117 = vmatprep.subr.bf16.mxu0 0
    %2118 = vmatpush1.bf16.msra.mxu0 %v1502
    %2119 = vmatprep.subr.bf16.mxu0 0
    %2120 = vmatpush1.bf16.msra.mxu0 %v1503
    %2121 = vmatprep.subr.bf16.mxu0 0
    %2122 = vmatpush1.bf16.msra.mxu0 %v1504
    %2123 = vmatprep.subr.bf16.mxu0 0
    %2124 = vmatpush1.bf16.msra.mxu0 %v1505
    %2125 = vmatprep.subr.bf16.mxu0 0
    %2126 = vmatpush1.bf16.msra.mxu0 %v1506
    %2127 = vmatprep.subr.bf16.mxu0 0
    %2128 = vmatpush1.bf16.msra.mxu0 %v1507
    %2129 = vmatprep.subr.bf16.mxu0 0
    %2130 = vmatpush1.bf16.msra.mxu0 %v1508
    %2131 = vmatprep.subr.bf16.mxu0 0
    %2132 = vmatpush1.bf16.msra.mxu0 %v1509
    %2133 = vmatprep.subr.bf16.mxu0 0
    %2134 = vmatpush1.bf16.msra.mxu0 %v1510
    %2135 = vmatprep.subr.bf16.mxu0 0
    %2136 = vmatpush1.bf16.msra.mxu0 %v1511
    %2137 = vmatprep.mubr.bf16.mxu0 %v2098
    %2138 = vmatmul.mubr.bf16.gmra.mrb[0].mxu0 %v2097
    %v2139 = vpop.f32.mrb[0].mxu0
    %v2140 = vadd.f32 %v1418, %v2139
    %v2141 = vpop.f32.mrb[0].mxu0
    %v2142 = vpop.f32.mrb[0].mxu0
    %v2143 = vpop.f32.mrb[0].mxu0
    %2144 = vdwg.mxu0
    %2145 = vmatprep.subr.bf16.mxu0 0
    %2146 = vmatpush1.bf16.msra.mxu0 %v1512
    %2147 = vmatprep.subr.bf16.mxu0 0
    %2148 = vmatpush1.bf16.msra.mxu0 %v1513
    %2149 = vmatprep.subr.bf16.mxu0 0
    %2150 = vmatpush1.bf16.msra.mxu0 %v1539
    %2151 = vmatprep.subr.bf16.mxu0 0
    %2152 = vmatpush1.bf16.msra.mxu0 0
    %2153 = vmatprep.subr.bf16.mxu0 0
    %2154 = vmatpush1.bf16.msra.mxu0 0
    %2155 = vmatprep.subr.bf16.mxu0 0
    %2156 = vmatpush1.bf16.msra.mxu0 0
    %2157 = vmatprep.subr.bf16.mxu0 0
    %2158 = vmatpush1.bf16.msra.mxu0 0
    %2159 = vmatprep.subr.bf16.mxu0 0
    %2160 = vmatpush1.bf16.msra.mxu0 0
    %2161 = vmatprep.subr.bf16.mxu0 0
    %2162 = vmatpush1.bf16.msra.mxu0 0
    %2163 = vmatprep.subr.bf16.mxu0 0
    %2164 = vmatpush1.bf16.msra.mxu0 0
    %2165 = vmatprep.subr.bf16.mxu0 0
    %2166 = vmatpush1.bf16.msra.mxu0 0
    %2167 = vmatprep.subr.bf16.mxu0 0
    %2168 = vmatpush1.bf16.msra.mxu0 0
    %2169 = vmatprep.subr.bf16.mxu0 0
    %2170 = vmatpush1.bf16.msra.mxu0 0
    %2171 = vmatprep.subr.bf16.mxu0 0
    %2172 = vmatpush1.bf16.msra.mxu0 0
    %2173 = vmatprep.subr.bf16.mxu0 0
    %2174 = vmatpush1.bf16.msra.mxu0 0
    %2175 = vmatprep.subr.bf16.mxu0 0
    %2176 = vmatpush1.bf16.msra.mxu0 0
    %2177 = vmatprep.mubr.bf16.mxu0 0
    %2178 = vmatmul.mubr.bf16.gmra.mrb[0].mxu0 %v2103
    %v2179 = vpop.f32.mrb[0].mxu0
    %v2180 = vadd.f32 %v2140, %v2179
    %v2181 = vpop.f32.mrb[0].mxu0
    %v2182 = vpop.f32.mrb[0].mxu0
    %v2183 = vpop.f32.mrb[0].mxu0
    %2184 = vdwg.mxu0
    %2186 = vrot.lane.b32.xlu0 %v2180, 60
    %v2187 = vpop.permute.xlu0 %2186
    %vm2189 = vcmask 1048032
    %2190 = vst.msk [vmem:[#allocation4 + $0x20] sm:$0xff] %vm2189, %v2187
    %2191 = vst.msk [vmem:[#allocation4 + $0x28] sm:$0xff] %vm167, %v2187
    %v2192 = vld [vmem:[%s6] sm:$0xff]
    %v2193 = vld [vmem:[%s6 + $0x8] sm:$0xff]
    %2196 = vrot.lane.b32.xlu0 %v2192, 32
    %v2197 = vpop.permute.xlu0 %2196
    %2198 = vrot.lane.b32.xlu0 %v2193, 32
    %v2199 = vpop.permute.xlu0 %2198
    %v2200 = vsel %vm167, %v2197, %v2199
    %vm2203 = vcmask 1047808
    %2204 = vst.msk [vmem:[#allocation4 + $0x28] sm:$0xff] %vm2203, %v2197
    %vm2205 = vcmask 441344
    %2206 = vst.msk [vmem:[#allocation4 + $0x30] sm:$0xff] %vm2205, %v2200
    %v2207 = vld [vmem:[%s7] sm:$0xff]
    %v2208 = vld [vmem:[%s7 + $0x8] sm:$0xff]
    %2211 = vrot.lane.b32.xlu0 %v2207, 54
    %v2212 = vpop.permute.xlu0 %2211
    %2213 = vrot.lane.b32.xlu0 %v2208, 54
    %v2214 = vpop.permute.xlu0 %2213
    %v2215 = vsel %vm2205, %v2212, %v2214
    %vm2218 = vcmask 1047984
    %2219 = vst.msk [vmem:[#allocation4 + $0x30] sm:$0xff] %vm2218, %v2212
    %vm2220 = vcmask 621568
    %2221 = vst.msk [vmem:[#allocation4 + $0x38] sm:$0xff] %vm2220, %v2215
    %v2222 = vld [vmem:[%s3] sm:$0xff]
    %2224 = vrot.lane.b32.xlu0 %v2222, 76
    %v2225 = vpop.permute.xlu0 %2224
    %vm2227 = vcmask 1048160
    %2228 = vst.msk [vmem:[#allocation4 + $0x38] sm:$0xff] %vm2227, %v2225
    %vm2229 = vcmask 392192
    %2230 = vst.msk [vmem:[#allocation4 + $0x40] sm:$0xff] %vm2229, %v2225
    %v2231 = vld [vmem:[#allocation4] sm:$0xff]
    %v2232 = vld [vmem:[#allocation4 + $0x8] sm:$0xff]
    %v2233 = vld [vmem:[#allocation4 + $0x10] sm:$0xff]
    %v2234 = vld [vmem:[#allocation4 + $0x18] sm:$0xff]
    %v2235 = vld [vmem:[#allocation4 + $0x20] sm:$0xff]
    %v2236 = vld [vmem:[#allocation4 + $0x28] sm:$0xff]
    %v2237 = vld [vmem:[#allocation4 + $0x30] sm:$0xff]
    %v2238 = vld [vmem:[#allocation4 + $0x38] sm:$0xff]
    %v2239 = vld [vmem:[#allocation4 + $0x40] sm:$0xff]
    %v2240 = vpack.c.bf16 %v2231, %v2231
    %v2241 = vpack.c.bf16 %v2232, %v2232
    %v2242 = vpack.c.bf16 %v2233, %v2233
    %v2243 = vpack.c.bf16 %v2234, %v2234
    %v2244 = vpack.c.bf16 %v2235, %v2235
    %v2245 = vpack.c.bf16 %v2236, %v2236
    %v2246 = vpack.c.bf16 %v2237, %v2237
    %v2247 = vpack.c.bf16 %v2238, %v2238
    %v2248 = vpack.c.bf16 %v2239, %v2239
    %v2249 = vld [vmem:[%s15] sm:$0xf]
    %v2250 = vld [vmem:[%s15 + $0x4] sm:$0xf]
    %v2251 = vld [vmem:[%s15 + $0x8] sm:$0xf]
    %v2252 = vld [vmem:[%s15 + $0xc] sm:$0xf]
    %v2253 = vld [vmem:[%s15 + $0x10] sm:$0xf]
    %v2254 = vld [vmem:[%s15 + $0x14] sm:$0xf]
    %v2255 = vld [vmem:[%s15 + $0x18] sm:$0xf]
    %v2256 = vld [vmem:[%s15 + $0x1c] sm:$0xf]
    %v2257 = vld [vmem:[%s15 + $0x20] sm:$0xf]
    %v2258 = vld [vmem:[%s15 + $0x24] sm:$0xf]
    %v2259 = vld [vmem:[%s15 + $0x28] sm:$0xf]
    %v2260 = vld [vmem:[%s15 + $0x2c] sm:$0xf]
    %v2261 = vld [vmem:[%s15 + $0x30] sm:$0xf]
    %v2262 = vld [vmem:[%s15 + $0x34] sm:$0xf]
    %v2263 = vld [vmem:[%s15 + $0x38] sm:$0xf]
    %v2264 = vld [vmem:[%s15 + $0x3c] sm:$0xf]
    %v2265 = vld [vmem:[%s15 + $0x40] sm:$0xf]
    %v2266 = vld [vmem:[%s15 + $0x44] sm:$0xf]
    %v2267 = vld [vmem:[%s15 + $0x48] sm:$0xf]
    %v2268 = vld [vmem:[%s15 + $0x4c] sm:$0xf]
    %v2269 = vld [vmem:[%s15 + $0x50] sm:$0xf]
    %v2270 = vld [vmem:[%s15 + $0x54] sm:$0xf]
    %v2271 = vld [vmem:[%s15 + $0x58] sm:$0xf]
    %v2272 = vld [vmem:[%s15 + $0x5c] sm:$0xf]
    %v2273 = vld [vmem:[%s15 + $0x60] sm:$0xf]
    %v2274 = vld [vmem:[%s15 + $0x64] sm:$0xf]
    %v2275 = vld [vmem:[%s15 + $0x68] sm:$0xf]
    %v2276 = vld [vmem:[%s15 + $0x6c] sm:$0xf]
    %v2277 = vld [vmem:[%s15 + $0x70] sm:$0xf]
    %v2278 = vld [vmem:[%s15 + $0x74] sm:$0xf]
    %v2279 = vld [vmem:[%s15 + $0x78] sm:$0xf]
    %v2280 = vld [vmem:[%s15 + $0x7c] sm:$0xf]
    %v2281 = vld [vmem:[%s15 + $0x80] sm:$0xf]
    %v2282 = vld [vmem:[%s15 + $0x84] sm:$0xf]
    %v2283 = vld [vmem:[%s15 + $0x88] sm:$0xf]
    %v2284 = vld [vmem:[%s15 + $0x8c] sm:$0xf]
    %v2285 = vld [vmem:[%s15 + $0x90] sm:$0xf]
    %v2286 = vld [vmem:[%s15 + $0x94] sm:$0xf]
    %v2287 = vld [vmem:[%s15 + $0x98] sm:$0xf]
    %v2288 = vld [vmem:[%s15 + $0x9c] sm:$0xf]
    %v2289 = vld [vmem:[%s15 + $0xa0] sm:$0xf]
    %v2290 = vld [vmem:[%s15 + $0xa4] sm:$0xf]
    %v2291 = vld [vmem:[%s15 + $0xa8] sm:$0xf]
    %v2292 = vld [vmem:[%s15 + $0xac] sm:$0xf]
    %v2293 = vld [vmem:[%s15 + $0xb0] sm:$0xf]
    %v2294 = vld [vmem:[%s15 + $0xb4] sm:$0xf]
    %v2295 = vld [vmem:[%s15 + $0xb8] sm:$0xf]
    %v2296 = vld [vmem:[%s15 + $0xbc] sm:$0xf]
    %v2297 = vld [vmem:[%s15 + $0xc0] sm:$0xf]
    %v2298 = vld [vmem:[%s15 + $0xc4] sm:$0xf]
    %v2299 = vld [vmem:[%s15 + $0xc8] sm:$0xf]
    %v2300 = vld [vmem:[%s15 + $0xcc] sm:$0xf]
    %v2301 = vld [vmem:[%s15 + $0xd0] sm:$0xf]
    %v2302 = vld [vmem:[%s15 + $0xd4] sm:$0xf]
    %v2303 = vld [vmem:[%s15 + $0xd8] sm:$0xf]
    %v2304 = vld [vmem:[%s15 + $0xdc] sm:$0xf]
    %v2305 = vld [vmem:[%s15 + $0xe0] sm:$0xf]
    %v2306 = vld [vmem:[%s15 + $0xe4] sm:$0xf]
    %v2307 = vld [vmem:[%s15 + $0xe8] sm:$0xf]
    %v2308 = vld [vmem:[%s15 + $0xec] sm:$0xf]
    %v2309 = vld [vmem:[%s15 + $0xf0] sm:$0xf]
    %v2310 = vld [vmem:[%s15 + $0xf4] sm:$0xf]
    %v2311 = vld [vmem:[%s15 + $0xf8] sm:$0xf]
    %v2312 = vld [vmem:[%s15 + $0xfc] sm:$0xf]
    %v2313 = vld [vmem:[%s15 + $0x100] sm:$0xf]
    %v2314 = vld [vmem:[%s15 + $0x104] sm:$0xf]
    %v2315 = vld [vmem:[%s15 + $0x108] sm:$0xf]
    %v2316 = vld [vmem:[%s15 + $0x10c] sm:$0xf]
    %v2317 = vld [vmem:[%s15 + $0x110] sm:$0xf]
    %v2318 = vld [vmem:[%s15 + $0x114] sm:$0xf]
    %v2319 = vld [vmem:[%s15 + $0x118] sm:$0xf]
    %v2320 = vld [vmem:[%s15 + $0x11c] sm:$0xf]
    %v2321 = vld [vmem:[%s15 + $0x120] sm:$0xf]
    %v2322 = vld [vmem:[%s15 + $0x124] sm:$0xf]
    %v2323 = vld [vmem:[%s15 + $0x128] sm:$0xf]
    %v2324 = vld [vmem:[%s15 + $0x12c] sm:$0xf]
    %v2325 = vld [vmem:[%s15 + $0x130] sm:$0xf]
    %v2326 = vld [vmem:[%s15 + $0x134] sm:$0xf]
    %v2327 = vld [vmem:[%s15 + $0x138] sm:$0xf]
    %v2328 = vld [vmem:[%s15 + $0x13c] sm:$0xf]
    %v2329 = vld [vmem:[%s15 + $0x140] sm:$0xf]
    %v2330 = vld [vmem:[%s15 + $0x144] sm:$0xf]
    %v2331 = vld [vmem:[%s15 + $0x148] sm:$0xf]
    %v2332 = vld [vmem:[%s15 + $0x14c] sm:$0xf]
    %v2333 = vld [vmem:[%s15 + $0x150] sm:$0xf]
    %v2334 = vld [vmem:[%s15 + $0x154] sm:$0xf]
    %v2335 = vld [vmem:[%s15 + $0x158] sm:$0xf]
    %v2336 = vld [vmem:[%s15 + $0x15c] sm:$0xf]
    %v2337 = vld [vmem:[%s15 + $0x160] sm:$0xf]
    %v2338 = vld [vmem:[%s15 + $0x164] sm:$0xf]
    %v2339 = vld [vmem:[%s15 + $0x168] sm:$0xf]
    %v2340 = vld [vmem:[%s15 + $0x16c] sm:$0xf]
    %v2341 = vld [vmem:[%s15 + $0x170] sm:$0xf]
    %v2342 = vld [vmem:[%s15 + $0x174] sm:$0xf]
    %v2343 = vld [vmem:[%s15 + $0x178] sm:$0xf]
    %v2344 = vld [vmem:[%s15 + $0x17c] sm:$0xf]
    %v2345 = vld [vmem:[%s15 + $0x180] sm:$0xf]
    %v2346 = vld [vmem:[%s15 + $0x184] sm:$0xf]
    %v2347 = vld [vmem:[%s15 + $0x188] sm:$0xf]
    %v2348 = vld [vmem:[%s15 + $0x18c] sm:$0xf]
    %v2349 = vld [vmem:[%s15 + $0x190] sm:$0xf]
    %v2350 = vld [vmem:[%s15 + $0x194] sm:$0xf]
    %v2351 = vld [vmem:[%s15 + $0x198] sm:$0xf]
    %v2352 = vld [vmem:[%s15 + $0x19c] sm:$0xf]
    %v2353 = vld [vmem:[%s15 + $0x1a0] sm:$0xf]
    %v2354 = vld [vmem:[%s15 + $0x1a4] sm:$0xf]
    %v2355 = vld [vmem:[%s15 + $0x1a8] sm:$0xf]
    %v2356 = vld [vmem:[%s15 + $0x1ac] sm:$0xf]
    %v2357 = vld [vmem:[%s15 + $0x1b0] sm:$0xf]
    %v2358 = vld [vmem:[%s15 + $0x1b4] sm:$0xf]
    %v2359 = vld [vmem:[%s15 + $0x1b8] sm:$0xf]
    %v2360 = vld [vmem:[%s15 + $0x1bc] sm:$0xf]
    %v2361 = vld [vmem:[%s15 + $0x1c0] sm:$0xf]
    %v2362 = vld [vmem:[%s15 + $0x1c4] sm:$0xf]
    %v2363 = vld [vmem:[%s15 + $0x1c8] sm:$0xf]
    %v2364 = vld [vmem:[%s15 + $0x1cc] sm:$0xf]
    %v2365 = vld [vmem:[%s15 + $0x1d0] sm:$0xf]
    %v2366 = vld [vmem:[%s15 + $0x1d4] sm:$0xf]
    %v2367 = vld [vmem:[%s15 + $0x1d8] sm:$0xf]
    %v2368 = vld [vmem:[%s15 + $0x1dc] sm:$0xf]
    %v2369 = vld [vmem:[%s15 + $0x1e0] sm:$0xf]
    %v2370 = vld [vmem:[%s15 + $0x1e4] sm:$0xf]
    %v2371 = vld [vmem:[%s15 + $0x1e8] sm:$0xf]
    %v2372 = vld [vmem:[%s15 + $0x1ec] sm:$0xf]
    %v2373 = vld [vmem:[%s15 + $0x1f0] sm:$0xf]
    %v2374 = vld [vmem:[%s15 + $0x1f4] sm:$0xf]
    %v2375 = vld [vmem:[%s15 + $0x1f8] sm:$0xf]
    %v2376 = vld [vmem:[%s15 + $0x1fc] sm:$0xf]
    %v2377 = vld [vmem:[%s15 + $0x200] sm:$0xf]
    %v2378 = vld [vmem:[%s15 + $0x204] sm:$0xf]
    %v2379 = vld [vmem:[%s15 + $0x208] sm:$0xf]
    %v2380 = vld [vmem:[%s15 + $0x20c] sm:$0xf]
    %v2381 = vld [vmem:[%s15 + $0x210] sm:$0xf]
    %v2382 = vld [vmem:[%s15 + $0x214] sm:$0xf]
    %v2383 = vld [vmem:[%s16] sm:$0x1]
    %v2385 = vlaneseq
    %v2386 = vshrl.u32 %v2385, 7
    %v2387 = vsub.s32 0, %v2386
    %v2388 = vrot.slane %v2383, %v2387
    %v2524 = vunpack.c.l.b16 %v2249
    %v2525 = vunpack.c.l.b16 %v2250
    %v2526 = vunpack.c.l.b16 %v2251
    %v2527 = vunpack.c.l.b16 %v2252
    %v2528 = vunpack.c.l.b16 %v2253
    %v2529 = vunpack.c.l.b16 %v2254
    %v2530 = vunpack.c.l.b16 %v2255
    %v2531 = vunpack.c.l.b16 %v2256
    %v2532 = vunpack.c.l.b16 %v2257
    %v2533 = vunpack.c.l.b16 %v2258
    %v2534 = vunpack.c.l.b16 %v2259
    %v2535 = vunpack.c.l.b16 %v2260
    %v2536 = vunpack.c.l.b16 %v2261
    %v2537 = vunpack.c.l.b16 %v2262
    %v2538 = vunpack.c.l.b16 %v2263
    %v2539 = vunpack.c.l.b16 %v2264
    %v2540 = vunpack.c.l.b16 %v2265
    %v2541 = vunpack.c.l.b16 %v2266
    %v2542 = vunpack.c.l.b16 %v2267
    %v2543 = vunpack.c.l.b16 %v2268
    %v2544 = vunpack.c.l.b16 %v2269
    %v2545 = vunpack.c.l.b16 %v2270
    %v2546 = vunpack.c.l.b16 %v2271
    %v2547 = vunpack.c.l.b16 %v2272
    %v2548 = vunpack.c.l.b16 %v2273
    %v2549 = vunpack.c.l.b16 %v2274
    %v2550 = vunpack.c.l.b16 %v2275
    %v2551 = vunpack.c.l.b16 %v2276
    %v2552 = vunpack.c.l.b16 %v2277
    %v2553 = vunpack.c.l.b16 %v2278
    %v2554 = vunpack.c.l.b16 %v2279
    %v2555 = vunpack.c.l.b16 %v2280
    %v2556 = vunpack.c.l.b16 %v2281
    %v2557 = vunpack.c.l.b16 %v2282
    %v2558 = vunpack.c.l.b16 %v2283
    %v2559 = vunpack.c.l.b16 %v2284
    %v2560 = vunpack.c.l.b16 %v2285
    %v2561 = vunpack.c.l.b16 %v2286
    %v2562 = vunpack.c.l.b16 %v2287
    %v2563 = vunpack.c.l.b16 %v2288
    %v2564 = vunpack.c.l.b16 %v2289
    %v2565 = vunpack.c.l.b16 %v2290
    %v2566 = vunpack.c.l.b16 %v2291
    %v2567 = vunpack.c.l.b16 %v2292
    %v2568 = vunpack.c.l.b16 %v2293
    %v2569 = vunpack.c.l.b16 %v2294
    %v2570 = vunpack.c.l.b16 %v2295
    %v2571 = vunpack.c.l.b16 %v2296
    %v2572 = vunpack.c.l.b16 %v2297
    %v2573 = vunpack.c.l.b16 %v2298
    %v2574 = vunpack.c.l.b16 %v2299
    %v2575 = vunpack.c.l.b16 %v2300
    %v2576 = vunpack.c.l.b16 %v2301
    %v2577 = vunpack.c.l.b16 %v2302
    %v2578 = vunpack.c.l.b16 %v2303
    %v2579 = vunpack.c.l.b16 %v2304
    %v2580 = vunpack.c.l.b16 %v2305
    %v2581 = vunpack.c.l.b16 %v2306
    %v2582 = vunpack.c.l.b16 %v2307
    %v2583 = vunpack.c.l.b16 %v2308
    %v2584 = vunpack.c.l.b16 %v2309
    %v2585 = vunpack.c.l.b16 %v2310
    %v2586 = vunpack.c.l.b16 %v2311
    %v2587 = vunpack.c.l.b16 %v2312
    %v2588 = vunpack.c.l.b16 %v2313
    %v2589 = vunpack.c.l.b16 %v2314
    %v2590 = vunpack.c.l.b16 %v2315
    %v2591 = vunpack.c.l.b16 %v2316
    %v2592 = vunpack.c.l.b16 %v2317
    %v2593 = vunpack.c.l.b16 %v2318
    %v2594 = vunpack.c.l.b16 %v2319
    %v2595 = vunpack.c.l.b16 %v2320
    %v2596 = vunpack.c.l.b16 %v2321
    %v2597 = vunpack.c.l.b16 %v2322
    %v2598 = vunpack.c.l.b16 %v2323
    %v2599 = vunpack.c.l.b16 %v2324
    %v2600 = vunpack.c.l.b16 %v2325
    %v2601 = vunpack.c.l.b16 %v2326
    %v2602 = vunpack.c.l.b16 %v2327
    %v2603 = vunpack.c.l.b16 %v2328
    %v2604 = vunpack.c.l.b16 %v2329
    %v2605 = vunpack.c.l.b16 %v2330
    %v2606 = vunpack.c.l.b16 %v2331
    %v2607 = vunpack.c.l.b16 %v2332
    %v2608 = vunpack.c.l.b16 %v2333
    %v2609 = vunpack.c.l.b16 %v2334
    %v2610 = vunpack.c.l.b16 %v2335
    %v2611 = vunpack.c.l.b16 %v2336
    %v2612 = vunpack.c.l.b16 %v2337
    %v2613 = vunpack.c.l.b16 %v2338
    %v2614 = vunpack.c.l.b16 %v2339
    %v2615 = vunpack.c.l.b16 %v2340
    %v2616 = vunpack.c.l.b16 %v2341
    %v2617 = vunpack.c.l.b16 %v2342
    %v2618 = vunpack.c.l.b16 %v2343
    %v2619 = vunpack.c.l.b16 %v2344
    %v2620 = vunpack.c.l.b16 %v2345
    %v2621 = vunpack.c.l.b16 %v2346
    %v2622 = vunpack.c.l.b16 %v2347
    %v2623 = vunpack.c.l.b16 %v2348
    %v2624 = vunpack.c.l.b16 %v2349
    %v2625 = vunpack.c.l.b16 %v2350
    %v2626 = vunpack.c.l.b16 %v2351
    %v2627 = vunpack.c.l.b16 %v2352
    %v2628 = vunpack.c.l.b16 %v2353
    %v2629 = vunpack.c.l.b16 %v2354
    %v2630 = vunpack.c.l.b16 %v2355
    %v2631 = vunpack.c.l.b16 %v2356
    %v2632 = vunpack.c.l.b16 %v2357
    %v2633 = vunpack.c.l.b16 %v2358
    %v2634 = vunpack.c.l.b16 %v2359
    %v2635 = vunpack.c.l.b16 %v2360
    %v2636 = vunpack.c.l.b16 %v2361
    %v2637 = vunpack.c.l.b16 %v2362
    %v2638 = vunpack.c.l.b16 %v2363
    %v2639 = vunpack.c.l.b16 %v2364
    %v2640 = vunpack.c.l.b16 %v2365
    %v2641 = vunpack.c.l.b16 %v2366
    %v2642 = vunpack.c.l.b16 %v2367
    %v2643 = vunpack.c.l.b16 %v2368
    %v2644 = vunpack.c.l.b16 %v2369
    %v2645 = vunpack.c.l.b16 %v2370
    %v2646 = vunpack.c.l.b16 %v2371
    %v2647 = vunpack.c.l.b16 %v2372
    %v2648 = vunpack.c.l.b16 %v2373
    %v2649 = vunpack.c.l.b16 %v2374
    %v2650 = vunpack.c.l.b16 %v2375
    %v2651 = vunpack.c.l.b16 %v2376
    %v2652 = vunpack.c.l.b16 %v2377
    %v2653 = vunpack.c.l.b16 %v2378
    %v2654 = vunpack.c.l.b16 %v2379
    %v2655 = vunpack.c.l.b16 %v2380
    %v2656 = vunpack.c.l.b16 %v2381
    %v2657 = vunpack.c.l.b16 %v2382
    %v2658 = vpack.c.b16 %v2525, %v2524
    %v2659 = vpack.c.b16 %v2527, %v2526
    %v2660 = vpack.c.b16 %v2529, %v2528
    %v2661 = vpack.c.b16 %v2531, %v2530
    %v2662 = vpack.c.b16 %v2533, %v2532
    %v2663 = vpack.c.b16 %v2535, %v2534
    %v2664 = vpack.c.b16 %v2537, %v2536
    %v2665 = vpack.c.b16 %v2539, %v2538
    %v2666 = vpack.c.b16 %v2541, %v2540
    %v2667 = vpack.c.b16 %v2543, %v2542
    %v2668 = vpack.c.b16 %v2545, %v2544
    %v2669 = vpack.c.b16 %v2547, %v2546
    %v2670 = vpack.c.b16 %v2549, %v2548
    %v2671 = vpack.c.b16 %v2551, %v2550
    %v2672 = vpack.c.b16 %v2553, %v2552
    %v2673 = vpack.c.b16 %v2555, %v2554
    %v2674 = vpack.c.b16 %v2557, %v2556
    %v2675 = vpack.c.b16 %v2559, %v2558
    %v2676 = vpack.c.b16 %v2561, %v2560
    %v2677 = vpack.c.b16 %v2563, %v2562
    %v2678 = vpack.c.b16 %v2565, %v2564
    %v2679 = vpack.c.b16 %v2567, %v2566
    %v2680 = vpack.c.b16 %v2569, %v2568
    %v2681 = vpack.c.b16 %v2571, %v2570
    %v2682 = vpack.c.b16 %v2573, %v2572
    %v2683 = vpack.c.b16 %v2575, %v2574
    %v2684 = vpack.c.b16 %v2577, %v2576
    %v2685 = vpack.c.b16 %v2579, %v2578
    %v2686 = vpack.c.b16 %v2581, %v2580
    %v2687 = vpack.c.b16 %v2583, %v2582
    %v2688 = vpack.c.b16 %v2585, %v2584
    %v2689 = vpack.c.b16 %v2587, %v2586
    %v2690 = vpack.c.b16 %v2589, %v2588
    %v2691 = vpack.c.b16 %v2591, %v2590
    %v2692 = vpack.c.b16 %v2593, %v2592
    %v2693 = vpack.c.b16 %v2595, %v2594
    %v2694 = vpack.c.b16 %v2597, %v2596
    %v2695 = vpack.c.b16 %v2599, %v2598
    %v2696 = vpack.c.b16 %v2601, %v2600
    %v2697 = vpack.c.b16 %v2603, %v2602
    %v2698 = vpack.c.b16 %v2605, %v2604
    %v2699 = vpack.c.b16 %v2607, %v2606
    %v2700 = vpack.c.b16 %v2609, %v2608
    %v2701 = vpack.c.b16 %v2611, %v2610
    %v2702 = vpack.c.b16 %v2613, %v2612
    %v2703 = vpack.c.b16 %v2615, %v2614
    %v2704 = vpack.c.b16 %v2617, %v2616
    %v2705 = vpack.c.b16 %v2619, %v2618
    %v2706 = vpack.c.b16 %v2621, %v2620
    %v2707 = vpack.c.b16 %v2623, %v2622
    %v2708 = vpack.c.b16 %v2625, %v2624
    %v2709 = vpack.c.b16 %v2627, %v2626
    %v2710 = vpack.c.b16 %v2629, %v2628
    %v2711 = vpack.c.b16 %v2631, %v2630
    %v2712 = vpack.c.b16 %v2633, %v2632
    %v2713 = vpack.c.b16 %v2635, %v2634
    %v2714 = vpack.c.b16 %v2637, %v2636
    %v2715 = vpack.c.b16 %v2639, %v2638
    %v2716 = vpack.c.b16 %v2641, %v2640
    %v2717 = vpack.c.b16 %v2643, %v2642
    %v2718 = vpack.c.b16 %v2645, %v2644
    %v2719 = vpack.c.b16 %v2647, %v2646
    %v2720 = vpack.c.b16 %v2649, %v2648
    %v2721 = vpack.c.b16 %v2651, %v2650
    %v2722 = vpack.c.b16 %v2653, %v2652
    %v2723 = vpack.c.b16 %v2655, %v2654
    %v2724 = vpack.c.b16 %v2657, %v2656
    %v2793 = vsel %vm2229, %v2248, 0
    %2795 = vmatprep.subr.bf16.mxu0 0
    %2796 = vmatpush1.bf16.msra.mxu0 %v2658
    %2797 = vmatprep.subr.bf16.mxu0 0
    %2798 = vmatpush1.bf16.msra.mxu0 %v2659
    %2799 = vmatprep.subr.bf16.mxu0 0
    %2800 = vmatpush1.bf16.msra.mxu0 %v2660
    %2801 = vmatprep.subr.bf16.mxu0 0
    %2802 = vmatpush1.bf16.msra.mxu0 %v2661
    %2803 = vmatprep.subr.bf16.mxu0 0
    %2804 = vmatpush1.bf16.msra.mxu0 %v2662
    %2805 = vmatprep.subr.bf16.mxu0 0
    %2806 = vmatpush1.bf16.msra.mxu0 %v2663
    %2807 = vmatprep.subr.bf16.mxu0 0
    %2808 = vmatpush1.bf16.msra.mxu0 %v2664
    %2809 = vmatprep.subr.bf16.mxu0 0
    %2810 = vmatpush1.bf16.msra.mxu0 %v2665
    %2811 = vmatprep.subr.bf16.mxu0 0
    %2812 = vmatpush1.bf16.msra.mxu0 %v2666
    %2813 = vmatprep.subr.bf16.mxu0 0
    %2814 = vmatpush1.bf16.msra.mxu0 %v2667
    %2815 = vmatprep.subr.bf16.mxu0 0
    %2816 = vmatpush1.bf16.msra.mxu0 %v2668
    %2817 = vmatprep.subr.bf16.mxu0 0
    %2818 = vmatpush1.bf16.msra.mxu0 %v2669
    %2819 = vmatprep.subr.bf16.mxu0 0
    %2820 = vmatpush1.bf16.msra.mxu0 %v2670
    %2821 = vmatprep.subr.bf16.mxu0 0
    %2822 = vmatpush1.bf16.msra.mxu0 %v2671
    %2823 = vmatprep.subr.bf16.mxu0 0
    %2824 = vmatpush1.bf16.msra.mxu0 %v2672
    %2825 = vmatprep.subr.bf16.mxu0 0
    %2826 = vmatpush1.bf16.msra.mxu0 %v2673
    %2827 = vmatprep.mubr.bf16.mxu0 %v2241
    %2828 = vmatmul.mubr.bf16.gmra.mrb[0].mxu0 %v2240
    %v2829 = vpop.f32.mrb[0].mxu0
    %v2830 = vadd.f32 %v2388, %v2829
    %v2831 = vpop.f32.mrb[0].mxu0
    %v2832 = vpop.f32.mrb[0].mxu0
    %v2833 = vpop.f32.mrb[0].mxu0
    %2834 = vdwg.mxu0
    %2835 = vmatprep.subr.bf16.mxu0 0
    %2836 = vmatpush1.bf16.msra.mxu0 %v2674
    %2837 = vmatprep.subr.bf16.mxu0 0
    %2838 = vmatpush1.bf16.msra.mxu0 %v2675
    %2839 = vmatprep.subr.bf16.mxu0 0
    %2840 = vmatpush1.bf16.msra.mxu0 %v2676
    %2841 = vmatprep.subr.bf16.mxu0 0
    %2842 = vmatpush1.bf16.msra.mxu0 %v2677
    %2843 = vmatprep.subr.bf16.mxu0 0
    %2844 = vmatpush1.bf16.msra.mxu0 %v2678
    %2845 = vmatprep.subr.bf16.mxu0 0
    %2846 = vmatpush1.bf16.msra.mxu0 %v2679
    %2847 = vmatprep.subr.bf16.mxu0 0
    %2848 = vmatpush1.bf16.msra.mxu0 %v2680
    %2849 = vmatprep.subr.bf16.mxu0 0
    %2850 = vmatpush1.bf16.msra.mxu0 %v2681
    %2851 = vmatprep.subr.bf16.mxu0 0
    %2852 = vmatpush1.bf16.msra.mxu0 %v2682
    %2853 = vmatprep.subr.bf16.mxu0 0
    %2854 = vmatpush1.bf16.msra.mxu0 %v2683
    %2855 = vmatprep.subr.bf16.mxu0 0
    %2856 = vmatpush1.bf16.msra.mxu0 %v2684
    %2857 = vmatprep.subr.bf16.mxu0 0
    %2858 = vmatpush1.bf16.msra.mxu0 %v2685
    %2859 = vmatprep.subr.bf16.mxu0 0
    %2860 = vmatpush1.bf16.msra.mxu0 %v2686
    %2861 = vmatprep.subr.bf16.mxu0 0
    %2862 = vmatpush1.bf16.msra.mxu0 %v2687
    %2863 = vmatprep.subr.bf16.mxu0 0
    %2864 = vmatpush1.bf16.msra.mxu0 %v2688
    %2865 = vmatprep.subr.bf16.mxu0 0
    %2866 = vmatpush1.bf16.msra.mxu0 %v2689
    %2867 = vmatprep.mubr.bf16.mxu0 %v2243
    %2868 = vmatmul.mubr.bf16.gmra.mrb[0].mxu0 %v2242
    %v2869 = vpop.f32.mrb[0].mxu0
    %v2870 = vadd.f32 %v2830, %v2869
    %v2871 = vpop.f32.mrb[0].mxu0
    %v2872 = vpop.f32.mrb[0].mxu0
    %v2873 = vpop.f32.mrb[0].mxu0
    %2874 = vdwg.mxu0
    %2875 = vmatprep.subr.bf16.mxu0 0
    %2876 = vmatpush1.bf16.msra.mxu0 %v2690
    %2877 = vmatprep.subr.bf16.mxu0 0
    %2878 = vmatpush1.bf16.msra.mxu0 %v2691
    %2879 = vmatprep.subr.bf16.mxu0 0
    %2880 = vmatpush1.bf16.msra.mxu0 %v2692
    %2881 = vmatprep.subr.bf16.mxu0 0
    %2882 = vmatpush1.bf16.msra.mxu0 %v2693
    %2883 = vmatprep.subr.bf16.mxu0 0
    %2884 = vmatpush1.bf16.msra.mxu0 %v2694
    %2885 = vmatprep.subr.bf16.mxu0 0
    %2886 = vmatpush1.bf16.msra.mxu0 %v2695
    %2887 = vmatprep.subr.bf16.mxu0 0
    %2888 = vmatpush1.bf16.msra.mxu0 %v2696
    %2889 = vmatprep.subr.bf16.mxu0 0
    %2890 = vmatpush1.bf16.msra.mxu0 %v2697
    %2891 = vmatprep.subr.bf16.mxu0 0
    %2892 = vmatpush1.bf16.msra.mxu0 %v2698
    %2893 = vmatprep.subr.bf16.mxu0 0
    %2894 = vmatpush1.bf16.msra.mxu0 %v2699
    %2895 = vmatprep.subr.bf16.mxu0 0
    %2896 = vmatpush1.bf16.msra.mxu0 %v2700
    %2897 = vmatprep.subr.bf16.mxu0 0
    %2898 = vmatpush1.bf16.msra.mxu0 %v2701
    %2899 = vmatprep.subr.bf16.mxu0 0
    %2900 = vmatpush1.bf16.msra.mxu0 %v2702
    %2901 = vmatprep.subr.bf16.mxu0 0
    %2902 = vmatpush1.bf16.msra.mxu0 %v2703
    %2903 = vmatprep.subr.bf16.mxu0 0
    %2904 = vmatpush1.bf16.msra.mxu0 %v2704
    %2905 = vmatprep.subr.bf16.mxu0 0
    %2906 = vmatpush1.bf16.msra.mxu0 %v2705
    %2907 = vmatprep.mubr.bf16.mxu0 %v2245
    %2908 = vmatmul.mubr.bf16.gmra.mrb[0].mxu0 %v2244
    %v2909 = vpop.f32.mrb[0].mxu0
    %v2910 = vadd.f32 %v2870, %v2909
    %v2911 = vpop.f32.mrb[0].mxu0
    %v2912 = vpop.f32.mrb[0].mxu0
    %v2913 = vpop.f32.mrb[0].mxu0
    %2914 = vdwg.mxu0
    %2915 = vmatprep.subr.bf16.mxu0 0
    %2916 = vmatpush1.bf16.msra.mxu0 %v2706
    %2917 = vmatprep.subr.bf16.mxu0 0
    %2918 = vmatpush1.bf16.msra.mxu0 %v2707
    %2919 = vmatprep.subr.bf16.mxu0 0
    %2920 = vmatpush1.bf16.msra.mxu0 %v2708
    %2921 = vmatprep.subr.bf16.mxu0 0
    %2922 = vmatpush1.bf16.msra.mxu0 %v2709
    %2923 = vmatprep.subr.bf16.mxu0 0
    %2924 = vmatpush1.bf16.msra.mxu0 %v2710
    %2925 = vmatprep.subr.bf16.mxu0 0
    %2926 = vmatpush1.bf16.msra.mxu0 %v2711
    %2927 = vmatprep.subr.bf16.mxu0 0
    %2928 = vmatpush1.bf16.msra.mxu0 %v2712
    %2929 = vmatprep.subr.bf16.mxu0 0
    %2930 = vmatpush1.bf16.msra.mxu0 %v2713
    %2931 = vmatprep.subr.bf16.mxu0 0
    %2932 = vmatpush1.bf16.msra.mxu0 %v2714
    %2933 = vmatprep.subr.bf16.mxu0 0
    %2934 = vmatpush1.bf16.msra.mxu0 %v2715
    %2935 = vmatprep.subr.bf16.mxu0 0
    %2936 = vmatpush1.bf16.msra.mxu0 %v2716
    %2937 = vmatprep.subr.bf16.mxu0 0
    %2938 = vmatpush1.bf16.msra.mxu0 %v2717
    %2939 = vmatprep.subr.bf16.mxu0 0
    %2940 = vmatpush1.bf16.msra.mxu0 %v2718
    %2941 = vmatprep.subr.bf16.mxu0 0
    %2942 = vmatpush1.bf16.msra.mxu0 %v2719
    %2943 = vmatprep.subr.bf16.mxu0 0
    %2944 = vmatpush1.bf16.msra.mxu0 %v2720
    %2945 = vmatprep.subr.bf16.mxu0 0
    %2946 = vmatpush1.bf16.msra.mxu0 %v2721
    %2947 = vmatprep.mubr.bf16.mxu0 %v2247
    %2948 = vmatmul.mubr.bf16.gmra.mrb[0].mxu0 %v2246
    %v2949 = vpop.f32.mrb[0].mxu0
    %v2950 = vadd.f32 %v2910, %v2949
    %v2951 = vpop.f32.mrb[0].mxu0
    %v2952 = vpop.f32.mrb[0].mxu0
    %v2953 = vpop.f32.mrb[0].mxu0
    %2954 = vdwg.mxu0
    %2955 = vmatprep.subr.bf16.mxu0 0
    %2956 = vmatpush1.bf16.msra.mxu0 %v2722
    %2957 = vmatprep.subr.bf16.mxu0 0
    %2958 = vmatpush1.bf16.msra.mxu0 %v2723
    %2959 = vmatprep.subr.bf16.mxu0 0
    %2960 = vmatpush1.bf16.msra.mxu0 %v2724
    %2961 = vmatprep.subr.bf16.mxu0 0
    %2962 = vmatpush1.bf16.msra.mxu0 0
    %2963 = vmatprep.subr.bf16.mxu0 0
    %2964 = vmatpush1.bf16.msra.mxu0 0
    %2965 = vmatprep.subr.bf16.mxu0 0
    %2966 = vmatpush1.bf16.msra.mxu0 0
    %2967 = vmatprep.subr.bf16.mxu0 0
    %2968 = vmatpush1.bf16.msra.mxu0 0
    %2969 = vmatprep.subr.bf16.mxu0 0
    %2970 = vmatpush1.bf16.msra.mxu0 0
    %2971 = vmatprep.subr.bf16.mxu0 0
    %2972 = vmatpush1.bf16.msra.mxu0 0
    %2973 = vmatprep.subr.bf16.mxu0 0
    %2974 = vmatpush1.bf16.msra.mxu0 0
    %2975 = vmatprep.subr.bf16.mxu0 0
    %2976 = vmatpush1.bf16.msra.mxu0 0
    %2977 = vmatprep.subr.bf16.mxu0 0
    %2978 = vmatpush1.bf16.msra.mxu0 0
    %2979 = vmatprep.subr.bf16.mxu0 0
    %2980 = vmatpush1.bf16.msra.mxu0 0
    %2981 = vmatprep.subr.bf16.mxu0 0
    %2982 = vmatpush1.bf16.msra.mxu0 0
    %2983 = vmatprep.subr.bf16.mxu0 0
    %2984 = vmatpush1.bf16.msra.mxu0 0
    %2985 = vmatprep.subr.bf16.mxu0 0
    %2986 = vmatpush1.bf16.msra.mxu0 0
    %2987 = vmatprep.mubr.bf16.mxu0 0
    %2988 = vmatmul.mubr.bf16.gmra.mrb[0].mxu0 %v2793
    %v2989 = vpop.f32.mrb[0].mxu0
    %v2990 = vadd.f32 %v2950, %v2989
    %v2991 = vpop.f32.mrb[0].mxu0
    %v2992 = vpop.f32.mrb[0].mxu0
    %v2993 = vpop.f32.mrb[0].mxu0
    %2994 = vdwg.mxu0
    %v2995 = vld [vmem:[%s4] sm:$0xff]
    %v2996 = vld [vmem:[%s17] sm:$0x1]
    %2998 = vset.pattern.permute.xlu0 0
    %2999 = vperm.xlu0 %2998, %v2995
    %v3000 = vpop.permute.xlu0 %2999
    %v3003 = vlaneseq
    %v3004 = vshrl.u32 %v3003, 7
    %v3005 = vsub.s32 0, %v3004
    %v3006 = vrot.slane %v2996, %v3005
    %v3008 = vmul.f32 %v3000, %v3006
    %v3009 = vadd.f32 %v2990, %v3008
    %v3010 = vld [vmem:[%s5] sm:$0xff]
    %v3011 = vld [vmem:[%s18] sm:$0x1]
    %3013 = vset.pattern.permute.xlu0 0
    %3014 = vperm.xlu0 %3013, %v3010
    %v3015 = vpop.permute.xlu0 %3014
    %v3018 = vlaneseq
    %v3019 = vshrl.u32 %v3018, 7
    %v3020 = vsub.s32 0, %v3019
    %v3021 = vrot.slane %v3011, %v3020
    %v3023 = vmul.f32 %v3015, %v3021
    %v3024 = vadd.f32 %v3009, %v3023
    %v3025 = vtanh.pop %v3024
    %v3026 = vld [vmem:[%s19] sm:$0xff]
    %v3027 = vld [vmem:[%s19 + $0x8] sm:$0xff]
    %v3028 = vld [vmem:[%s19 + $0x10] sm:$0xff]
    %v3029 = vld [vmem:[%s19 + $0x18] sm:$0xff]
    %v3031 = vsel %vm167, %v3025, 0
    %3033 = vmatprep.subr.mxu0 0.0
    %3034 = vmatpush1.msra.mxu0 %v3026
    %3035 = vmatprep.subr.mxu0 0.0
    %3036 = vmatpush1.msra.mxu0 %v3027
    %3037 = vmatprep.subr.mxu0 0.0
    %3038 = vmatpush1.msra.mxu0 %v3028
    %3039 = vmatprep.subr.mxu0 0.0
    %3040 = vmatpush1.msra.mxu0 %v3029
    %3041 = vmatprep.subr.mxu0 0.0
    %3042 = vmatpush1.msra.mxu0 0.0
    %3043 = vmatprep.subr.mxu0 0.0
    %3044 = vmatpush1.msra.mxu0 0.0
    %3045 = vmatprep.subr.mxu0 0.0
    %3046 = vmatpush1.msra.mxu0 0.0
    %3047 = vmatprep.subr.mxu0 0.0
    %3048 = vmatpush1.msra.mxu0 0.0
    %3049 = vmatprep.subr.mxu0 0.0
    %3050 = vmatpush1.msra.mxu0 0.0
    %3051 = vmatprep.subr.mxu0 0.0
    %3052 = vmatpush1.msra.mxu0 0.0
    %3053 = vmatprep.subr.mxu0 0.0
    %3054 = vmatpush1.msra.mxu0 0.0
    %3055 = vmatprep.subr.mxu0 0.0
    %3056 = vmatpush1.msra.mxu0 0.0
    %3057 = vmatprep.subr.mxu0 0.0
    %3058 = vmatpush1.msra.mxu0 0.0
    %3059 = vmatprep.subr.mxu0 0.0
    %3060 = vmatpush1.msra.mxu0 0.0
    %3061 = vmatprep.subr.mxu0 0.0
    %3062 = vmatpush1.msra.mxu0 0.0
    %3063 = vmatprep.subr.mxu0 0.0
    %3064 = vmatpush1.msra.mxu0 0.0
    %3065 = vmatprep.subr.mxu0 0.0
    %3066 = vmatpush1.msra.mxu0 0.0
    %3067 = vmatprep.subr.mxu0 0.0
    %3068 = vmatpush1.msra.mxu0 0.0
    %3069 = vmatprep.subr.mxu0 0.0
    %3070 = vmatpush1.msra.mxu0 0.0
    %3071 = vmatprep.subr.mxu0 0.0
    %3072 = vmatpush1.msra.mxu0 0.0
    %3073 = vmatprep.subr.mxu0 0.0
    %3074 = vmatpush1.msra.mxu0 0.0
    %3075 = vmatprep.subr.mxu0 0.0
    %3076 = vmatpush1.msra.mxu0 0.0
    %3077 = vmatprep.subr.mxu0 0.0
    %3078 = vmatpush1.msra.mxu0 0.0
    %3079 = vmatprep.subr.mxu0 0.0
    %3080 = vmatpush1.msra.mxu0 0.0
    %3081 = vmatprep.subr.mxu0 0.0
    %3082 = vmatpush1.msra.mxu0 0.0
    %3083 = vmatprep.subr.mxu0 0.0
    %3084 = vmatpush1.msra.mxu0 0.0
    %3085 = vmatprep.subr.mxu0 0.0
    %3086 = vmatpush1.msra.mxu0 0.0
    %3087 = vmatprep.subr.mxu0 0.0
    %3088 = vmatpush1.msra.mxu0 0.0
    %3089 = vmatprep.subr.mxu0 0.0
    %3090 = vmatpush1.msra.mxu0 0.0
    %3091 = vmatprep.subr.mxu0 0.0
    %3092 = vmatpush1.msra.mxu0 0.0
    %3093 = vmatprep.subr.mxu0 0.0
    %3094 = vmatpush1.msra.mxu0 0.0
    %3095 = vmatprep.subr.mxu0 0.0
    %3096 = vmatpush1.msra.mxu0 0.0
    %3097 = vmatprep.mubr.f32.mxu0 0.0
    %3098 = vmatmul.mubr.f32.gmra.mrb[0].mxu0 %v3031
    %v3099 = vpop.f32.mrb[0].mxu0
    %v3100 = vadd.f32 0.0, %v3099
    %v3101 = vpop.f32.mrb[0].mxu0
    %3102 = vdwg.mxu0
    %v3103 = vld [vmem:[%s20] sm:$0xff]
    %v3104 = vld [vmem:[%s20 + $0x8] sm:$0xff]
    %v3105 = vld [vmem:[%s20 + $0x10] sm:$0xff]
    %v3106 = vld [vmem:[%s20 + $0x18] sm:$0xff]
    %v3107 = vld [vmem:[%s21] sm:$0x1]
    %v3109 = vrot.slane %v3100, 3
    %v3111 = vsel %vm165, %v3100, %v3109
    %3112 = vmatprep.subr.mxu0 0.0
    %3113 = vmatpush1.msra.mxu0 %v3103
    %3114 = vmatprep.subr.mxu0 0.0
    %3115 = vmatpush1.msra.mxu0 %v3104
    %3116 = vmatprep.subr.mxu0 0.0
    %3117 = vmatpush1.msra.mxu0 %v3105
    %3118 = vmatprep.subr.mxu0 0.0
    %3119 = vmatpush1.msra.mxu0 %v3106
    %3120 = vmatprep.subr.mxu0 0.0
    %3121 = vmatpush1.msra.mxu0 0.0
    %3122 = vmatprep.subr.mxu0 0.0
    %3123 = vmatpush1.msra.mxu0 0.0
    %3124 = vmatprep.subr.mxu0 0.0
    %3125 = vmatpush1.msra.mxu0 0.0
    %3126 = vmatprep.subr.mxu0 0.0
    %3127 = vmatpush1.msra.mxu0 0.0
    %3128 = vmatprep.subr.mxu0 0.0
    %3129 = vmatpush1.msra.mxu0 0.0
    %3130 = vmatprep.subr.mxu0 0.0
    %3131 = vmatpush1.msra.mxu0 0.0
    %3132 = vmatprep.subr.mxu0 0.0
    %3133 = vmatpush1.msra.mxu0 0.0
    %3134 = vmatprep.subr.mxu0 0.0
    %3135 = vmatpush1.msra.mxu0 0.0
    %3136 = vmatprep.subr.mxu0 0.0
    %3137 = vmatpush1.msra.mxu0 0.0
    %3138 = vmatprep.subr.mxu0 0.0
    %3139 = vmatpush1.msra.mxu0 0.0
    %3140 = vmatprep.subr.mxu0 0.0
    %3141 = vmatpush1.msra.mxu0 0.0
    %3142 = vmatprep.subr.mxu0 0.0
    %3143 = vmatpush1.msra.mxu0 0.0
    %3144 = vmatprep.subr.mxu0 0.0
    %3145 = vmatpush1.msra.mxu0 0.0
    %3146 = vmatprep.subr.mxu0 0.0
    %3147 = vmatpush1.msra.mxu0 0.0
    %3148 = vmatprep.subr.mxu0 0.0
    %3149 = vmatpush1.msra.mxu0 0.0
    %3150 = vmatprep.subr.mxu0 0.0
    %3151 = vmatpush1.msra.mxu0 0.0
    %3152 = vmatprep.subr.mxu0 0.0
    %3153 = vmatpush1.msra.mxu0 0.0
    %3154 = vmatprep.subr.mxu0 0.0
    %3155 = vmatpush1.msra.mxu0 0.0
    %3156 = vmatprep.subr.mxu0 0.0
    %3157 = vmatpush1.msra.mxu0 0.0
    %3158 = vmatprep.subr.mxu0 0.0
    %3159 = vmatpush1.msra.mxu0 0.0
    %3160 = vmatprep.subr.mxu0 0.0
    %3161 = vmatpush1.msra.mxu0 0.0
    %3162 = vmatprep.subr.mxu0 0.0
    %3163 = vmatpush1.msra.mxu0 0.0
    %3164 = vmatprep.subr.mxu0 0.0
    %3165 = vmatpush1.msra.mxu0 0.0
    %3166 = vmatprep.subr.mxu0 0.0
    %3167 = vmatpush1.msra.mxu0 0.0
    %3168 = vmatprep.subr.mxu0 0.0
    %3169 = vmatpush1.msra.mxu0 0.0
    %3170 = vmatprep.subr.mxu0 0.0
    %3171 = vmatpush1.msra.mxu0 0.0
    %3172 = vmatprep.subr.mxu0 0.0
    %3173 = vmatpush1.msra.mxu0 0.0
    %3174 = vmatprep.subr.mxu0 0.0
    %3175 = vmatpush1.msra.mxu0 0.0
    %3176 = vmatprep.mubr.f32.mxu0 0.0
    %3177 = vmatmul.mubr.f32.gmra.mrb[0].mxu0 %v169
    %v3178 = vpop.f32.mrb[0].mxu0
    %v3179 = vadd.f32 0.0, %v3178
    %v3180 = vpop.f32.mrb[0].mxu0
    %3181 = vdwg.mxu0
    %v3182 = vadd.f32 %v3111, %v3179
    %v3184 = vlaneseq
    %v3185 = vshrl.u32 %v3184, 7
    %v3186 = vsub.s32 0, %v3185
    %v3187 = vrot.slane %v3107, %v3186
    %v3189 = vadd.f32 %v3182, %v3187
    %v3190 = vtanh.pop %v3189
    %v3191 = vxor.u32 %v3189, 2147483648
    %v3192 = vmul.f32 %v3191, 1.442695
    %v3193 = vpow.pop %v3192
    %v3194 = vadd.f32 %v3193, 1.0
    %v3195 = vrcp.pop %v3194
    %v3196 = vmul.f32 1.0, %v3195
    %v3197 = vsel %vm253, %v3190, %v3196
    %v3198 = vmul.f32 %v3197, 0.0
    %3200 = vrot.lane.b32.xlu0 %v3197, 64
    %v3201 = vpop.permute.xlu0 %3200
    %v3203 = vmul.f32 %v3197, %v3201
    %3205 = vrot.lane.b32.xlu0 %v3203, 32
    %v3206 = vpop.permute.xlu0 %3205
    %v3208 = vadd.f32 %v3198, %v3206
    %v3209 = vtanh.pop %v3208
    %3211 = vrot.lane.b32.xlu0 %v3209, 64
    %v3212 = vpop.permute.xlu0 %3211
    %v3214 = vmul.f32 %v3197, %v3212
    %3216 = vrot.lane.b32.xlu0 %v3214, 32
    %v3217 = vpop.permute.xlu0 %3216
    %3219 = vst.msk [vmem:[#allocation7] sm:$0x1] %vm283, %v3217
    %3220 = vst.msk [vmem:[#allocation7 + $0x3] sm:$0x2] %vm285, %v3217
    %v3221 = vrot.slane %v3100, 1
    %v3223 = vrot.slane %v3100, 4
    %v3225 = vsel %vm165, %v3221, %v3223
    %v3226 = vsel %vm167, %v3217, 0
    %3228 = vmatprep.subr.mxu0 0.0
    %3229 = vmatpush1.msra.mxu0 %v3103
    %3230 = vmatprep.subr.mxu0 0.0
    %3231 = vmatpush1.msra.mxu0 %v3104
    %3232 = vmatprep.subr.mxu0 0.0
    %3233 = vmatpush1.msra.mxu0 %v3105
    %3234 = vmatprep.subr.mxu0 0.0
    %3235 = vmatpush1.msra.mxu0 %v3106
    %3236 = vmatprep.subr.mxu0 0.0
    %3237 = vmatpush1.msra.mxu0 0.0
    %3238 = vmatprep.subr.mxu0 0.0
    %3239 = vmatpush1.msra.mxu0 0.0
    %3240 = vmatprep.subr.mxu0 0.0
    %3241 = vmatpush1.msra.mxu0 0.0
    %3242 = vmatprep.subr.mxu0 0.0
    %3243 = vmatpush1.msra.mxu0 0.0
    %3244 = vmatprep.subr.mxu0 0.0
    %3245 = vmatpush1.msra.mxu0 0.0
    %3246 = vmatprep.subr.mxu0 0.0
    %3247 = vmatpush1.msra.mxu0 0.0
    %3248 = vmatprep.subr.mxu0 0.0
    %3249 = vmatpush1.msra.mxu0 0.0
    %3250 = vmatprep.subr.mxu0 0.0
    %3251 = vmatpush1.msra.mxu0 0.0
    %3252 = vmatprep.subr.mxu0 0.0
    %3253 = vmatpush1.msra.mxu0 0.0
    %3254 = vmatprep.subr.mxu0 0.0
    %3255 = vmatpush1.msra.mxu0 0.0
    %3256 = vmatprep.subr.mxu0 0.0
    %3257 = vmatpush1.msra.mxu0 0.0
    %3258 = vmatprep.subr.mxu0 0.0
    %3259 = vmatpush1.msra.mxu0 0.0
    %3260 = vmatprep.subr.mxu0 0.0
    %3261 = vmatpush1.msra.mxu0 0.0
    %3262 = vmatprep.subr.mxu0 0.0
    %3263 = vmatpush1.msra.mxu0 0.0
    %3264 = vmatprep.subr.mxu0 0.0
    %3265 = vmatpush1.msra.mxu0 0.0
    %3266 = vmatprep.subr.mxu0 0.0
    %3267 = vmatpush1.msra.mxu0 0.0
    %3268 = vmatprep.subr.mxu0 0.0
    %3269 = vmatpush1.msra.mxu0 0.0
    %3270 = vmatprep.subr.mxu0 0.0
    %3271 = vmatpush1.msra.mxu0 0.0
    %3272 = vmatprep.subr.mxu0 0.0
    %3273 = vmatpush1.msra.mxu0 0.0
    %3274 = vmatprep.subr.mxu0 0.0
    %3275 = vmatpush1.msra.mxu0 0.0
    %3276 = vmatprep.subr.mxu0 0.0
    %3277 = vmatpush1.msra.mxu0 0.0
    %3278 = vmatprep.subr.mxu0 0.0
    %3279 = vmatpush1.msra.mxu0 0.0
    %3280 = vmatprep.subr.mxu0 0.0
    %3281 = vmatpush1.msra.mxu0 0.0
    %3282 = vmatprep.subr.mxu0 0.0
    %3283 = vmatpush1.msra.mxu0 0.0
    %3284 = vmatprep.subr.mxu0 0.0
    %3285 = vmatpush1.msra.mxu0 0.0
    %3286 = vmatprep.subr.mxu0 0.0
    %3287 = vmatpush1.msra.mxu0 0.0
    %3288 = vmatprep.subr.mxu0 0.0
    %3289 = vmatpush1.msra.mxu0 0.0
    %3290 = vmatprep.subr.mxu0 0.0
    %3291 = vmatpush1.msra.mxu0 0.0
    %3292 = vmatprep.mubr.f32.mxu0 0.0
    %3293 = vmatmul.mubr.f32.gmra.mrb[0].mxu0 %v3226
    %v3294 = vpop.f32.mrb[0].mxu0
    %v3295 = vadd.f32 0.0, %v3294
    %v3296 = vpop.f32.mrb[0].mxu0
    %3297 = vdwg.mxu0
    %v3298 = vadd.f32 %v3225, %v3295
    %v3299 = vadd.f32 %v3298, %v3187
    %v3300 = vtanh.pop %v3299
    %v3301 = vxor.u32 %v3299, 2147483648
    %v3302 = vmul.f32 %v3301, 1.442695
    %v3303 = vpow.pop %v3302
    %v3304 = vadd.f32 %v3303, 1.0
    %v3305 = vrcp.pop %v3304
    %v3306 = vmul.f32 1.0, %v3305
    %v3307 = vsel %vm253, %v3300, %v3306
    %v3308 = vmul.f32 %v3307, %v3208
    %3310 = vrot.lane.b32.xlu0 %v3307, 64
    %v3311 = vpop.permute.xlu0 %3310
    %v3313 = vmul.f32 %v3307, %v3311
    %3315 = vrot.lane.b32.xlu0 %v3313, 32
    %v3316 = vpop.permute.xlu0 %3315
    %v3318 = vadd.f32 %v3308, %v3316
    %v3319 = vtanh.pop %v3318
    %3321 = vrot.lane.b32.xlu0 %v3319, 64
    %v3322 = vpop.permute.xlu0 %3321
    %v3324 = vmul.f32 %v3307, %v3322
    %3326 = vrot.lane.b32.xlu0 %v3324, 32
    %v3327 = vpop.permute.xlu0 %3326
    %3329 = vst.msk [vmem:[#allocation7 + $0x1] sm:$0x1] %vm283, %v3327
    %3330 = vst.msk [vmem:[#allocation7 + $0x4] sm:$0x2] %vm285, %v3327
    %v3331 = vrot.slane %v3100, 2
    %v3333 = vrot.slane %v3100, 5
    %v3335 = vsel %vm165, %v3331, %v3333
    %v3336 = vsel %vm167, %v3327, 0
    %3338 = vmatprep.subr.mxu0 0.0
    %3339 = vmatpush1.msra.mxu0 %v3103
    %3340 = vmatprep.subr.mxu0 0.0
    %3341 = vmatpush1.msra.mxu0 %v3104
    %3342 = vmatprep.subr.mxu0 0.0
    %3343 = vmatpush1.msra.mxu0 %v3105
    %3344 = vmatprep.subr.mxu0 0.0
    %3345 = vmatpush1.msra.mxu0 %v3106
    %3346 = vmatprep.subr.mxu0 0.0
    %3347 = vmatpush1.msra.mxu0 0.0
    %3348 = vmatprep.subr.mxu0 0.0
    %3349 = vmatpush1.msra.mxu0 0.0
    %3350 = vmatprep.subr.mxu0 0.0
    %3351 = vmatpush1.msra.mxu0 0.0
    %3352 = vmatprep.subr.mxu0 0.0
    %3353 = vmatpush1.msra.mxu0 0.0
    %3354 = vmatprep.subr.mxu0 0.0
    %3355 = vmatpush1.msra.mxu0 0.0
    %3356 = vmatprep.subr.mxu0 0.0
    %3357 = vmatpush1.msra.mxu0 0.0
    %3358 = vmatprep.subr.mxu0 0.0
    %3359 = vmatpush1.msra.mxu0 0.0
    %3360 = vmatprep.subr.mxu0 0.0
    %3361 = vmatpush1.msra.mxu0 0.0
    %3362 = vmatprep.subr.mxu0 0.0
    %3363 = vmatpush1.msra.mxu0 0.0
    %3364 = vmatprep.subr.mxu0 0.0
    %3365 = vmatpush1.msra.mxu0 0.0
    %3366 = vmatprep.subr.mxu0 0.0
    %3367 = vmatpush1.msra.mxu0 0.0
    %3368 = vmatprep.subr.mxu0 0.0
    %3369 = vmatpush1.msra.mxu0 0.0
    %3370 = vmatprep.subr.mxu0 0.0
    %3371 = vmatpush1.msra.mxu0 0.0
    %3372 = vmatprep.subr.mxu0 0.0
    %3373 = vmatpush1.msra.mxu0 0.0
    %3374 = vmatprep.subr.mxu0 0.0
    %3375 = vmatpush1.msra.mxu0 0.0
    %3376 = vmatprep.subr.mxu0 0.0
    %3377 = vmatpush1.msra.mxu0 0.0
    %3378 = vmatprep.subr.mxu0 0.0
    %3379 = vmatpush1.msra.mxu0 0.0
    %3380 = vmatprep.subr.mxu0 0.0
    %3381 = vmatpush1.msra.mxu0 0.0
    %3382 = vmatprep.subr.mxu0 0.0
    %3383 = vmatpush1.msra.mxu0 0.0
    %3384 = vmatprep.subr.mxu0 0.0
    %3385 = vmatpush1.msra.mxu0 0.0
    %3386 = vmatprep.subr.mxu0 0.0
    %3387 = vmatpush1.msra.mxu0 0.0
    %3388 = vmatprep.subr.mxu0 0.0
    %3389 = vmatpush1.msra.mxu0 0.0
    %3390 = vmatprep.subr.mxu0 0.0
    %3391 = vmatpush1.msra.mxu0 0.0
    %3392 = vmatprep.subr.mxu0 0.0
    %3393 = vmatpush1.msra.mxu0 0.0
    %3394 = vmatprep.subr.mxu0 0.0
    %3395 = vmatpush1.msra.mxu0 0.0
    %3396 = vmatprep.subr.mxu0 0.0
    %3397 = vmatpush1.msra.mxu0 0.0
    %3398 = vmatprep.subr.mxu0 0.0
    %3399 = vmatpush1.msra.mxu0 0.0
    %3400 = vmatprep.subr.mxu0 0.0
    %3401 = vmatpush1.msra.mxu0 0.0
    %3402 = vmatprep.mubr.f32.mxu0 0.0
    %3403 = vmatmul.mubr.f32.gmra.mrb[0].mxu0 %v3336
    %v3404 = vpop.f32.mrb[0].mxu0
    %v3405 = vadd.f32 0.0, %v3404
    %v3406 = vpop.f32.mrb[0].mxu0
    %3407 = vdwg.mxu0
    %v3408 = vadd.f32 %v3335, %v3405
    %v3409 = vadd.f32 %v3408, %v3187
    %v3410 = vtanh.pop %v3409
    %v3411 = vxor.u32 %v3409, 2147483648
    %v3412 = vmul.f32 %v3411, 1.442695
    %v3413 = vpow.pop %v3412
    %v3414 = vadd.f32 %v3413, 1.0
    %v3415 = vrcp.pop %v3414
    %v3416 = vmul.f32 1.0, %v3415
    %v3417 = vsel %vm253, %v3410, %v3416
    %v3418 = vmul.f32 %v3417, %v3318
    %3420 = vrot.lane.b32.xlu0 %v3417, 64
    %v3421 = vpop.permute.xlu0 %3420
    %v3423 = vmul.f32 %v3417, %v3421
    %3425 = vrot.lane.b32.xlu0 %v3423, 32
    %v3426 = vpop.permute.xlu0 %3425
    %v3428 = vadd.f32 %v3418, %v3426
    %v3429 = vtanh.pop %v3428
    %3431 = vrot.lane.b32.xlu0 %v3429, 64
    %v3432 = vpop.permute.xlu0 %3431
    %v3434 = vmul.f32 %v3417, %v3432
    %3436 = vrot.lane.b32.xlu0 %v3434, 32
    %v3437 = vpop.permute.xlu0 %3436
    %3439 = vst.msk [vmem:[#allocation7 + $0x2] sm:$0x1] %vm283, %v3437
    %3440 = vst.msk [vmem:[#allocation7 + $0x5] sm:$0x2] %vm285, %v3437
    %v3441 = vrot.slane %v3100, 6
    %v3443 = vsel %vm165, %v3109, %v3441
    %v3444 = vsel %vm167, %v3437, 0
    %3446 = vmatprep.subr.mxu0 0.0
    %3447 = vmatpush1.msra.mxu0 %v3103
    %3448 = vmatprep.subr.mxu0 0.0
    %3449 = vmatpush1.msra.mxu0 %v3104
    %3450 = vmatprep.subr.mxu0 0.0
    %3451 = vmatpush1.msra.mxu0 %v3105
    %3452 = vmatprep.subr.mxu0 0.0
    %3453 = vmatpush1.msra.mxu0 %v3106
    %3454 = vmatprep.subr.mxu0 0.0
    %3455 = vmatpush1.msra.mxu0 0.0
    %3456 = vmatprep.subr.mxu0 0.0
    %3457 = vmatpush1.msra.mxu0 0.0
    %3458 = vmatprep.subr.mxu0 0.0
    %3459 = vmatpush1.msra.mxu0 0.0
    %3460 = vmatprep.subr.mxu0 0.0
    %3461 = vmatpush1.msra.mxu0 0.0
    %3462 = vmatprep.subr.mxu0 0.0
    %3463 = vmatpush1.msra.mxu0 0.0
    %3464 = vmatprep.subr.mxu0 0.0
    %3465 = vmatpush1.msra.mxu0 0.0
    %3466 = vmatprep.subr.mxu0 0.0
    %3467 = vmatpush1.msra.mxu0 0.0
    %3468 = vmatprep.subr.mxu0 0.0
    %3469 = vmatpush1.msra.mxu0 0.0
    %3470 = vmatprep.subr.mxu0 0.0
    %3471 = vmatpush1.msra.mxu0 0.0
    %3472 = vmatprep.subr.mxu0 0.0
    %3473 = vmatpush1.msra.mxu0 0.0
    %3474 = vmatprep.subr.mxu0 0.0
    %3475 = vmatpush1.msra.mxu0 0.0
    %3476 = vmatprep.subr.mxu0 0.0
    %3477 = vmatpush1.msra.mxu0 0.0
    %3478 = vmatprep.subr.mxu0 0.0
    %3479 = vmatpush1.msra.mxu0 0.0
    %3480 = vmatprep.subr.mxu0 0.0
    %3481 = vmatpush1.msra.mxu0 0.0
    %3482 = vmatprep.subr.mxu0 0.0
    %3483 = vmatpush1.msra.mxu0 0.0
    %3484 = vmatprep.subr.mxu0 0.0
    %3485 = vmatpush1.msra.mxu0 0.0
    %3486 = vmatprep.subr.mxu0 0.0
    %3487 = vmatpush1.msra.mxu0 0.0
    %3488 = vmatprep.subr.mxu0 0.0
    %3489 = vmatpush1.msra.mxu0 0.0
    %3490 = vmatprep.subr.mxu0 0.0
    %3491 = vmatpush1.msra.mxu0 0.0
    %3492 = vmatprep.subr.mxu0 0.0
    %3493 = vmatpush1.msra.mxu0 0.0
    %3494 = vmatprep.subr.mxu0 0.0
    %3495 = vmatpush1.msra.mxu0 0.0
    %3496 = vmatprep.subr.mxu0 0.0
    %3497 = vmatpush1.msra.mxu0 0.0
    %3498 = vmatprep.subr.mxu0 0.0
    %3499 = vmatpush1.msra.mxu0 0.0
    %3500 = vmatprep.subr.mxu0 0.0
    %3501 = vmatpush1.msra.mxu0 0.0
    %3502 = vmatprep.subr.mxu0 0.0
    %3503 = vmatpush1.msra.mxu0 0.0
    %3504 = vmatprep.subr.mxu0 0.0
    %3505 = vmatpush1.msra.mxu0 0.0
    %3506 = vmatprep.subr.mxu0 0.0
    %3507 = vmatpush1.msra.mxu0 0.0
    %3508 = vmatprep.subr.mxu0 0.0
    %3509 = vmatpush1.msra.mxu0 0.0
    %3510 = vmatprep.mubr.f32.mxu0 0.0
    %3511 = vmatmul.mubr.f32.gmra.mrb[0].mxu0 %v3444
    %v3512 = vpop.f32.mrb[0].mxu0
    %v3513 = vadd.f32 0.0, %v3512
    %v3514 = vpop.f32.mrb[0].mxu0
    %3515 = vdwg.mxu0
    %v3516 = vadd.f32 %v3443, %v3513
    %v3517 = vadd.f32 %v3516, %v3187
    %v3518 = vtanh.pop %v3517
    %v3519 = vxor.u32 %v3517, 2147483648
    %v3520 = vmul.f32 %v3519, 1.442695
    %v3521 = vpow.pop %v3520
    %v3522 = vadd.f32 %v3521, 1.0
    %v3523 = vrcp.pop %v3522
    %v3524 = vmul.f32 1.0, %v3523
    %v3525 = vsel %vm253, %v3518, %v3524
    %v3526 = vmul.f32 %v3525, %v3428
    %3528 = vrot.lane.b32.xlu0 %v3525, 64
    %v3529 = vpop.permute.xlu0 %3528
    %v3531 = vmul.f32 %v3525, %v3529
    %3533 = vrot.lane.b32.xlu0 %v3531, 32
    %v3534 = vpop.permute.xlu0 %3533
    %v3536 = vadd.f32 %v3526, %v3534
    %v3537 = vtanh.pop %v3536
    %3539 = vrot.lane.b32.xlu0 %v3537, 64
    %v3540 = vpop.permute.xlu0 %3539
    %v3542 = vmul.f32 %v3525, %v3540
    %3544 = vrot.lane.b32.xlu0 %v3542, 32
    %v3545 = vpop.permute.xlu0 %3544
    %3547 = vst.msk [vmem:[#allocation7 + $0x3] sm:$0x1] %vm283, %v3545
    %3548 = vst.msk [vmem:[#allocation7 + $0x6] sm:$0x2] %vm285, %v3545
    // Predicated region
    $region86: #{speaker_encoder_forward.1} parent=1 // pred_check
      _
    $region87: #{speaker_encoder_forward.1} parent=1 // pred_check_branch
      %3550 = sbr.rel (0) target = $region89
    $region88: #{speaker_encoder_forward.1} parent=1 // pred_region
      %s3552 = ssub.s32 128, 128
      %3553 = vsyncadd [#allocation8], %s3552
      %s3555 = sshll.u32 [#allocation7], 4
      %s3556 = int_to_ptr.vmem [resolvable:$true] %s3555
      %3558 = dma.vmem_to_hbm [thread:$0]  %s3556, 128, %s22, [#allocation8]
    $region89: #{speaker_encoder_forward.1} parent=1 // pred_fallthru
      _
    // Predicated region
    $region90: #{speaker_encoder_forward.1} parent=1 // pred_check
      _
    $region91: #{speaker_encoder_forward.1} parent=1 // pred_check_branch
      %3560 = sbr.rel (0) target = $region93
    $region92: #{speaker_encoder_forward.1} parent=1 // pred_region
      %3561 = dma.done [#allocation8], 128
    $region93: #{speaker_encoder_forward.1} parent=1 // pred_fallthru
      _
    %3562 = vsyncpa [#allocation8], 1

</llo_original>
